<compile_context>
chip_gen: v7x
topology: tpu7x:2x2x1
jax: 0.10.0
libtpu: 0.0.40
codegen_flags: <defaults>
</compile_context>

<pallas_src>
import functools
import math

import jax
import jax.numpy as jnp
from jax import lax
from jax.experimental import pallas as pl
from jax.experimental.pallas import tpu as pltpu


def _attn_block_kernel(x_ref, wq_ref, wk_ref, wv_ref, wp_ref,
                       gamma_ref, beta_ref, bproj_ref, o_ref,
                       xn_scr, kT_scr, vT_scr, ocat_scr,
                       *, num_heads, head_dim, tq, eps):
    qi = pl.program_id(1)
    scale = 1.0 / math.sqrt(float(head_dim))
    n_tokens = xn_scr.shape[0]

    # ---- once per batch element: row-tiled LayerNorm + full-width K^T / V^T ----
    @pl.when(qi == 0)
    def _():
        n_chunks = n_tokens // tq

        def ln_body(i, carry):
            r = pl.multiple_of(i * tq, tq)
            xr = x_ref[0, pl.ds(r, tq), :].astype(jnp.float32)            # (TQ, C)
            mean = jnp.mean(xr, axis=-1, keepdims=True)
            xc = xr - mean                                                # two-pass variance
            var = jnp.mean(xc * xc, axis=-1, keepdims=True)
            xn = xc * lax.rsqrt(var + eps)
            xn = xn * gamma_ref[...] + beta_ref[...]
            xn_scr[pl.ds(r, tq), :] = xn.astype(jnp.bfloat16)
            return carry

        lax.fori_loop(0, n_chunks, ln_body, 0)

        xn_all = xn_scr[...]                                              # (N, C) bf16
        # (C, C) . (N, C)^T -> (C, N): full output width C (MXU-friendly), per-head
        # row bands are sublane-aligned (D multiple of 16 for bf16).
        kT_scr[...] = lax.dot_general(
            wk_ref[...], xn_all, (((1,), (1,)), ((), ())),
            preferred_element_type=jnp.float32).astype(jnp.bfloat16)
        vT_scr[...] = lax.dot_general(
            wv_ref[...], xn_all, (((1,), (1,)), ((), ())),
            preferred_element_type=jnp.float32).astype(jnp.bfloat16)

    # ---- every step: one query tile, all heads in an in-kernel loop ----
    qs = pl.multiple_of(qi * tq, tq)
    xn_q = xn_scr[pl.ds(qs, tq), :]                                       # (TQ, C) bf16
    q_all = lax.dot_general(xn_q, wq_ref[...], (((1,), (1,)), ((), ())),
                            preferred_element_type=jnp.float32)           # (TQ, C) f32
    q_all = (q_all * scale).astype(jnp.bfloat16)   # fold 1/sqrt(D) into Q (small tensor)

    # static unroll keeps all head slices at compile-time offsets; grid stays (B, N//tq)
    for h in range(num_heads):
        lo = h * head_dim
        q_h = q_all[:, lo:lo + head_dim]                                  # (TQ, D) bf16
        kT_h = kT_scr[lo:lo + head_dim, :]                                # (D, N) bf16
        vT_h = vT_scr[lo:lo + head_dim, :]                                # (D, N) bf16

        s = lax.dot_general(q_h, kT_h, (((1,), (0,)), ((), ())),
                            preferred_element_type=jnp.float32)           # (TQ, N) f32
        s = s - jnp.max(s, axis=-1, keepdims=True)
        p = jnp.exp(s)                                                    # f32 (safe on v5e too)
        l = jnp.sum(p, axis=-1, keepdims=True)                            # (TQ, 1) f32

        o_h = lax.dot_general(p.astype(jnp.bfloat16), vT_h,
                              (((1,), (1,)), ((), ())),
                              preferred_element_type=jnp.float32)         # (TQ, D) f32
        # deferred softmax normalization: multiply on (TQ, D), not (TQ, N)
        o_h = o_h * pl.reciprocal(l, approx=True)
        ocat_scr[:, lo:lo + head_dim] = o_h.astype(jnp.bfloat16)          # 32-lane masked store

    # fused output projection: single matmul with contraction depth C, emitted
    # channel-major (C, TQ) so the wrapper needs no output transpose.
    outT = lax.dot_general(wp_ref[...], ocat_scr[...], (((1,), (1,)), ((), ())),
                           preferred_element_type=jnp.float32)            # (C, TQ) f32
    o_ref[0] = (outT + bproj_ref[...]).astype(o_ref.dtype)


def _vmem_budget_bytes(n_tokens, channels, tq):
    bf, f32 = 2, 4
    est = (
        2 * n_tokens * channels * f32          # x block (double-buffered)
        + 2 * channels * tq * f32              # out block (double-buffered)
        + 2 * 4 * channels * channels * bf     # wq/wk/wv/wproj (resident; conservative 2x)
        + n_tokens * channels * bf             # xn scratch
        + 2 * channels * n_tokens * bf         # K^T / V^T scratch
        + tq * channels * bf                   # head-concat scratch
        + 2 * channels * n_tokens * f32        # K/V f32 matmul temporaries at qi==0
        + 4 * tq * n_tokens * f32              # score / prob temporaries
        + 4 * tq * channels * f32              # q_all / LayerNorm-chunk temporaries
    )
    try:
        cap = int(pltpu.get_tpu_info().vmem_capacity_bytes)
    except Exception:
        cap = 64 * 2**20                       # conservative fallback (v7x physical VMEM)
    # leave ~15% headroom for compiler-internal scratch; never claim the whole part
    return int(min(max(int(1.5 * est), 32 * 2**20), int(0.85 * cap)))


def efficient_attention_block(x_nchw, params, *, num_heads, q_tile=128):
    """x_nchw: (B, C, H, W) float32; params in PyTorch convention. Returns (B, C, H, W)."""
    B, C, Hs, Ws = x_nchw.shape
    assert C % num_heads == 0
    N = Hs * Ws
    D = C // num_heads
    tq = q_tile if (N % q_tile == 0 and N >= q_tile) else N
    assert N % tq == 0

    # b c h w -> b (h w) c   (token-major input; output comes back channel-major for free)
    x_tok = jnp.transpose(x_nchw, (0, 2, 3, 1)).reshape(B, N, C).astype(jnp.float32)

    # Full-width weight slabs (PyTorch row layout: weight is (out_features, in_features)).
    qkv_w = params["qkv_weight"].astype(jnp.bfloat16)                 # (3C, C)
    wq = qkv_w[0 * C:1 * C]
    wk = qkv_w[1 * C:2 * C]
    wv = qkv_w[2 * C:3 * C]
    wp = params["proj_weight"].astype(jnp.bfloat16)                   # (C, C)
    gamma = params["gamma"].reshape(1, C).astype(jnp.float32)
    beta = params["beta"].reshape(1, C).astype(jnp.float32)
    bproj = params["proj_bias"].reshape(C, 1).astype(jnp.float32)     # channel-major bias

    kernel = functools.partial(_attn_block_kernel, num_heads=num_heads,
                               head_dim=D, tq=tq, eps=1e-5)

    wspec = pl.BlockSpec((C, C), lambda b, qi: (0, 0))                # resident, constant index

    out_cn = pl.pallas_call(
        kernel,
        out_shape=jax.ShapeDtypeStruct((B, C, N), jnp.float32),
        grid_spec=pltpu.PrefetchScalarGridSpec(
            num_scalar_prefetch=0,
            grid=(B, N // tq),
            in_specs=[
                pl.BlockSpec((1, N, C), lambda b, qi: (b, 0, 0)),     # x (resident per batch)
                wspec,                                                # wq  (C, C)
                wspec,                                                # wk
                wspec,                                                # wv
                wspec,                                                # wproj
                pl.BlockSpec((1, C), lambda b, qi: (0, 0)),           # gamma
                pl.BlockSpec((1, C), lambda b, qi: (0, 0)),           # beta
                pl.BlockSpec((C, 1), lambda b, qi: (0, 0)),           # proj bias (channel-major)
            ],
            out_specs=pl.BlockSpec((1, C, tq), lambda b, qi: (b, 0, qi)),
            scratch_shapes=[
                pltpu.VMEM((N, C), jnp.bfloat16),          # LayerNorm'd activations
                pltpu.VMEM((C, N), jnp.bfloat16),          # K^T (all heads, lane-dense)
                pltpu.VMEM((C, N), jnp.bfloat16),          # V^T (all heads, lane-dense)
                pltpu.VMEM((tq, C), jnp.bfloat16),         # per-tile head-concat buffer
            ],
        ),
        compiler_params=pltpu.CompilerParams(
            # batch shards across TensorCores; q-tile axis must stay sequential because
            # xn/K^T/V^T caching at qi==0 relies on iteration order within a core.
            dimension_semantics=("parallel", "arbitrary"),
            vmem_limit_bytes=_vmem_budget_bytes(N, C, tq),
        ),
    )(x_tok, wq, wk, wv, wp, gamma, beta, bproj)

    # (B, C, N) -> (B, C, H, W) is a free reshape (no transpose).
    return out_cn.reshape(B, C, Hs, Ws)


def _reference(x_nchw, params, *, num_heads):
    """Pure-JAX f32 reference mirroring the PyTorch forward."""
    B, C, Hs, Ws = x_nchw.shape
    N = Hs * Ws
    D = C // num_heads
    x = jnp.transpose(x_nchw, (0, 2, 3, 1)).reshape(B, N, C)
    mean = jnp.mean(x, axis=-1, keepdims=True)
    var = jnp.mean((x - mean) ** 2, axis=-1, keepdims=True)
    xn = (x - mean) / jnp.sqrt(var + 1e-5)
    xn = xn * params["gamma"].reshape(1, 1, C) + params["beta"].reshape(1, 1, C)
    qkv = jnp.einsum("bnc,jc->bnj", xn, params["qkv_weight"])          # (B, N, 3C)
    qkv = qkv.reshape(B, N, 3, num_heads, D)
    q = jnp.transpose(qkv[:, :, 0], (0, 2, 1, 3))                      # (B, h, N, D)
    k = jnp.transpose(qkv[:, :, 1], (0, 2, 1, 3))
    v = jnp.transpose(qkv[:, :, 2], (0, 2, 1, 3))
    dots = jnp.einsum("bhnd,bhmd->bhnm", q, k) / math.sqrt(D)
    attn = jax.nn.softmax(dots, axis=-1)
    o = jnp.einsum("bhnm,bhmd->bhnd", attn, v)
    o = jnp.transpose(o, (0, 2, 1, 3)).reshape(B, N, C)
    o = jnp.einsum("bnc,oc->bno", o, params["proj_weight"]) + params["proj_bias"].reshape(1, 1, C)
    return jnp.transpose(o.reshape(B, Hs, Ws, C), (0, 3, 1, 2))


if __name__ == "__main__":
    # Small, lane-friendly shapes consistent with the module (dim divisible by num_heads;
    # C multiple of 128 keeps every store lane-dense): B=2, C=128, H=W=16 -> N=256, D=32.
    B, C, Hs, Ws = 2, 128, 16, 16
    num_heads = 4

    key = jax.random.PRNGKey(0)
    kx, kqkv, kproj, kbias, kg, kb = jax.random.split(key, 6)

    x = jax.random.normal(kx, (B, C, Hs, Ws), dtype=jnp.float32)

    params = {
        "qkv_weight": 0.05 * jax.random.normal(kqkv, (3 * C, C), dtype=jnp.float32),
        "proj_weight": 0.05 * jax.random.normal(kproj, (C, C), dtype=jnp.float32),
        "proj_bias": 0.01 * jax.random.normal(kbias, (C,), dtype=jnp.float32),
        "gamma": 1.0 + 0.1 * jax.random.normal(kg, (C,), dtype=jnp.float32),
        "beta": 0.05 * jax.random.normal(kb, (C,), dtype=jnp.float32),
    }

    out = efficient_attention_block(x, params, num_heads=num_heads)
    out = jax.block_until_ready(out)

    ref = _reference(x, params, num_heads=num_heads)
    assert out.shape == (B, C, Hs, Ws)
    # bf16 MXU operands (f32 accumulation) + approx reciprocal -> compare against the
    # f32 reference with a bf16-appropriate tolerance.
    assert jnp.allclose(out, ref, atol=2e-2, rtol=2e-2), "mismatch vs reference"

    print("KERNEL_OK")
</pallas_src>

<mosaic_0001>
module attributes {stable_mosaic.version = 11 : i64} {
  func.func @_attn_block_kernel(%arg0: i32, %arg1: i32, %arg2: memref<1x256x128xf32, #tpu.memory_space<vmem>>, %arg3: memref<128x128xbf16, #tpu.memory_space<vmem>>, %arg4: memref<128x128xbf16, #tpu.memory_space<vmem>>, %arg5: memref<128x128xbf16, #tpu.memory_space<vmem>>, %arg6: memref<128x128xbf16, #tpu.memory_space<vmem>>, %arg7: memref<1x128xf32, #tpu.memory_space<vmem>>, %arg8: memref<1x128xf32, #tpu.memory_space<vmem>>, %arg9: memref<128x1xf32, #tpu.memory_space<vmem>>, %arg10: memref<1x128x128xf32, #tpu.memory_space<vmem>>, %arg11: memref<256x128xbf16, #tpu.memory_space<vmem>>, %arg12: memref<128x256xbf16, #tpu.memory_space<vmem>>, %arg13: memref<128x256xbf16, #tpu.memory_space<vmem>>, %arg14: memref<128x128xbf16, #tpu.memory_space<vmem>>) attributes {dimension_semantics = [#tpu.dimension_semantics<parallel>, #tpu.dimension_semantics<arbitrary>], iteration_bounds = array<i64: 2, 2>, scalar_prefetch = 0 : i64, scratch_operands = 4 : i64, tpu.core_type = #tpu.core_type<tc>, window_params = [{transform_indices = @transform_0, window_bounds = array<i64: 1, 256, 128>}, {pipeline_mode = #tpu.pipeline_mode<synchronous>, transform_indices = @transform_1, window_bounds = array<i64: 128, 128>}, {pipeline_mode = #tpu.pipeline_mode<synchronous>, transform_indices = @transform_2, window_bounds = array<i64: 128, 128>}, {pipeline_mode = #tpu.pipeline_mode<synchronous>, transform_indices = @transform_3, window_bounds = array<i64: 128, 128>}, {pipeline_mode = #tpu.pipeline_mode<synchronous>, transform_indices = @transform_4, window_bounds = array<i64: 128, 128>}, {pipeline_mode = #tpu.pipeline_mode<synchronous>, transform_indices = @transform_5, window_bounds = array<i64: 1, 128>}, {pipeline_mode = #tpu.pipeline_mode<synchronous>, transform_indices = @transform_6, window_bounds = array<i64: 1, 128>}, {pipeline_mode = #tpu.pipeline_mode<synchronous>, transform_indices = @transform_7, window_bounds = array<i64: 128, 1>}, {transform_indices = @transform_8, window_bounds = array<i64: 1, 128, 128>}]} {
    %c0_i32 = arith.constant 0 : i32
    %0 = arith.cmpi eq, %arg1, %c0_i32 : i32
    %1 = arith.extui %0 : i1 to i32
    %c0_i32_0 = arith.constant 0 : i32
    %2 = arith.cmpi ne, %1, %c0_i32_0 : i32
    scf.if %2 {
      %c0_i32_51 = arith.constant 0 : i32
      %c2_i32 = arith.constant 2 : i32
      %93 = arith.addi %c0_i32_51, %c2_i32 : i32
      %c1_i32 = arith.constant 1 : i32
      scf.for %arg15 = %c0_i32_51 to %93 step %c1_i32  : i32 {
        %c128_i32_65 = arith.constant 128 : i32
        %103 = arith.muli %arg15, %c128_i32_65 : i32
        %104 = tpu.assume_multiple %103, 128 : i32
        %c0_66 = arith.constant 0 : index
        %105 = arith.index_cast %104 : i32 to index
        %c0_67 = arith.constant 0 : index
        %106 = vector.load %arg2[%c0_66, %105, %c0_67] : memref<1x256x128xf32, #tpu.memory_space<vmem>>, vector<1x128x128xf32>
        %107 = vector.shape_cast %106 : vector<1x128x128xf32> to vector<128x128xf32>
        %cst_68 = arith.constant dense<0.000000e+00> : vector<128xf32>
        %108 = vector.multi_reduction <add>, %107, %cst_68 [1] : vector<128x128xf32> to vector<128xf32>
        %109 = vector.shape_cast %108 : vector<128xf32> to vector<128x1xf32>
        %cst_69 = arith.constant 1.280000e+02 : f32
        %110 = vector.broadcast %cst_69 : f32 to vector<128x1xf32>
        %111 = arith.divf %109, %110 : vector<128x1xf32>
        %112 = vector.broadcast %111 : vector<128x1xf32> to vector<128x128xf32>
        %113 = arith.subf %107, %112 : vector<128x128xf32>
        %114 = arith.mulf %113, %113 : vector<128x128xf32>
        %cst_70 = arith.constant dense<0.000000e+00> : vector<128xf32>
        %115 = vector.multi_reduction <add>, %114, %cst_70 [1] : vector<128x128xf32> to vector<128xf32>
        %116 = vector.shape_cast %115 : vector<128xf32> to vector<128x1xf32>
        %cst_71 = arith.constant 1.280000e+02 : f32
        %117 = vector.broadcast %cst_71 : f32 to vector<128x1xf32>
        %118 = arith.divf %116, %117 : vector<128x1xf32>
        %cst_72 = arith.constant 9.99999974E-6 : f32
        %119 = vector.broadcast %cst_72 : f32 to vector<128x1xf32>
        %120 = arith.addf %118, %119 : vector<128x1xf32>
        %121 = math.rsqrt %120 : vector<128x1xf32>
        %122 = vector.broadcast %121 : vector<128x1xf32> to vector<128x128xf32>
        %123 = arith.mulf %113, %122 : vector<128x128xf32>
        %c0_73 = arith.constant 0 : index
        %c0_74 = arith.constant 0 : index
        %124 = vector.load %arg7[%c0_73, %c0_74] : memref<1x128xf32, #tpu.memory_space<vmem>>, vector<1x128xf32>
        %125 = vector.broadcast %124 : vector<1x128xf32> to vector<128x128xf32>
        %126 = arith.mulf %123, %125 : vector<128x128xf32>
        %c0_75 = arith.constant 0 : index
        %c0_76 = arith.constant 0 : index
        %127 = vector.load %arg8[%c0_75, %c0_76] : memref<1x128xf32, #tpu.memory_space<vmem>>, vector<1x128xf32>
        %128 = vector.broadcast %127 : vector<1x128xf32> to vector<128x128xf32>
        %129 = arith.addf %126, %128 : vector<128x128xf32>
        %130 = arith.truncf %129 : vector<128x128xf32> to vector<128x128xbf16>
        %131 = arith.index_cast %104 : i32 to index
        %c0_77 = arith.constant 0 : index
        %132 = vector.load %arg11[%131, %c0_77] : memref<256x128xbf16, #tpu.memory_space<vmem>>, vector<128x128xbf16>
        tpu.vector_store %arg11[%131, %c0_77], %130 {strides = array<i32>} : memref<256x128xbf16, #tpu.memory_space<vmem>>, vector<128x128xbf16>,
      }
      %c2_i32_52 = arith.constant 2 : i32
      %c0_53 = arith.constant 0 : index
      %c0_54 = arith.constant 0 : index
      %94 = vector.load %arg11[%c0_53, %c0_54] : memref<256x128xbf16, #tpu.memory_space<vmem>>, vector<256x128xbf16>
      %c0_55 = arith.constant 0 : index
      %c0_56 = arith.constant 0 : index
      %95 = vector.load %arg4[%c0_55, %c0_56] : memref<128x128xbf16, #tpu.memory_space<vmem>>, vector<128x128xbf16>
      %cst_57 = arith.constant dense<0.000000e+00> : vector<128x256xf32>
      %96 = tpu.matmul %95, %94, %cst_57 {dimension_numbers = #tpu.dot_dimension_numbers<[1], [1], [0], [0], [0, 0, 1, 0], [], []>} : vector<128x128xbf16>, vector<256x128xbf16>, vector<128x256xf32> -> vector<128x256xf32>
      %97 = arith.truncf %96 : vector<128x256xf32> to vector<128x256xbf16>
      %c0_58 = arith.constant 0 : index
      %c0_59 = arith.constant 0 : index
      %98 = vector.load %arg12[%c0_58, %c0_59] : memref<128x256xbf16, #tpu.memory_space<vmem>>, vector<128x256xbf16>
      tpu.vector_store %arg12[%c0_58, %c0_59], %97 {strides = array<i32>} : memref<128x256xbf16, #tpu.memory_space<vmem>>, vector<128x256xbf16>,
      %c0_60 = arith.constant 0 : index
      %c0_61 = arith.constant 0 : index
      %99 = vector.load %arg5[%c0_60, %c0_61] : memref<128x128xbf16, #tpu.memory_space<vmem>>, vector<128x128xbf16>
      %cst_62 = arith.constant dense<0.000000e+00> : vector<128x256xf32>
      %100 = tpu.matmul %99, %94, %cst_62 {dimension_numbers = #tpu.dot_dimension_numbers<[1], [1], [0], [0], [0, 0, 1, 0], [], []>} : vector<128x128xbf16>, vector<256x128xbf16>, vector<128x256xf32> -> vector<128x256xf32>
      %101 = arith.truncf %100 : vector<128x256xf32> to vector<128x256xbf16>
      %c0_63 = arith.constant 0 : index
      %c0_64 = arith.constant 0 : index
      %102 = vector.load %arg13[%c0_63, %c0_64] : memref<128x256xbf16, #tpu.memory_space<vmem>>, vector<128x256xbf16>
      tpu.vector_store %arg13[%c0_63, %c0_64], %101 {strides = array<i32>} : memref<128x256xbf16, #tpu.memory_space<vmem>>, vector<128x256xbf16>,
    } else {
    }
    %c128_i32 = arith.constant 128 : i32
    %3 = arith.muli %arg1, %c128_i32 : i32
    %4 = tpu.assume_multiple %3, 128 : i32
    %5 = arith.index_cast %4 : i32 to index
    %c0 = arith.constant 0 : index
    %6 = vector.load %arg11[%5, %c0] : memref<256x128xbf16, #tpu.memory_space<vmem>>, vector<128x128xbf16>
    %c0_1 = arith.constant 0 : index
    %c0_2 = arith.constant 0 : index
    %7 = vector.load %arg3[%c0_1, %c0_2] : memref<128x128xbf16, #tpu.memory_space<vmem>>, vector<128x128xbf16>
    %cst = arith.constant dense<0.000000e+00> : vector<128x128xf32>
    %8 = tpu.matmul %6, %7, %cst {dimension_numbers = #tpu.dot_dimension_numbers<[1], [1], [0], [0], [0, 0, 1, 0], [], []>} : vector<128x128xbf16>, vector<128x128xbf16>, vector<128x128xf32> -> vector<128x128xf32>
    %cst_3 = arith.constant 0.176776692 : f32
    %9 = vector.broadcast %cst_3 : f32 to vector<128x128xf32>
    %10 = arith.mulf %8, %9 : vector<128x128xf32>
    %11 = arith.truncf %10 : vector<128x128xf32> to vector<128x128xbf16>
    %12 = vector.extract_strided_slice %11 {offsets = [0, 0], sizes = [128, 32], strides = [1, 1]} : vector<128x128xbf16> to vector<128x32xbf16>
    %c0_4 = arith.constant 0 : index
    %c0_5 = arith.constant 0 : index
    %13 = vector.load %arg12[%c0_4, %c0_5] : memref<128x256xbf16, #tpu.memory_space<vmem>>, vector<32x256xbf16>
    %c0_6 = arith.constant 0 : index
    %c0_7 = arith.constant 0 : index
    %14 = vector.load %arg13[%c0_6, %c0_7] : memref<128x256xbf16, #tpu.memory_space<vmem>>, vector<32x256xbf16>
    %cst_8 = arith.constant dense<0.000000e+00> : vector<128x256xf32>
    %15 = tpu.matmul %12, %13, %cst_8 {dimension_numbers = #tpu.dot_dimension_numbers<[1], [0], [0], [1], [0, 0, 1, 1], [], []>} : vector<128x32xbf16>, vector<32x256xbf16>, vector<128x256xf32> -> vector<128x256xf32>
    %cst_9 = arith.constant dense<0xFF800000> : vector<128xf32>
    %16 = vector.multi_reduction <maximumf>, %15, %cst_9 [1] : vector<128x256xf32> to vector<128xf32>
    %17 = vector.shape_cast %16 : vector<128xf32> to vector<128x1xf32>
    %18 = vector.broadcast %17 : vector<128x1xf32> to vector<128x256xf32>
    %19 = arith.subf %15, %18 : vector<128x256xf32>
    %20 = math.exp %19 : vector<128x256xf32>
    %cst_10 = arith.constant dense<0.000000e+00> : vector<128xf32>
    %21 = vector.multi_reduction <add>, %20, %cst_10 [1] : vector<128x256xf32> to vector<128xf32>
    %22 = vector.shape_cast %21 : vector<128xf32> to vector<128x1xf32>
    %23 = arith.truncf %20 : vector<128x256xf32> to vector<128x256xbf16>
    %cst_11 = arith.constant dense<0.000000e+00> : vector<128x32xf32>
    %24 = tpu.matmul %23, %14, %cst_11 {dimension_numbers = #tpu.dot_dimension_numbers<[1], [1], [0], [0], [0, 0, 1, 0], [], []>} : vector<128x256xbf16>, vector<32x256xbf16>, vector<128x32xf32> -> vector<128x32xf32>
    %25 = tpu.reciprocal %22 {approx = true} : vector<128x1xf32> -> vector<128x1xf32>
    %26 = vector.broadcast %25 : vector<128x1xf32> to vector<128x32xf32>
    %27 = arith.mulf %24, %26 : vector<128x32xf32>
    %28 = arith.truncf %27 : vector<128x32xf32> to vector<128x32xbf16>
    %c0_12 = arith.constant 0 : index
    %c0_13 = arith.constant 0 : index
    %29 = vector.load %arg14[%c0_12, %c0_13] : memref<128x128xbf16, #tpu.memory_space<vmem>>, vector<128x32xbf16>
    tpu.vector_store %arg14[%c0_12, %c0_13], %28 {strides = array<i32>} : memref<128x128xbf16, #tpu.memory_space<vmem>>, vector<128x32xbf16>,
    %30 = vector.extract_strided_slice %11 {offsets = [0, 32], sizes = [128, 32], strides = [1, 1]} : vector<128x128xbf16> to vector<128x32xbf16>
    %c32 = arith.constant 32 : index
    %c0_14 = arith.constant 0 : index
    %31 = vector.load %arg12[%c32, %c0_14] : memref<128x256xbf16, #tpu.memory_space<vmem>>, vector<32x256xbf16>
    %c32_15 = arith.constant 32 : index
    %c0_16 = arith.constant 0 : index
    %32 = vector.load %arg13[%c32_15, %c0_16] : memref<128x256xbf16, #tpu.memory_space<vmem>>, vector<32x256xbf16>
    %cst_17 = arith.constant dense<0.000000e+00> : vector<128x256xf32>
    %33 = tpu.matmul %30, %31, %cst_17 {dimension_numbers = #tpu.dot_dimension_numbers<[1], [0], [0], [1], [0, 0, 1, 1], [], []>} : vector<128x32xbf16>, vector<32x256xbf16>, vector<128x256xf32> -> vector<128x256xf32>
    %cst_18 = arith.constant dense<0xFF800000> : vector<128xf32>
    %34 = vector.multi_reduction <maximumf>, %33, %cst_18 [1] : vector<128x256xf32> to vector<128xf32>
    %35 = vector.shape_cast %34 : vector<128xf32> to vector<128x1xf32>
    %36 = vector.broadcast %35 : vector<128x1xf32> to vector<128x256xf32>
    %37 = arith.subf %33, %36 : vector<128x256xf32>
    %38 = math.exp %37 : vector<128x256xf32>
    %cst_19 = arith.constant dense<0.000000e+00> : vector<128xf32>
    %39 = vector.multi_reduction <add>, %38, %cst_19 [1] : vector<128x256xf32> to vector<128xf32>
    %40 = vector.shape_cast %39 : vector<128xf32> to vector<128x1xf32>
    %41 = arith.truncf %38 : vector<128x256xf32> to vector<128x256xbf16>
    %cst_20 = arith.constant dense<0.000000e+00> : vector<128x32xf32>
    %42 = tpu.matmul %41, %32, %cst_20 {dimension_numbers = #tpu.dot_dimension_numbers<[1], [1], [0], [0], [0, 0, 1, 0], [], []>} : vector<128x256xbf16>, vector<32x256xbf16>, vector<128x32xf32> -> vector<128x32xf32>
    %43 = tpu.reciprocal %40 {approx = true} : vector<128x1xf32> -> vector<128x1xf32>
    %44 = vector.broadcast %43 : vector<128x1xf32> to vector<128x32xf32>
    %45 = arith.mulf %42, %44 : vector<128x32xf32>
    %46 = arith.truncf %45 : vector<128x32xf32> to vector<128x32xbf16>
    %c0_21 = arith.constant 0 : index
    %c32_22 = arith.constant 32 : index
    %47 = vector.load %arg14[%c0_21, %c32_22] : memref<128x128xbf16, #tpu.memory_space<vmem>>, vector<128x32xbf16>
    tpu.vector_store %arg14[%c0_21, %c32_22], %46 {strides = array<i32>} : memref<128x128xbf16, #tpu.memory_space<vmem>>, vector<128x32xbf16>,
    %48 = vector.extract_strided_slice %11 {offsets = [0, 64], sizes = [128, 32], strides = [1, 1]} : vector<128x128xbf16> to vector<128x32xbf16>
    %c64 = arith.constant 64 : index
    %c0_23 = arith.constant 0 : index
    %49 = vector.load %arg12[%c64, %c0_23] : memref<128x256xbf16, #tpu.memory_space<vmem>>, vector<32x256xbf16>
    %c64_24 = arith.constant 64 : index
    %c0_25 = arith.constant 0 : index
    %50 = vector.load %arg13[%c64_24, %c0_25] : memref<128x256xbf16, #tpu.memory_space<vmem>>, vector<32x256xbf16>
    %cst_26 = arith.constant dense<0.000000e+00> : vector<128x256xf32>
    %51 = tpu.matmul %48, %49, %cst_26 {dimension_numbers = #tpu.dot_dimension_numbers<[1], [0], [0], [1], [0, 0, 1, 1], [], []>} : vector<128x32xbf16>, vector<32x256xbf16>, vector<128x256xf32> -> vector<128x256xf32>
    %cst_27 = arith.constant dense<0xFF800000> : vector<128xf32>
    %52 = vector.multi_reduction <maximumf>, %51, %cst_27 [1] : vector<128x256xf32> to vector<128xf32>
    %53 = vector.shape_cast %52 : vector<128xf32> to vector<128x1xf32>
    %54 = vector.broadcast %53 : vector<128x1xf32> to vector<128x256xf32>
    %55 = arith.subf %51, %54 : vector<128x256xf32>
    %56 = math.exp %55 : vector<128x256xf32>
    %cst_28 = arith.constant dense<0.000000e+00> : vector<128xf32>
    %57 = vector.multi_reduction <add>, %56, %cst_28 [1] : vector<128x256xf32> to vector<128xf32>
    %58 = vector.shape_cast %57 : vector<128xf32> to vector<128x1xf32>
    %59 = arith.truncf %56 : vector<128x256xf32> to vector<128x256xbf16>
    %cst_29 = arith.constant dense<0.000000e+00> : vector<128x32xf32>
    %60 = tpu.matmul %59, %50, %cst_29 {dimension_numbers = #tpu.dot_dimension_numbers<[1], [1], [0], [0], [0, 0, 1, 0], [], []>} : vector<128x256xbf16>, vector<32x256xbf16>, vector<128x32xf32> -> vector<128x32xf32>
    %61 = tpu.reciprocal %58 {approx = true} : vector<128x1xf32> -> vector<128x1xf32>
    %62 = vector.broadcast %61 : vector<128x1xf32> to vector<128x32xf32>
    %63 = arith.mulf %60, %62 : vector<128x32xf32>
    %64 = arith.truncf %63 : vector<128x32xf32> to vector<128x32xbf16>
    %c0_30 = arith.constant 0 : index
    %c64_31 = arith.constant 64 : index
    %65 = vector.load %arg14[%c0_30, %c64_31] : memref<128x128xbf16, #tpu.memory_space<vmem>>, vector<128x32xbf16>
    tpu.vector_store %arg14[%c0_30, %c64_31], %64 {strides = array<i32>} : memref<128x128xbf16, #tpu.memory_space<vmem>>, vector<128x32xbf16>,
    %66 = vector.extract_strided_slice %11 {offsets = [0, 96], sizes = [128, 32], strides = [1, 1]} : vector<128x128xbf16> to vector<128x32xbf16>
    %c96 = arith.constant 96 : index
    %c0_32 = arith.constant 0 : index
    %67 = vector.load %arg12[%c96, %c0_32] : memref<128x256xbf16, #tpu.memory_space<vmem>>, vector<32x256xbf16>
    %c96_33 = arith.constant 96 : index
    %c0_34 = arith.constant 0 : index
    %68 = vector.load %arg13[%c96_33, %c0_34] : memref<128x256xbf16, #tpu.memory_space<vmem>>, vector<32x256xbf16>
    %cst_35 = arith.constant dense<0.000000e+00> : vector<128x256xf32>
    %69 = tpu.matmul %66, %67, %cst_35 {dimension_numbers = #tpu.dot_dimension_numbers<[1], [0], [0], [1], [0, 0, 1, 1], [], []>} : vector<128x32xbf16>, vector<32x256xbf16>, vector<128x256xf32> -> vector<128x256xf32>
    %cst_36 = arith.constant dense<0xFF800000> : vector<128xf32>
    %70 = vector.multi_reduction <maximumf>, %69, %cst_36 [1] : vector<128x256xf32> to vector<128xf32>
    %71 = vector.shape_cast %70 : vector<128xf32> to vector<128x1xf32>
    %72 = vector.broadcast %71 : vector<128x1xf32> to vector<128x256xf32>
    %73 = arith.subf %69, %72 : vector<128x256xf32>
    %74 = math.exp %73 : vector<128x256xf32>
    %cst_37 = arith.constant dense<0.000000e+00> : vector<128xf32>
    %75 = vector.multi_reduction <add>, %74, %cst_37 [1] : vector<128x256xf32> to vector<128xf32>
    %76 = vector.shape_cast %75 : vector<128xf32> to vector<128x1xf32>
    %77 = arith.truncf %74 : vector<128x256xf32> to vector<128x256xbf16>
    %cst_38 = arith.constant dense<0.000000e+00> : vector<128x32xf32>
    %78 = tpu.matmul %77, %68, %cst_38 {dimension_numbers = #tpu.dot_dimension_numbers<[1], [1], [0], [0], [0, 0, 1, 0], [], []>} : vector<128x256xbf16>, vector<32x256xbf16>, vector<128x32xf32> -> vector<128x32xf32>
    %79 = tpu.reciprocal %76 {approx = true} : vector<128x1xf32> -> vector<128x1xf32>
    %80 = vector.broadcast %79 : vector<128x1xf32> to vector<128x32xf32>
    %81 = arith.mulf %78, %80 : vector<128x32xf32>
    %82 = arith.truncf %81 : vector<128x32xf32> to vector<128x32xbf16>
    %c0_39 = arith.constant 0 : index
    %c96_40 = arith.constant 96 : index
    %83 = vector.load %arg14[%c0_39, %c96_40] : memref<128x128xbf16, #tpu.memory_space<vmem>>, vector<128x32xbf16>
    tpu.vector_store %arg14[%c0_39, %c96_40], %82 {strides = array<i32>} : memref<128x128xbf16, #tpu.memory_space<vmem>>, vector<128x32xbf16>,
    %c0_41 = arith.constant 0 : index
    %c0_42 = arith.constant 0 : index
    %84 = vector.load %arg6[%c0_41, %c0_42] : memref<128x128xbf16, #tpu.memory_space<vmem>>, vector<128x128xbf16>
    %c0_43 = arith.constant 0 : index
    %c0_44 = arith.constant 0 : index
    %85 = vector.load %arg14[%c0_43, %c0_44] : memref<128x128xbf16, #tpu.memory_space<vmem>>, vector<128x128xbf16>
    %cst_45 = arith.constant dense<0.000000e+00> : vector<128x128xf32>
    %86 = tpu.matmul %84, %85, %cst_45 {dimension_numbers = #tpu.dot_dimension_numbers<[1], [1], [0], [0], [0, 0, 1, 0], [], []>} : vector<128x128xbf16>, vector<128x128xbf16>, vector<128x128xf32> -> vector<128x128xf32>
    %c0_46 = arith.constant 0 : index
    %c0_47 = arith.constant 0 : index
    %87 = vector.load %arg9[%c0_46, %c0_47] : memref<128x1xf32, #tpu.memory_space<vmem>>, vector<128x1xf32>
    %88 = vector.broadcast %87 : vector<128x1xf32> to vector<128x128xf32>
    %89 = arith.addf %86, %88 : vector<128x128xf32>
    %c0_48 = arith.constant 0 : index
    %c0_49 = arith.constant 0 : index
    %c0_50 = arith.constant 0 : index
    %90 = vector.load %arg10[%c0_48, %c0_49, %c0_50] : memref<1x128x128xf32, #tpu.memory_space<vmem>>, vector<1x128x128xf32>
    %91 = vector.shape_cast %90 : vector<1x128x128xf32> to vector<128x128xf32>
    %92 = vector.shape_cast %89 : vector<128x128xf32> to vector<1x128x128xf32>
    tpu.vector_store %arg10[%c0_48, %c0_49, %c0_50], %92 {strides = array<i32>} : memref<1x128x128xf32, #tpu.memory_space<vmem>>, vector<1x128x128xf32>,
    return
  }
  func.func @transform_0(%arg0: i32, %arg1: i32) -> (i32, i32, i32) {
    %c0_i32 = arith.constant 0 : i32
    %c0_i32_0 = arith.constant 0 : i32
    %c0_i32_1 = arith.constant 0 : i32
    return %arg0, %c0_i32, %c0_i32_0 : i32, i32, i32
  }
  func.func @transform_1(%arg0: i32, %arg1: i32) -> (i32, i32) {
    %c0_i32 = arith.constant 0 : i32
    %c0_i32_0 = arith.constant 0 : i32
    %c0_i32_1 = arith.constant 0 : i32
    return %c0_i32, %c0_i32_0 : i32, i32
  }
  func.func @transform_2(%arg0: i32, %arg1: i32) -> (i32, i32) {
    %c0_i32 = arith.constant 0 : i32
    %c0_i32_0 = arith.constant 0 : i32
    %c0_i32_1 = arith.constant 0 : i32
    return %c0_i32, %c0_i32_0 : i32, i32
  }
  func.func @transform_3(%arg0: i32, %arg1: i32) -> (i32, i32) {
    %c0_i32 = arith.constant 0 : i32
    %c0_i32_0 = arith.constant 0 : i32
    %c0_i32_1 = arith.constant 0 : i32
    return %c0_i32, %c0_i32_0 : i32, i32
  }
  func.func @transform_4(%arg0: i32, %arg1: i32) -> (i32, i32) {
    %c0_i32 = arith.constant 0 : i32
    %c0_i32_0 = arith.constant 0 : i32
    %c0_i32_1 = arith.constant 0 : i32
    return %c0_i32, %c0_i32_0 : i32, i32
  }
  func.func @transform_5(%arg0: i32, %arg1: i32) -> (i32, i32) {
    %c0_i32 = arith.constant 0 : i32
    %c0_i32_0 = arith.constant 0 : i32
    %c0_i32_1 = arith.constant 0 : i32
    return %c0_i32, %c0_i32_0 : i32, i32
  }
  func.func @transform_6(%arg0: i32, %arg1: i32) -> (i32, i32) {
    %c0_i32 = arith.constant 0 : i32
    %c0_i32_0 = arith.constant 0 : i32
    %c0_i32_1 = arith.constant 0 : i32
    return %c0_i32, %c0_i32_0 : i32, i32
  }
  func.func @transform_7(%arg0: i32, %arg1: i32) -> (i32, i32) {
    %c0_i32 = arith.constant 0 : i32
    %c0_i32_0 = arith.constant 0 : i32
    %c0_i32_1 = arith.constant 0 : i32
    return %c0_i32, %c0_i32_0 : i32, i32
  }
  func.func @transform_8(%arg0: i32, %arg1: i32) -> (i32, i32, i32) {
    %c0_i32 = arith.constant 0 : i32
    %c0_i32_0 = arith.constant 0 : i32
    return %arg0, %c0_i32, %arg1 : i32, i32, i32
  }
}

</mosaic_0001>

<llo_original>
// kernel: tpu_custom_call.1
$region0: #{tpu_custom_call.1}
  #allocation0 [shape = 'u32[]', space=smem, size = 0x4, offset = 0x4, fixed_abs, tag = 'smem constant byte address 0x4 - core index']
  #allocation1 [shape = 'u32[144,128]{1,0:T(1,128)}', space=vmem, size = 0x12000, scoped, tag = 'internal scratch']
  #allocation2 [shape = 'bf16[256,128]{1,0:T(16,128)(2,1)}', space=vmem, size = 0x10000, scoped, tag = 'scratch operand']
  #allocation3 [shape = 'bf16[128,256]{1,0:T(16,128)(2,1)}', space=vmem, size = 0x10000, scoped, tag = 'scratch operand']
  #allocation4 [shape = 'bf16[128,256]{1,0:T(16,128)(2,1)}', space=vmem, size = 0x10000, scoped, tag = 'scratch operand']
  #allocation5 [shape = 'bf16[128,128]{1,0:T(16,128)(2,1)}', space=vmem, size = 0x8000, scoped, tag = 'scratch operand']
  %s0 = inlined_call_operand.hbm [shape: f32[2,256,128], index: 0, kind: input, shape index: {}]
  %s1 = inlined_call_operand.vmem [shape: bf16[128,128], index: 1, kind: input, shape index: {}]
  %s2 = inlined_call_operand.vmem [shape: bf16[128,128], index: 2, kind: input, shape index: {}]
  %s3 = inlined_call_operand.hbm [shape: bf16[128,128], index: 3, kind: input, shape index: {}]
  %s4 = inlined_call_operand.hbm [shape: bf16[128,128], index: 4, kind: input, shape index: {}]
  %s5 = inlined_call_operand.vmem [shape: f32[1,128], index: 5, kind: input, shape index: {}]
  %s6 = inlined_call_operand.vmem [shape: f32[1,128], index: 6, kind: input, shape index: {}]
  %s7 = inlined_call_operand.vmem [shape: f32[128,1], index: 7, kind: input, shape index: {}]
  %s8 = inlined_call_operand.hbm [shape: f32[2,128,256], index: 8, kind: output, shape index: {}]
  %s9 = sld [smem:[#allocation0]]
  $region88: #{tpu_custom_call.1} parent=0
    _
  %s11 = ssub.s32 1, %s9
  %s12 = scalar_select 0, %s11, %s9
  $region1: #{tpu_custom_call.1} parent=0
    #allocation6 [shape = 'u8[262144]{0}', space=vmem, size = 0x40000, scoped, tag = 'input window, operand 0']
    #allocation7 [shape = 's32[2]{0}', space=sflag, size = 0x8, scoped, tag = 'scoped memory for tpu_custom_call.1']
    #allocation8 [shape = 's32[2]{0}', space=sflag, size = 0x8, scoped, tag = 'scoped memory for tpu_custom_call.1']
    #allocation9 [shape = 'u8[32768]{0}', space=vmem, size = 0x8000, scoped, tag = 'input window, operand 3, single buffered']
    #allocation10 [shape = 's32[1]{0}', space=sflag, size = 0x4, scoped, tag = 'scoped memory for tpu_custom_call.1']
    #allocation11 [shape = 'u8[32768]{0}', space=vmem, size = 0x8000, scoped, tag = 'input window, operand 4, single buffered']
    #allocation12 [shape = 'u8[131072]{0}', space=vmem, size = 0x20000, scoped, tag = 'output window, operand 0']
    %13 = vsyncpa [#allocation7], 0
    %s14 = scalar_lea.sflag [#allocation7], 1
    %15 = vsyncpa %s14, 0
    %16 = vsyncpa [#allocation10], 0
    %17 = vsyncpa [#allocation8], 0
    %s18 = scalar_lea.sflag [#allocation8], 1
    %19 = vsyncpa %s18, 0
    loop: start=0, step=1, limit=6
    $region2: #{tpu_custom_call.1} parent=1 // loop_pre_header
      _
    $region3: #{tpu_custom_call.1} parent=1 // loop_header
      %s21 = sphi 0, %s25
      %p22 = scmp.ge.s32.totalorder %s21, 6
      %s28 = sphi 0, %s40
      %s29 = sphi 0, %s36
      %s30 = sphi 0, %s28
      %s31 = sphi 0, %s29
      %s32 = sphi 0, %s30
      %s33 = sphi 0, %s31
      %s43 = sphi 0, %s45
      %s46 = sphi 0, %s43
      %s47 = sphi 0, %s46
      %s63 = sphi 0, %s47
      %s67 = sphi 0, %s67
      %s69 = sphi 0, %s67
      %s70 = sphi 0, %s69
      %s84 = sphi 0, %s70
      %s88 = sphi 0, %s88
      %s90 = sphi 0, %s88
      %s91 = sphi 0, %s90
      %s105 = sphi 0, %s91
      %s109 = sphi 0, %s109
      %s111 = sphi 0, %s109
      %s112 = sphi 0, %s111
      %s126 = sphi 0, %s112
      %s130 = sphi 0, %s130
      %s132 = sphi 0, %s130
      %s133 = sphi 0, %s132
      %s147 = sphi 0, %s133
      %s151 = sphi 0, %s151
      %s153 = sphi 0, %s151
      %s154 = sphi 0, %s153
      %s168 = sphi 0, %s154
      %s172 = sphi 0, %s172
      %s174 = sphi 0, %s172
      %s175 = sphi 0, %s174
      %s189 = sphi 0, %s175
      %s193 = sphi 0, %s193
      %s195 = sphi 0, %s193
      %s196 = sphi 0, %s195
      %s210 = sphi 0, %s196
      %s218 = sphi 0, %s220
      %s221 = sphi 0, %s218
      %s222 = sphi 0, %s221
      %s238 = sphi 0, %s222
    $region4: #{tpu_custom_call.1} parent=1 // loop_header_branch
      %24 = sbr.rel (%p22) target = $region8
    $region5: #{tpu_custom_call.1} parent=1 // loop_body
      %s26 = ssub.s32 %s21, 1
      %s27 = ssub.s32 %s21, 2
      %s34 = sadd.s32 1, %s29
      %p35 = scmp.ge.s32.totalorder %s34, 2
      %s36 = scalar_select %p35, 0, %s34
      %s37 = sadd.s32 1, %s28
      %s38 = scalar_select %p35, %s37, %s28
      %p39 = scmp.ge.s32.totalorder %s38, 2
      %s40 = scalar_select %p39, 0, %s38
      %s41 = ssub.s32 %s28, %s40
      %p42 = scmp.eq.s32.totalorder %s41, 0
      %s44 = sadd.s32 %s43, 1
      %s45 = scalar_select %p42, %s43, %s44
      %p48 = pneg %p42
      %p49 = scmp.eq.s32.totalorder %s21, 3
      %p50 = por %p48, %p49
      %p51 = scmp.ne.s32.totalorder %s43, %s46
      %p52 = scmp.eq.s32.totalorder %s21, 0
      %p53 = por %p51, %p52
      %p54 = scmp.ne.s32.totalorder %s43, %s46
      %p55 = scmp.eq.s32.totalorder %s26, 3
      %p56 = por %p54, %p55
      %p57 = scmp.ne.s32.totalorder %s46, %s47
      %p58 = scmp.eq.s32.totalorder %s26, 0
      %p59 = por %p57, %p58
      %p60 = scmp.ne.s32.totalorder %s46, %s47
      %p61 = scmp.eq.s32.totalorder %s27, 3
      %p62 = por %p60, %p61
      %p64 = scmp.ne.s32.totalorder %s47, %s63
      %p65 = scmp.eq.s32.totalorder %s27, 0
      %p66 = por %p64, %p65
      %s68 = sadd.s32 %s67, 1
      %p71 = scmp.eq.s32.totalorder %s21, 3
      %p72 = scmp.ne.s32.totalorder %s67, %s69
      %p73 = scmp.eq.s32.totalorder %s21, 0
      %p74 = por %p72, %p73
      %p75 = scmp.ne.s32.totalorder %s67, %s69
      %p76 = scmp.eq.s32.totalorder %s26, 3
      %p77 = por %p75, %p76
      %p78 = scmp.ne.s32.totalorder %s69, %s70
      %p79 = scmp.eq.s32.totalorder %s26, 0
      %p80 = por %p78, %p79
      %p81 = scmp.ne.s32.totalorder %s69, %s70
      %p82 = scmp.eq.s32.totalorder %s27, 3
      %p83 = por %p81, %p82
      %p85 = scmp.ne.s32.totalorder %s70, %s84
      %p86 = scmp.eq.s32.totalorder %s27, 0
      %p87 = por %p85, %p86
      %s89 = sadd.s32 %s88, 1
      %p92 = scmp.eq.s32.totalorder %s21, 3
      %p93 = scmp.ne.s32.totalorder %s88, %s90
      %p94 = scmp.eq.s32.totalorder %s21, 0
      %p95 = por %p93, %p94
      %p96 = scmp.ne.s32.totalorder %s88, %s90
      %p97 = scmp.eq.s32.totalorder %s26, 3
      %p98 = por %p96, %p97
      %p99 = scmp.ne.s32.totalorder %s90, %s91
      %p100 = scmp.eq.s32.totalorder %s26, 0
      %p101 = por %p99, %p100
      %p102 = scmp.ne.s32.totalorder %s90, %s91
      %p103 = scmp.eq.s32.totalorder %s27, 3
      %p104 = por %p102, %p103
      %p106 = scmp.ne.s32.totalorder %s91, %s105
      %p107 = scmp.eq.s32.totalorder %s27, 0
      %p108 = por %p106, %p107
      %s110 = sadd.s32 %s109, 1
      %p113 = scmp.eq.s32.totalorder %s21, 3
      %p114 = scmp.ne.s32.totalorder %s109, %s111
      %p115 = scmp.eq.s32.totalorder %s21, 0
      %p116 = por %p114, %p115
      %p117 = scmp.ne.s32.totalorder %s109, %s111
      %p118 = scmp.eq.s32.totalorder %s26, 3
      %p119 = por %p117, %p118
      %p120 = scmp.ne.s32.totalorder %s111, %s112
      %p121 = scmp.eq.s32.totalorder %s26, 0
      %p122 = por %p120, %p121
      %p123 = scmp.ne.s32.totalorder %s111, %s112
      %p124 = scmp.eq.s32.totalorder %s27, 3
      %p125 = por %p123, %p124
      %p127 = scmp.ne.s32.totalorder %s112, %s126
      %p128 = scmp.eq.s32.totalorder %s27, 0
      %p129 = por %p127, %p128
      %s131 = sadd.s32 %s130, 1
      %p134 = scmp.eq.s32.totalorder %s21, 3
      %p135 = scmp.ne.s32.totalorder %s130, %s132
      %p136 = scmp.eq.s32.totalorder %s21, 0
      %p137 = por %p135, %p136
      %p138 = scmp.ne.s32.totalorder %s130, %s132
      %p139 = scmp.eq.s32.totalorder %s26, 3
      %p140 = por %p138, %p139
      %p141 = scmp.ne.s32.totalorder %s132, %s133
      %p142 = scmp.eq.s32.totalorder %s26, 0
      %p143 = por %p141, %p142
      %p144 = scmp.ne.s32.totalorder %s132, %s133
      %p145 = scmp.eq.s32.totalorder %s27, 3
      %p146 = por %p144, %p145
      %p148 = scmp.ne.s32.totalorder %s133, %s147
      %p149 = scmp.eq.s32.totalorder %s27, 0
      %p150 = por %p148, %p149
      %s152 = sadd.s32 %s151, 1
      %p155 = scmp.eq.s32.totalorder %s21, 3
      %p156 = scmp.ne.s32.totalorder %s151, %s153
      %p157 = scmp.eq.s32.totalorder %s21, 0
      %p158 = por %p156, %p157
      %p159 = scmp.ne.s32.totalorder %s151, %s153
      %p160 = scmp.eq.s32.totalorder %s26, 3
      %p161 = por %p159, %p160
      %p162 = scmp.ne.s32.totalorder %s153, %s154
      %p163 = scmp.eq.s32.totalorder %s26, 0
      %p164 = por %p162, %p163
      %p165 = scmp.ne.s32.totalorder %s153, %s154
      %p166 = scmp.eq.s32.totalorder %s27, 3
      %p167 = por %p165, %p166
      %p169 = scmp.ne.s32.totalorder %s154, %s168
      %p170 = scmp.eq.s32.totalorder %s27, 0
      %p171 = por %p169, %p170
      %s173 = sadd.s32 %s172, 1
      %p176 = scmp.eq.s32.totalorder %s21, 3
      %p177 = scmp.ne.s32.totalorder %s172, %s174
      %p178 = scmp.eq.s32.totalorder %s21, 0
      %p179 = por %p177, %p178
      %p180 = scmp.ne.s32.totalorder %s172, %s174
      %p181 = scmp.eq.s32.totalorder %s26, 3
      %p182 = por %p180, %p181
      %p183 = scmp.ne.s32.totalorder %s174, %s175
      %p184 = scmp.eq.s32.totalorder %s26, 0
      %p185 = por %p183, %p184
      %p186 = scmp.ne.s32.totalorder %s174, %s175
      %p187 = scmp.eq.s32.totalorder %s27, 3
      %p188 = por %p186, %p187
      %p190 = scmp.ne.s32.totalorder %s175, %s189
      %p191 = scmp.eq.s32.totalorder %s27, 0
      %p192 = por %p190, %p191
      %s194 = sadd.s32 %s193, 1
      %p197 = scmp.eq.s32.totalorder %s21, 3
      %p198 = scmp.ne.s32.totalorder %s193, %s195
      %p199 = scmp.eq.s32.totalorder %s21, 0
      %p200 = por %p198, %p199
      %p201 = scmp.ne.s32.totalorder %s193, %s195
      %p202 = scmp.eq.s32.totalorder %s26, 3
      %p203 = por %p201, %p202
      %p204 = scmp.ne.s32.totalorder %s195, %s196
      %p205 = scmp.eq.s32.totalorder %s26, 0
      %p206 = por %p204, %p205
      %p207 = scmp.ne.s32.totalorder %s195, %s196
      %p208 = scmp.eq.s32.totalorder %s27, 3
      %p209 = por %p207, %p208
      %p211 = scmp.ne.s32.totalorder %s196, %s210
      %p212 = scmp.eq.s32.totalorder %s27, 0
      %p213 = por %p211, %p212
      %s214 = ssub.s32 %s28, %s40
      %s215 = ssub.s32 %s29, %s36
      %s216 = sor.u32 %s214, %s215
      %p217 = scmp.eq.s32.totalorder %s216, 0
      %s219 = sadd.s32 %s218, 1
      %s220 = scalar_select %p217, %s218, %s219
      %p223 = pneg %p217
      %p224 = scmp.eq.s32.totalorder %s21, 3
      %p225 = por %p223, %p224
      %p226 = scmp.ne.s32.totalorder %s218, %s221
      %p227 = scmp.eq.s32.totalorder %s21, 0
      %p228 = por %p226, %p227
      %p229 = scmp.ne.s32.totalorder %s218, %s221
      %p230 = scmp.eq.s32.totalorder %s26, 3
      %p231 = por %p229, %p230
      %p232 = scmp.ne.s32.totalorder %s221, %s222
      %p233 = scmp.eq.s32.totalorder %s26, 0
      %p234 = por %p232, %p233
      %p235 = scmp.ne.s32.totalorder %s221, %s222
      %p236 = scmp.eq.s32.totalorder %s27, 3
      %p237 = por %p235, %p236
      %p239 = scmp.ne.s32.totalorder %s222, %s238
      %p240 = scmp.eq.s32.totalorder %s27, 0
      %p241 = por %p239, %p240
      %p242 = scmp.le.s32.totalorder 1, %s21
      %p243 = scmp.lt.s32.totalorder %s21, 5
      %p244 = pnand %p242, %p243
      %p245 = pneg %p244
      // Predicated region
      $region9: #{tpu_custom_call.1} parent=5 // pred_check
        _
      $region10: #{tpu_custom_call.1} parent=5 // pred_check_branch
        %247 = sbr.rel (%p244) target = $region12
      $region11: #{tpu_custom_call.1} parent=5 // pred_region
        %s248 = ssub.s32 %s21, 1
        // Predicated region
        $region13: #{tpu_custom_call.1} parent=11 // pred_check
          %p249 = pneg %p80
        $region14: #{tpu_custom_call.1} parent=11 // pred_check_branch
          %251 = sbr.rel (%p249) target = $region16
        $region15: #{tpu_custom_call.1} parent=11 // pred_region
          _
        $region16: #{tpu_custom_call.1} parent=11 // pred_fallthru
          _
        // Predicated region
        $region17: #{tpu_custom_call.1} parent=11 // pred_check
          %p252 = pneg %p101
        $region18: #{tpu_custom_call.1} parent=11 // pred_check_branch
          %254 = sbr.rel (%p252) target = $region20
        $region19: #{tpu_custom_call.1} parent=11 // pred_region
          _
        $region20: #{tpu_custom_call.1} parent=11 // pred_fallthru
          _
        // Predicated region
        $region21: #{tpu_custom_call.1} parent=11 // pred_check
          %p255 = pneg %p122
        $region22: #{tpu_custom_call.1} parent=11 // pred_check_branch
          %257 = sbr.rel (%p255) target = $region24
        $region23: #{tpu_custom_call.1} parent=11 // pred_region
          %s259 = ssub.s32 1024, 1024
          %260 = vsyncadd [#allocation10], %s259
          %s261 = sshll.u32 [#allocation9], 4
          %s262 = int_to_ptr.vmem [resolvable:$true] %s261
          %267 = dma.hbm_to_vmem [thread:$0]  %s3, 1024, %s262, [#allocation10], 64, 64, 4
        $region24: #{tpu_custom_call.1} parent=11 // pred_fallthru
          _
        // Predicated region
        $region25: #{tpu_custom_call.1} parent=11 // pred_check
          %p268 = pneg %p143
        $region26: #{tpu_custom_call.1} parent=11 // pred_check_branch
          %270 = sbr.rel (%p268) target = $region28
        $region27: #{tpu_custom_call.1} parent=11 // pred_region
          %s272 = ssub.s32 1024, 1024
          %273 = vsyncadd [#allocation10], %s272
          %s274 = sshll.u32 [#allocation11], 4
          %s275 = int_to_ptr.vmem [resolvable:$true] %s274
          %280 = dma.hbm_to_vmem [thread:$0]  %s4, 1024, %s275, [#allocation10], 64, 64, 4
        $region28: #{tpu_custom_call.1} parent=11 // pred_fallthru
          _
        // Predicated region
        $region29: #{tpu_custom_call.1} parent=11 // pred_check
          %p281 = pneg %p164
        $region30: #{tpu_custom_call.1} parent=11 // pred_check_branch
          %283 = sbr.rel (%p281) target = $region32
        $region31: #{tpu_custom_call.1} parent=11 // pred_region
          _
        $region32: #{tpu_custom_call.1} parent=11 // pred_fallthru
          _
        // Predicated region
        $region33: #{tpu_custom_call.1} parent=11 // pred_check
          %p284 = pneg %p185
        $region34: #{tpu_custom_call.1} parent=11 // pred_check_branch
          %286 = sbr.rel (%p284) target = $region36
        $region35: #{tpu_custom_call.1} parent=11 // pred_region
          _
        $region36: #{tpu_custom_call.1} parent=11 // pred_fallthru
          _
        // Predicated region
        $region37: #{tpu_custom_call.1} parent=11 // pred_check
          %p287 = pneg %p206
        $region38: #{tpu_custom_call.1} parent=11 // pred_check_branch
          %289 = sbr.rel (%p287) target = $region40
        $region39: #{tpu_custom_call.1} parent=11 // pred_region
          _
        $region40: #{tpu_custom_call.1} parent=11 // pred_fallthru
          _
      $region12: #{tpu_custom_call.1} parent=5 // pred_fallthru
        _
      %p290 = scmp.lt.s32.totalorder %s21, 4
      // Predicated region
      $region41: #{tpu_custom_call.1} parent=5 // pred_check
        %p291 = pneg %p290
      $region42: #{tpu_custom_call.1} parent=5 // pred_check_branch
        %293 = sbr.rel (%p291) target = $region44
      $region43: #{tpu_custom_call.1} parent=5 // pred_region
        // Predicated region
        $region45: #{tpu_custom_call.1} parent=43 // pred_check
          %p294 = pneg %p53
        $region46: #{tpu_custom_call.1} parent=43 // pred_check_branch
          %296 = sbr.rel (%p294) target = $region48
        $region47: #{tpu_custom_call.1} parent=43 // pred_region
          %s297 = sand.u32 %s43, 1
          %s298 = scalar_lea.sflag [#allocation7], %s297
          %s299 = sand.u32 %s43, 1
          %s300 = smul.addr %s299, 256
          %s301 = scalar_lea.vmem [#allocation6], %s300
          %s303 = ssub.s32 4096, 4096
          %304 = vsyncadd %s298, %s303
          %s305 = smul.addr %s28, 32
          %s306 = smul.addr %s305, 128
          %s307 = scalar_lea.hbm %s0, %s306
          %s308 = sshll.u32 %s301, 4
          %s309 = int_to_ptr.vmem [resolvable:$true] %s308
          %314 = dma.hbm_to_vmem [thread:$0]  %s307, 4096, %s309, %s298, 128, 128, 8
        $region48: #{tpu_custom_call.1} parent=43 // pred_fallthru
          _
      $region44: #{tpu_custom_call.1} parent=5 // pred_fallthru
        _
      %p315 = scmp.le.s32.totalorder 1, %s21
      %p316 = scmp.lt.s32.totalorder %s21, 5
      %p317 = pnand %p315, %p316
      %p318 = pneg %p317
      // Predicated region
      $region49: #{tpu_custom_call.1} parent=5 // pred_check
        _
      $region50: #{tpu_custom_call.1} parent=5 // pred_check_branch
        %320 = sbr.rel (%p317) target = $region52
      $region51: #{tpu_custom_call.1} parent=5 // pred_region
        %s321 = ssub.s32 %s21, 1
        %s322 = sand.u32 %s46, 1
        %s323 = scalar_lea.sflag [#allocation7], %s322
        %s324 = sand.u32 %s46, 1
        %s325 = smul.addr %s324, 256
        %s326 = scalar_lea.vmem [#allocation6], %s325
        // Predicated region
        $region53: #{tpu_custom_call.1} parent=51 // pred_check
          %p327 = pneg %p59
        $region54: #{tpu_custom_call.1} parent=51 // pred_check_branch
          %329 = sbr.rel (%p327) target = $region56
        $region55: #{tpu_custom_call.1} parent=51 // pred_region
          %330 = dma.done %s323, 4096
        $region56: #{tpu_custom_call.1} parent=51 // pred_fallthru
          _
        // Predicated region
        $region57: #{tpu_custom_call.1} parent=51 // pred_check
          %p331 = pneg %p122
        $region58: #{tpu_custom_call.1} parent=51 // pred_check_branch
          %333 = sbr.rel (%p331) target = $region60
        $region59: #{tpu_custom_call.1} parent=51 // pred_region
          %334 = dma.done [#allocation10], 1024
        $region60: #{tpu_custom_call.1} parent=51 // pred_fallthru
          _
        // Predicated region
        $region61: #{tpu_custom_call.1} parent=51 // pred_check
          %p335 = pneg %p143
        $region62: #{tpu_custom_call.1} parent=51 // pred_check_branch
          %337 = sbr.rel (%p335) target = $region64
        $region63: #{tpu_custom_call.1} parent=51 // pred_region
          %338 = dma.done [#allocation10], 1024
        $region64: #{tpu_custom_call.1} parent=51 // pred_fallthru
          _
        %s339 = sand.u32 %s46, 1
        %s340 = scalar_lea.sflag [#allocation7], %s339
        %s341 = sand.u32 %s46, 1
        %s342 = smul.addr %s341, 256
        %s343 = scalar_lea.vmem [#allocation6], %s342
        %p344 = pneg %p59
        %p345 = pneg %p56
        %p346 = pneg %p80
        %p347 = pneg %p77
        %p348 = pneg %p101
        %p349 = pneg %p98
        %p350 = pneg %p122
        %p351 = pneg %p119
        %p352 = pneg %p143
        %p353 = pneg %p140
        %p354 = pneg %p164
        %p355 = pneg %p161
        %p356 = pneg %p185
        %p357 = pneg %p182
        %p358 = pneg %p206
        %p359 = pneg %p203
        %p360 = pneg %p234
        %p361 = pneg %p231
        %s362 = sand.u32 %s221, 1
        %s363 = scalar_lea.sflag [#allocation8], %s362
        %s364 = sand.u32 %s221, 1
        %s365 = smul.addr %s364, 128
        %s366 = scalar_lea.vmem [#allocation12], %s365
        %p368 = scmp.eq.s32.totalorder %s31, 0
        // Predicated region
        $region65: #{tpu_custom_call.1} parent=51 // pred_check
          %p369 = pneg %p368
        $region66: #{tpu_custom_call.1} parent=51 // pred_check_branch
          %371 = sbr.rel (%p369) target = $region68
        $region67: #{tpu_custom_call.1} parent=51 // pred_region
          loop: start=0, step=1, limit=2
          $region69: #{tpu_custom_call.1} parent=67 // loop_pre_header
            _
          $region70: #{tpu_custom_call.1} parent=67 // loop_header
            %s373 = sphi 0, %s377
            %p374 = scmp.ge.s32.totalorder %s373, 2
          $region71: #{tpu_custom_call.1} parent=67 // loop_header_branch
            %376 = sbr.rel (%p374) target = $region75
          $region72: #{tpu_custom_call.1} parent=67 // loop_body
            %s378 = smul.u32 %s373, 128
            %s379 = scalar_lea.vmem %s326, %s378 [#allocation6]
            %v380 = vld [vmem:[%s379] sm:$0xff]
            %v381 = vld [vmem:[%s379 + $0x8] sm:$0xff]
            %v382 = vld [vmem:[%s379 + $0x10] sm:$0xff]
            %v383 = vld [vmem:[%s379 + $0x18] sm:$0xff]
            %v384 = vld [vmem:[%s379 + $0x20] sm:$0xff]
            %v385 = vld [vmem:[%s379 + $0x28] sm:$0xff]
            %v386 = vld [vmem:[%s379 + $0x30] sm:$0xff]
            %v387 = vld [vmem:[%s379 + $0x38] sm:$0xff]
            %v388 = vld [vmem:[%s379 + $0x40] sm:$0xff]
            %v389 = vld [vmem:[%s379 + $0x48] sm:$0xff]
            %v390 = vld [vmem:[%s379 + $0x50] sm:$0xff]
            %v391 = vld [vmem:[%s379 + $0x58] sm:$0xff]
            %v392 = vld [vmem:[%s379 + $0x60] sm:$0xff]
            %v393 = vld [vmem:[%s379 + $0x68] sm:$0xff]
            %v394 = vld [vmem:[%s379 + $0x70] sm:$0xff]
            %v395 = vld [vmem:[%s379 + $0x78] sm:$0xff]
            %396 = vadd.xlane.f32.xlu0 %v380
            %v397 = vpop.xlane.xlu0 %396
            %398 = vadd.xlane.f32.xlu0 %v381
            %v399 = vpop.xlane.xlu0 %398
            %400 = vadd.xlane.f32.xlu0 %v382
            %v401 = vpop.xlane.xlu0 %400
            %402 = vadd.xlane.f32.xlu0 %v383
            %v403 = vpop.xlane.xlu0 %402
            %404 = vadd.xlane.f32.xlu0 %v384
            %v405 = vpop.xlane.xlu0 %404
            %406 = vadd.xlane.f32.xlu0 %v385
            %v407 = vpop.xlane.xlu0 %406
            %408 = vadd.xlane.f32.xlu0 %v386
            %v409 = vpop.xlane.xlu0 %408
            %410 = vadd.xlane.f32.xlu0 %v387
            %v411 = vpop.xlane.xlu0 %410
            %412 = vadd.xlane.f32.xlu0 %v388
            %v413 = vpop.xlane.xlu0 %412
            %414 = vadd.xlane.f32.xlu0 %v389
            %v415 = vpop.xlane.xlu0 %414
            %416 = vadd.xlane.f32.xlu0 %v390
            %v417 = vpop.xlane.xlu0 %416
            %418 = vadd.xlane.f32.xlu0 %v391
            %v419 = vpop.xlane.xlu0 %418
            %420 = vadd.xlane.f32.xlu0 %v392
            %v421 = vpop.xlane.xlu0 %420
            %422 = vadd.xlane.f32.xlu0 %v393
            %v423 = vpop.xlane.xlu0 %422
            %424 = vadd.xlane.f32.xlu0 %v394
            %v425 = vpop.xlane.xlu0 %424
            %426 = vadd.xlane.f32.xlu0 %v395
            %v427 = vpop.xlane.xlu0 %426
            %v428 = vrcp.pop 128.0
            %v429 = vmul.f32 %v397, %v428
            %v430 = vmul.f32 %v399, %v428
            %v431 = vmul.f32 %v401, %v428
            %v432 = vmul.f32 %v403, %v428
            %v433 = vmul.f32 %v405, %v428
            %v434 = vmul.f32 %v407, %v428
            %v435 = vmul.f32 %v409, %v428
            %v436 = vmul.f32 %v411, %v428
            %v437 = vmul.f32 %v413, %v428
            %v438 = vmul.f32 %v415, %v428
            %v439 = vmul.f32 %v417, %v428
            %v440 = vmul.f32 %v419, %v428
            %v441 = vmul.f32 %v421, %v428
            %v442 = vmul.f32 %v423, %v428
            %v443 = vmul.f32 %v425, %v428
            %v444 = vmul.f32 %v427, %v428
            %v445 = vsub.f32 %v380, %v429
            %v446 = vsub.f32 %v381, %v430
            %v447 = vsub.f32 %v382, %v431
            %v448 = vsub.f32 %v383, %v432
            %v449 = vsub.f32 %v384, %v433
            %v450 = vsub.f32 %v385, %v434
            %v451 = vsub.f32 %v386, %v435
            %v452 = vsub.f32 %v387, %v436
            %v453 = vsub.f32 %v388, %v437
            %v454 = vsub.f32 %v389, %v438
            %v455 = vsub.f32 %v390, %v439
            %v456 = vsub.f32 %v391, %v440
            %v457 = vsub.f32 %v392, %v441
            %v458 = vsub.f32 %v393, %v442
            %v459 = vsub.f32 %v394, %v443
            %v460 = vsub.f32 %v395, %v444
            %v461 = vmul.f32 %v445, %v445
            %v462 = vmul.f32 %v446, %v446
            %v463 = vmul.f32 %v447, %v447
            %v464 = vmul.f32 %v448, %v448
            %v465 = vmul.f32 %v449, %v449
            %v466 = vmul.f32 %v450, %v450
            %v467 = vmul.f32 %v451, %v451
            %v468 = vmul.f32 %v452, %v452
            %v469 = vmul.f32 %v453, %v453
            %v470 = vmul.f32 %v454, %v454
            %v471 = vmul.f32 %v455, %v455
            %v472 = vmul.f32 %v456, %v456
            %v473 = vmul.f32 %v457, %v457
            %v474 = vmul.f32 %v458, %v458
            %v475 = vmul.f32 %v459, %v459
            %v476 = vmul.f32 %v460, %v460
            %477 = vadd.xlane.f32.xlu0 %v461
            %v478 = vpop.xlane.xlu0 %477
            %479 = vadd.xlane.f32.xlu0 %v462
            %v480 = vpop.xlane.xlu0 %479
            %481 = vadd.xlane.f32.xlu0 %v463
            %v482 = vpop.xlane.xlu0 %481
            %483 = vadd.xlane.f32.xlu0 %v464
            %v484 = vpop.xlane.xlu0 %483
            %485 = vadd.xlane.f32.xlu0 %v465
            %v486 = vpop.xlane.xlu0 %485
            %487 = vadd.xlane.f32.xlu0 %v466
            %v488 = vpop.xlane.xlu0 %487
            %489 = vadd.xlane.f32.xlu0 %v467
            %v490 = vpop.xlane.xlu0 %489
            %491 = vadd.xlane.f32.xlu0 %v468
            %v492 = vpop.xlane.xlu0 %491
            %493 = vadd.xlane.f32.xlu0 %v469
            %v494 = vpop.xlane.xlu0 %493
            %495 = vadd.xlane.f32.xlu0 %v470
            %v496 = vpop.xlane.xlu0 %495
            %497 = vadd.xlane.f32.xlu0 %v471
            %v498 = vpop.xlane.xlu0 %497
            %499 = vadd.xlane.f32.xlu0 %v472
            %v500 = vpop.xlane.xlu0 %499
            %501 = vadd.xlane.f32.xlu0 %v473
            %v502 = vpop.xlane.xlu0 %501
            %503 = vadd.xlane.f32.xlu0 %v474
            %v504 = vpop.xlane.xlu0 %503
            %505 = vadd.xlane.f32.xlu0 %v475
            %v506 = vpop.xlane.xlu0 %505
            %507 = vadd.xlane.f32.xlu0 %v476
            %v508 = vpop.xlane.xlu0 %507
            %v509 = vmul.f32 %v478, %v428
            %v510 = vmul.f32 %v480, %v428
            %v511 = vmul.f32 %v482, %v428
            %v512 = vmul.f32 %v484, %v428
            %v513 = vmul.f32 %v486, %v428
            %v514 = vmul.f32 %v488, %v428
            %v515 = vmul.f32 %v490, %v428
            %v516 = vmul.f32 %v492, %v428
            %v517 = vmul.f32 %v494, %v428
            %v518 = vmul.f32 %v496, %v428
            %v519 = vmul.f32 %v498, %v428
            %v520 = vmul.f32 %v500, %v428
            %v521 = vmul.f32 %v502, %v428
            %v522 = vmul.f32 %v504, %v428
            %v523 = vmul.f32 %v506, %v428
            %v524 = vmul.f32 %v508, %v428
            %v525 = vadd.f32 %v509, 1e-05
            %v526 = vadd.f32 %v510, 1e-05
            %v527 = vadd.f32 %v511, 1e-05
            %v528 = vadd.f32 %v512, 1e-05
            %v529 = vadd.f32 %v513, 1e-05
            %v530 = vadd.f32 %v514, 1e-05
            %v531 = vadd.f32 %v515, 1e-05
            %v532 = vadd.f32 %v516, 1e-05
            %v533 = vadd.f32 %v517, 1e-05
            %v534 = vadd.f32 %v518, 1e-05
            %v535 = vadd.f32 %v519, 1e-05
            %v536 = vadd.f32 %v520, 1e-05
            %v537 = vadd.f32 %v521, 1e-05
            %v538 = vadd.f32 %v522, 1e-05
            %v539 = vadd.f32 %v523, 1e-05
            %v540 = vadd.f32 %v524, 1e-05
            %v541 = vrsqrt.pop %v525
            %v542 = vrsqrt.pop %v526
            %v543 = vrsqrt.pop %v527
            %v544 = vrsqrt.pop %v528
            %v545 = vrsqrt.pop %v529
            %v546 = vrsqrt.pop %v530
            %v547 = vrsqrt.pop %v531
            %v548 = vrsqrt.pop %v532
            %v549 = vrsqrt.pop %v533
            %v550 = vrsqrt.pop %v534
            %v551 = vrsqrt.pop %v535
            %v552 = vrsqrt.pop %v536
            %v553 = vrsqrt.pop %v537
            %v554 = vrsqrt.pop %v538
            %v555 = vrsqrt.pop %v539
            %v556 = vrsqrt.pop %v540
            %v557 = vmul.f32 %v445, %v541
            %v558 = vmul.f32 %v446, %v542
            %v559 = vmul.f32 %v447, %v543
            %v560 = vmul.f32 %v448, %v544
            %v561 = vmul.f32 %v449, %v545
            %v562 = vmul.f32 %v450, %v546
            %v563 = vmul.f32 %v451, %v547
            %v564 = vmul.f32 %v452, %v548
            %v565 = vmul.f32 %v453, %v549
            %v566 = vmul.f32 %v454, %v550
            %v567 = vmul.f32 %v455, %v551
            %v568 = vmul.f32 %v456, %v552
            %v569 = vmul.f32 %v457, %v553
            %v570 = vmul.f32 %v458, %v554
            %v571 = vmul.f32 %v459, %v555
            %v572 = vmul.f32 %v460, %v556
            %v573 = vld [vmem:[%s5] sm:$0x1]
            %v575 = vlaneseq
            %v576 = vshrl.u32 %v575, 7
            %v577 = vsub.s32 0, %v576
            %v578 = vrot.slane %v573, %v577
            %v580 = vmul.f32 %v557, %v578
            %v581 = vmul.f32 %v558, %v578
            %v582 = vmul.f32 %v559, %v578
            %v583 = vmul.f32 %v560, %v578
            %v584 = vmul.f32 %v561, %v578
            %v585 = vmul.f32 %v562, %v578
            %v586 = vmul.f32 %v563, %v578
            %v587 = vmul.f32 %v564, %v578
            %v588 = vmul.f32 %v565, %v578
            %v589 = vmul.f32 %v566, %v578
            %v590 = vmul.f32 %v567, %v578
            %v591 = vmul.f32 %v568, %v578
            %v592 = vmul.f32 %v569, %v578
            %v593 = vmul.f32 %v570, %v578
            %v594 = vmul.f32 %v571, %v578
            %v595 = vmul.f32 %v572, %v578
            %v596 = vld [vmem:[%s6] sm:$0x1]
            %v598 = vlaneseq
            %v599 = vshrl.u32 %v598, 7
            %v600 = vsub.s32 0, %v599
            %v601 = vrot.slane %v596, %v600
            %v603 = vadd.f32 %v580, %v601
            %v604 = vadd.f32 %v581, %v601
            %v605 = vadd.f32 %v582, %v601
            %v606 = vadd.f32 %v583, %v601
            %v607 = vadd.f32 %v584, %v601
            %v608 = vadd.f32 %v585, %v601
            %v609 = vadd.f32 %v586, %v601
            %v610 = vadd.f32 %v587, %v601
            %v611 = vadd.f32 %v588, %v601
            %v612 = vadd.f32 %v589, %v601
            %v613 = vadd.f32 %v590, %v601
            %v614 = vadd.f32 %v591, %v601
            %v615 = vadd.f32 %v592, %v601
            %v616 = vadd.f32 %v593, %v601
            %v617 = vadd.f32 %v594, %v601
            %v618 = vadd.f32 %v595, %v601
            %v619 = vpack.c.bf16 %v604, %v603
            %v620 = vpack.c.bf16 %v606, %v605
            %v621 = vpack.c.bf16 %v608, %v607
            %v622 = vpack.c.bf16 %v610, %v609
            %v623 = vpack.c.bf16 %v612, %v611
            %v624 = vpack.c.bf16 %v614, %v613
            %v625 = vpack.c.bf16 %v616, %v615
            %v626 = vpack.c.bf16 %v618, %v617
            %s627 = sshra.s32 %s378, 4
            %s628 = sand.u32 %s378, 15
            %s629 = smul.addr %s627, 8
            %s630 = scalar_lea.vmem [#allocation2], %s629
            %631 = vst [vmem:[%s630] sm:$0xff] %v619
            %632 = vst [vmem:[%s630 + $0x8] sm:$0xff] %v620
            %633 = vst [vmem:[%s630 + $0x10] sm:$0xff] %v621
            %634 = vst [vmem:[%s630 + $0x18] sm:$0xff] %v622
            %635 = vst [vmem:[%s630 + $0x20] sm:$0xff] %v623
            %636 = vst [vmem:[%s630 + $0x28] sm:$0xff] %v624
            %637 = vst [vmem:[%s630 + $0x30] sm:$0xff] %v625
            %638 = vst [vmem:[%s630 + $0x38] sm:$0xff] %v626
          $region73: #{tpu_custom_call.1} parent=67 // loop_footer
            %s377 = sadd.s32 1, %s373
          $region74: #{tpu_custom_call.1} parent=67 // loop_footer_branch
            %372 = sbr.rel target = $region70
          $region75: #{tpu_custom_call.1} parent=67 // loop_exit
            _
          %v639 = vld [vmem:[#allocation2] sm:$0xff]
          %v640 = vld [vmem:[#allocation2 + $0x8] sm:$0xff]
          %v641 = vld [vmem:[#allocation2 + $0x10] sm:$0xff]
          %v642 = vld [vmem:[#allocation2 + $0x18] sm:$0xff]
          %v643 = vld [vmem:[#allocation2 + $0x20] sm:$0xff]
          %v644 = vld [vmem:[#allocation2 + $0x28] sm:$0xff]
          %v645 = vld [vmem:[#allocation2 + $0x30] sm:$0xff]
          %v646 = vld [vmem:[#allocation2 + $0x38] sm:$0xff]
          %v647 = vld [vmem:[#allocation2 + $0x40] sm:$0xff]
          %v648 = vld [vmem:[#allocation2 + $0x48] sm:$0xff]
          %v649 = vld [vmem:[#allocation2 + $0x50] sm:$0xff]
          %v650 = vld [vmem:[#allocation2 + $0x58] sm:$0xff]
          %v651 = vld [vmem:[#allocation2 + $0x60] sm:$0xff]
          %v652 = vld [vmem:[#allocation2 + $0x68] sm:$0xff]
          %v653 = vld [vmem:[#allocation2 + $0x70] sm:$0xff]
          %v654 = vld [vmem:[#allocation2 + $0x78] sm:$0xff]
          %v655 = vld [vmem:[%s2] sm:$0xf]
          %v656 = vld [vmem:[%s2 + $0x4] sm:$0xf]
          %v657 = vld [vmem:[%s2 + $0x8] sm:$0xf]
          %v658 = vld [vmem:[%s2 + $0xc] sm:$0xf]
          %v659 = vld [vmem:[%s2 + $0x10] sm:$0xf]
          %v660 = vld [vmem:[%s2 + $0x14] sm:$0xf]
          %v661 = vld [vmem:[%s2 + $0x18] sm:$0xf]
          %v662 = vld [vmem:[%s2 + $0x1c] sm:$0xf]
          %v663 = vld [vmem:[%s2 + $0x20] sm:$0xf]
          %v664 = vld [vmem:[%s2 + $0x24] sm:$0xf]
          %v665 = vld [vmem:[%s2 + $0x28] sm:$0xf]
          %v666 = vld [vmem:[%s2 + $0x2c] sm:$0xf]
          %v667 = vld [vmem:[%s2 + $0x30] sm:$0xf]
          %v668 = vld [vmem:[%s2 + $0x34] sm:$0xf]
          %v669 = vld [vmem:[%s2 + $0x38] sm:$0xf]
          %v670 = vld [vmem:[%s2 + $0x3c] sm:$0xf]
          %v687 = vunpack.c.l.b16 %v655
          %v688 = vunpack.c.l.b16 %v656
          %v689 = vunpack.c.l.b16 %v657
          %v690 = vunpack.c.l.b16 %v658
          %v691 = vunpack.c.l.b16 %v659
          %v692 = vunpack.c.l.b16 %v660
          %v693 = vunpack.c.l.b16 %v661
          %v694 = vunpack.c.l.b16 %v662
          %v695 = vunpack.c.l.b16 %v663
          %v696 = vunpack.c.l.b16 %v664
          %v697 = vunpack.c.l.b16 %v665
          %v698 = vunpack.c.l.b16 %v666
          %v699 = vunpack.c.l.b16 %v667
          %v700 = vunpack.c.l.b16 %v668
          %v701 = vunpack.c.l.b16 %v669
          %v702 = vunpack.c.l.b16 %v670
          %v703 = vpack.c.b16 %v688, %v687
          %v704 = vpack.c.b16 %v690, %v689
          %v705 = vpack.c.b16 %v692, %v691
          %v706 = vpack.c.b16 %v694, %v693
          %v707 = vpack.c.b16 %v696, %v695
          %v708 = vpack.c.b16 %v698, %v697
          %v709 = vpack.c.b16 %v700, %v699
          %v710 = vpack.c.b16 %v702, %v701
          %719 = vmatprep.subr.bf16.mxu0 0
          %720 = vmatpush1.bf16.xpose.msra.mxu0 %v639
          %721 = vmatprep.subr.bf16.mxu0 0
          %722 = vmatpush1.bf16.xpose.msra.mxu0 %v640
          %723 = vmatprep.subr.bf16.mxu0 0
          %724 = vmatpush1.bf16.xpose.msra.mxu0 %v641
          %725 = vmatprep.subr.bf16.mxu0 0
          %726 = vmatpush1.bf16.xpose.msra.mxu0 %v642
          %727 = vmatprep.subr.bf16.mxu0 0
          %728 = vmatpush1.bf16.xpose.msra.mxu0 %v643
          %729 = vmatprep.subr.bf16.mxu0 0
          %730 = vmatpush1.bf16.xpose.msra.mxu0 %v644
          %731 = vmatprep.subr.bf16.mxu0 0
          %732 = vmatpush1.bf16.xpose.msra.mxu0 %v645
          %733 = vmatprep.subr.bf16.mxu0 0
          %734 = vmatpush1.bf16.xpose.msra.mxu0 %v646
          %735 = vmatprep.subr.bf16.mxu0 0
          %736 = vmatpush1.bf16.xpose.msra.mxu0 %v647
          %737 = vmatprep.subr.bf16.mxu0 0
          %738 = vmatpush1.bf16.xpose.msra.mxu0 %v648
          %739 = vmatprep.subr.bf16.mxu0 0
          %740 = vmatpush1.bf16.xpose.msra.mxu0 %v649
          %741 = vmatprep.subr.bf16.mxu0 0
          %742 = vmatpush1.bf16.xpose.msra.mxu0 %v650
          %743 = vmatprep.subr.bf16.mxu0 0
          %744 = vmatpush1.bf16.xpose.msra.mxu0 %v651
          %745 = vmatprep.subr.bf16.mxu0 0
          %746 = vmatpush1.bf16.xpose.msra.mxu0 %v652
          %747 = vmatprep.subr.bf16.mxu0 0
          %748 = vmatpush1.bf16.xpose.msra.mxu0 %v653
          %749 = vmatprep.subr.bf16.mxu0 0
          %750 = vmatpush1.bf16.xpose.msra.mxu0 %v654
          %751 = vmatprep.mubr.bf16.mxu0 0
          %752 = vmatmul.mubr.bf16.gmra.mrb[0].mxu0 %v703
          %v753 = vpop.f32.mrb[0].mxu0
          %v754 = vadd.f32 0.0, %v753
          %v755 = vpop.f32.mrb[0].mxu0
          %v756 = vadd.f32 0.0, %v755
          %v757 = vpop.f32.mrb[0].mxu0
          %v758 = vadd.f32 0.0, %v757
          %v759 = vpop.f32.mrb[0].mxu0
          %v760 = vadd.f32 0.0, %v759
          %761 = vmatprep.mubr.bf16.mxu0 0
          %762 = vmatmul.mubr.bf16.gmra.mrb[0].mxu0 %v704
          %v763 = vpop.f32.mrb[0].mxu0
          %v764 = vadd.f32 0.0, %v763
          %v765 = vpop.f32.mrb[0].mxu0
          %v766 = vadd.f32 0.0, %v765
          %v767 = vpop.f32.mrb[0].mxu0
          %v768 = vadd.f32 0.0, %v767
          %v769 = vpop.f32.mrb[0].mxu0
          %v770 = vadd.f32 0.0, %v769
          %771 = vmatprep.mubr.bf16.mxu0 0
          %772 = vmatmul.mubr.bf16.gmra.mrb[0].mxu0 %v705
          %v773 = vpop.f32.mrb[0].mxu0
          %v774 = vadd.f32 0.0, %v773
          %v775 = vpop.f32.mrb[0].mxu0
          %v776 = vadd.f32 0.0, %v775
          %v777 = vpop.f32.mrb[0].mxu0
          %v778 = vadd.f32 0.0, %v777
          %v779 = vpop.f32.mrb[0].mxu0
          %v780 = vadd.f32 0.0, %v779
          %781 = vmatprep.mubr.bf16.mxu0 0
          %782 = vmatmul.mubr.bf16.gmra.mrb[0].mxu0 %v706
          %v783 = vpop.f32.mrb[0].mxu0
          %v784 = vadd.f32 0.0, %v783
          %v785 = vpop.f32.mrb[0].mxu0
          %v786 = vadd.f32 0.0, %v785
          %v787 = vpop.f32.mrb[0].mxu0
          %v788 = vadd.f32 0.0, %v787
          %v789 = vpop.f32.mrb[0].mxu0
          %v790 = vadd.f32 0.0, %v789
          %791 = vmatprep.mubr.bf16.mxu0 0
          %792 = vmatmul.mubr.bf16.gmra.mrb[0].mxu0 %v707
          %v793 = vpop.f32.mrb[0].mxu0
          %v794 = vadd.f32 0.0, %v793
          %v795 = vpop.f32.mrb[0].mxu0
          %v796 = vadd.f32 0.0, %v795
          %v797 = vpop.f32.mrb[0].mxu0
          %v798 = vadd.f32 0.0, %v797
          %v799 = vpop.f32.mrb[0].mxu0
          %v800 = vadd.f32 0.0, %v799
          %801 = vmatprep.mubr.bf16.mxu0 0
          %802 = vmatmul.mubr.bf16.gmra.mrb[0].mxu0 %v708
          %v803 = vpop.f32.mrb[0].mxu0
          %v804 = vadd.f32 0.0, %v803
          %v805 = vpop.f32.mrb[0].mxu0
          %v806 = vadd.f32 0.0, %v805
          %v807 = vpop.f32.mrb[0].mxu0
          %v808 = vadd.f32 0.0, %v807
          %v809 = vpop.f32.mrb[0].mxu0
          %v810 = vadd.f32 0.0, %v809
          %811 = vmatprep.mubr.bf16.mxu0 0
          %812 = vmatmul.mubr.bf16.gmra.mrb[0].mxu0 %v709
          %v813 = vpop.f32.mrb[0].mxu0
          %v814 = vadd.f32 0.0, %v813
          %v815 = vpop.f32.mrb[0].mxu0
          %v816 = vadd.f32 0.0, %v815
          %v817 = vpop.f32.mrb[0].mxu0
          %v818 = vadd.f32 0.0, %v817
          %v819 = vpop.f32.mrb[0].mxu0
          %v820 = vadd.f32 0.0, %v819
          %821 = vmatprep.mubr.bf16.mxu0 0
          %822 = vmatmul.mubr.bf16.gmra.mrb[0].mxu0 %v710
          %v823 = vpop.f32.mrb[0].mxu0
          %v824 = vadd.f32 0.0, %v823
          %v825 = vpop.f32.mrb[0].mxu0
          %v826 = vadd.f32 0.0, %v825
          %v827 = vpop.f32.mrb[0].mxu0
          %v828 = vadd.f32 0.0, %v827
          %v829 = vpop.f32.mrb[0].mxu0
          %v830 = vadd.f32 0.0, %v829
          %831 = vdwg.mxu0
          %v832 = vpack.c.bf16 %v758, %v754
          %v833 = vpack.c.bf16 %v760, %v756
          %v834 = vpack.c.bf16 %v768, %v764
          %v835 = vpack.c.bf16 %v770, %v766
          %v836 = vpack.c.bf16 %v778, %v774
          %v837 = vpack.c.bf16 %v780, %v776
          %v838 = vpack.c.bf16 %v788, %v784
          %v839 = vpack.c.bf16 %v790, %v786
          %v840 = vpack.c.bf16 %v798, %v794
          %v841 = vpack.c.bf16 %v800, %v796
          %v842 = vpack.c.bf16 %v808, %v804
          %v843 = vpack.c.bf16 %v810, %v806
          %v844 = vpack.c.bf16 %v818, %v814
          %v845 = vpack.c.bf16 %v820, %v816
          %v846 = vpack.c.bf16 %v828, %v824
          %v847 = vpack.c.bf16 %v830, %v826
          %848 = vst [vmem:[#allocation3] sm:$0xff] %v832
          %849 = vst [vmem:[#allocation3 + $0x8] sm:$0xff] %v833
          %850 = vst [vmem:[#allocation3 + $0x10] sm:$0xff] %v834
          %851 = vst [vmem:[#allocation3 + $0x18] sm:$0xff] %v835
          %852 = vst [vmem:[#allocation3 + $0x20] sm:$0xff] %v836
          %853 = vst [vmem:[#allocation3 + $0x28] sm:$0xff] %v837
          %854 = vst [vmem:[#allocation3 + $0x30] sm:$0xff] %v838
          %855 = vst [vmem:[#allocation3 + $0x38] sm:$0xff] %v839
          %856 = vst [vmem:[#allocation3 + $0x40] sm:$0xff] %v840
          %857 = vst [vmem:[#allocation3 + $0x48] sm:$0xff] %v841
          %858 = vst [vmem:[#allocation3 + $0x50] sm:$0xff] %v842
          %859 = vst [vmem:[#allocation3 + $0x58] sm:$0xff] %v843
          %860 = vst [vmem:[#allocation3 + $0x60] sm:$0xff] %v844
          %861 = vst [vmem:[#allocation3 + $0x68] sm:$0xff] %v845
          %862 = vst [vmem:[#allocation3 + $0x70] sm:$0xff] %v846
          %863 = vst [vmem:[#allocation3 + $0x78] sm:$0xff] %v847
          %v864 = vld [vmem:[#allocation9] sm:$0xf]
          %v865 = vld [vmem:[#allocation9 + $0x4] sm:$0xf]
          %v866 = vld [vmem:[#allocation9 + $0x8] sm:$0xf]
          %v867 = vld [vmem:[#allocation9 + $0xc] sm:$0xf]
          %v868 = vld [vmem:[#allocation9 + $0x10] sm:$0xf]
          %v869 = vld [vmem:[#allocation9 + $0x14] sm:$0xf]
          %v870 = vld [vmem:[#allocation9 + $0x18] sm:$0xf]
          %v871 = vld [vmem:[#allocation9 + $0x1c] sm:$0xf]
          %v872 = vld [vmem:[#allocation9 + $0x20] sm:$0xf]
          %v873 = vld [vmem:[#allocation9 + $0x24] sm:$0xf]
          %v874 = vld [vmem:[#allocation9 + $0x28] sm:$0xf]
          %v875 = vld [vmem:[#allocation9 + $0x2c] sm:$0xf]
          %v876 = vld [vmem:[#allocation9 + $0x30] sm:$0xf]
          %v877 = vld [vmem:[#allocation9 + $0x34] sm:$0xf]
          %v878 = vld [vmem:[#allocation9 + $0x38] sm:$0xf]
          %v879 = vld [vmem:[#allocation9 + $0x3c] sm:$0xf]
          %v896 = vunpack.c.l.b16 %v864
          %v897 = vunpack.c.l.b16 %v865
          %v898 = vunpack.c.l.b16 %v866
          %v899 = vunpack.c.l.b16 %v867
          %v900 = vunpack.c.l.b16 %v868
          %v901 = vunpack.c.l.b16 %v869
          %v902 = vunpack.c.l.b16 %v870
          %v903 = vunpack.c.l.b16 %v871
          %v904 = vunpack.c.l.b16 %v872
          %v905 = vunpack.c.l.b16 %v873
          %v906 = vunpack.c.l.b16 %v874
          %v907 = vunpack.c.l.b16 %v875
          %v908 = vunpack.c.l.b16 %v876
          %v909 = vunpack.c.l.b16 %v877
          %v910 = vunpack.c.l.b16 %v878
          %v911 = vunpack.c.l.b16 %v879
          %v912 = vpack.c.b16 %v897, %v896
          %v913 = vpack.c.b16 %v899, %v898
          %v914 = vpack.c.b16 %v901, %v900
          %v915 = vpack.c.b16 %v903, %v902
          %v916 = vpack.c.b16 %v905, %v904
          %v917 = vpack.c.b16 %v907, %v906
          %v918 = vpack.c.b16 %v909, %v908
          %v919 = vpack.c.b16 %v911, %v910
          %928 = vmatprep.subr.bf16.mxu0 0
          %929 = vmatpush1.bf16.xpose.msra.mxu0 %v639
          %930 = vmatprep.subr.bf16.mxu0 0
          %931 = vmatpush1.bf16.xpose.msra.mxu0 %v640
          %932 = vmatprep.subr.bf16.mxu0 0
          %933 = vmatpush1.bf16.xpose.msra.mxu0 %v641
          %934 = vmatprep.subr.bf16.mxu0 0
          %935 = vmatpush1.bf16.xpose.msra.mxu0 %v642
          %936 = vmatprep.subr.bf16.mxu0 0
          %937 = vmatpush1.bf16.xpose.msra.mxu0 %v643
          %938 = vmatprep.subr.bf16.mxu0 0
          %939 = vmatpush1.bf16.xpose.msra.mxu0 %v644
          %940 = vmatprep.subr.bf16.mxu0 0
          %941 = vmatpush1.bf16.xpose.msra.mxu0 %v645
          %942 = vmatprep.subr.bf16.mxu0 0
          %943 = vmatpush1.bf16.xpose.msra.mxu0 %v646
          %944 = vmatprep.subr.bf16.mxu0 0
          %945 = vmatpush1.bf16.xpose.msra.mxu0 %v647
          %946 = vmatprep.subr.bf16.mxu0 0
          %947 = vmatpush1.bf16.xpose.msra.mxu0 %v648
          %948 = vmatprep.subr.bf16.mxu0 0
          %949 = vmatpush1.bf16.xpose.msra.mxu0 %v649
          %950 = vmatprep.subr.bf16.mxu0 0
          %951 = vmatpush1.bf16.xpose.msra.mxu0 %v650
          %952 = vmatprep.subr.bf16.mxu0 0
          %953 = vmatpush1.bf16.xpose.msra.mxu0 %v651
          %954 = vmatprep.subr.bf16.mxu0 0
          %955 = vmatpush1.bf16.xpose.msra.mxu0 %v652
          %956 = vmatprep.subr.bf16.mxu0 0
          %957 = vmatpush1.bf16.xpose.msra.mxu0 %v653
          %958 = vmatprep.subr.bf16.mxu0 0
          %959 = vmatpush1.bf16.xpose.msra.mxu0 %v654
          %960 = vmatprep.mubr.bf16.mxu0 0
          %961 = vmatmul.mubr.bf16.gmra.mrb[0].mxu0 %v912
          %v962 = vpop.f32.mrb[0].mxu0
          %v963 = vadd.f32 0.0, %v962
          %v964 = vpop.f32.mrb[0].mxu0
          %v965 = vadd.f32 0.0, %v964
          %v966 = vpop.f32.mrb[0].mxu0
          %v967 = vadd.f32 0.0, %v966
          %v968 = vpop.f32.mrb[0].mxu0
          %v969 = vadd.f32 0.0, %v968
          %970 = vmatprep.mubr.bf16.mxu0 0
          %971 = vmatmul.mubr.bf16.gmra.mrb[0].mxu0 %v913
          %v972 = vpop.f32.mrb[0].mxu0
          %v973 = vadd.f32 0.0, %v972
          %v974 = vpop.f32.mrb[0].mxu0
          %v975 = vadd.f32 0.0, %v974
          %v976 = vpop.f32.mrb[0].mxu0
          %v977 = vadd.f32 0.0, %v976
          %v978 = vpop.f32.mrb[0].mxu0
          %v979 = vadd.f32 0.0, %v978
          %980 = vmatprep.mubr.bf16.mxu0 0
          %981 = vmatmul.mubr.bf16.gmra.mrb[0].mxu0 %v914
          %v982 = vpop.f32.mrb[0].mxu0
          %v983 = vadd.f32 0.0, %v982
          %v984 = vpop.f32.mrb[0].mxu0
          %v985 = vadd.f32 0.0, %v984
          %v986 = vpop.f32.mrb[0].mxu0
          %v987 = vadd.f32 0.0, %v986
          %v988 = vpop.f32.mrb[0].mxu0
          %v989 = vadd.f32 0.0, %v988
          %990 = vmatprep.mubr.bf16.mxu0 0
          %991 = vmatmul.mubr.bf16.gmra.mrb[0].mxu0 %v915
          %v992 = vpop.f32.mrb[0].mxu0
          %v993 = vadd.f32 0.0, %v992
          %v994 = vpop.f32.mrb[0].mxu0
          %v995 = vadd.f32 0.0, %v994
          %v996 = vpop.f32.mrb[0].mxu0
          %v997 = vadd.f32 0.0, %v996
          %v998 = vpop.f32.mrb[0].mxu0
          %v999 = vadd.f32 0.0, %v998
          %1000 = vmatprep.mubr.bf16.mxu0 0
          %1001 = vmatmul.mubr.bf16.gmra.mrb[0].mxu0 %v916
          %v1002 = vpop.f32.mrb[0].mxu0
          %v1003 = vadd.f32 0.0, %v1002
          %v1004 = vpop.f32.mrb[0].mxu0
          %v1005 = vadd.f32 0.0, %v1004
          %v1006 = vpop.f32.mrb[0].mxu0
          %v1007 = vadd.f32 0.0, %v1006
          %v1008 = vpop.f32.mrb[0].mxu0
          %v1009 = vadd.f32 0.0, %v1008
          %1010 = vmatprep.mubr.bf16.mxu0 0
          %1011 = vmatmul.mubr.bf16.gmra.mrb[0].mxu0 %v917
          %v1012 = vpop.f32.mrb[0].mxu0
          %v1013 = vadd.f32 0.0, %v1012
          %v1014 = vpop.f32.mrb[0].mxu0
          %v1015 = vadd.f32 0.0, %v1014
          %v1016 = vpop.f32.mrb[0].mxu0
          %v1017 = vadd.f32 0.0, %v1016
          %v1018 = vpop.f32.mrb[0].mxu0
          %v1019 = vadd.f32 0.0, %v1018
          %1020 = vmatprep.mubr.bf16.mxu0 0
          %1021 = vmatmul.mubr.bf16.gmra.mrb[0].mxu0 %v918
          %v1022 = vpop.f32.mrb[0].mxu0
          %v1023 = vadd.f32 0.0, %v1022
          %v1024 = vpop.f32.mrb[0].mxu0
          %v1025 = vadd.f32 0.0, %v1024
          %v1026 = vpop.f32.mrb[0].mxu0
          %v1027 = vadd.f32 0.0, %v1026
          %v1028 = vpop.f32.mrb[0].mxu0
          %v1029 = vadd.f32 0.0, %v1028
          %1030 = vmatprep.mubr.bf16.mxu0 0
          %1031 = vmatmul.mubr.bf16.gmra.mrb[0].mxu0 %v919
          %v1032 = vpop.f32.mrb[0].mxu0
          %v1033 = vadd.f32 0.0, %v1032
          %v1034 = vpop.f32.mrb[0].mxu0
          %v1035 = vadd.f32 0.0, %v1034
          %v1036 = vpop.f32.mrb[0].mxu0
          %v1037 = vadd.f32 0.0, %v1036
          %v1038 = vpop.f32.mrb[0].mxu0
          %v1039 = vadd.f32 0.0, %v1038
          %1040 = vdwg.mxu0
          %v1041 = vpack.c.bf16 %v967, %v963
          %v1042 = vpack.c.bf16 %v969, %v965
          %v1043 = vpack.c.bf16 %v977, %v973
          %v1044 = vpack.c.bf16 %v979, %v975
          %v1045 = vpack.c.bf16 %v987, %v983
          %v1046 = vpack.c.bf16 %v989, %v985
          %v1047 = vpack.c.bf16 %v997, %v993
          %v1048 = vpack.c.bf16 %v999, %v995
          %v1049 = vpack.c.bf16 %v1007, %v1003
          %v1050 = vpack.c.bf16 %v1009, %v1005
          %v1051 = vpack.c.bf16 %v1017, %v1013
          %v1052 = vpack.c.bf16 %v1019, %v1015
          %v1053 = vpack.c.bf16 %v1027, %v1023
          %v1054 = vpack.c.bf16 %v1029, %v1025
          %v1055 = vpack.c.bf16 %v1037, %v1033
          %v1056 = vpack.c.bf16 %v1039, %v1035
          %1057 = vst [vmem:[#allocation4] sm:$0xff] %v1041
          %1058 = vst [vmem:[#allocation4 + $0x8] sm:$0xff] %v1042
          %1059 = vst [vmem:[#allocation4 + $0x10] sm:$0xff] %v1043
          %1060 = vst [vmem:[#allocation4 + $0x18] sm:$0xff] %v1044
          %1061 = vst [vmem:[#allocation4 + $0x20] sm:$0xff] %v1045
          %1062 = vst [vmem:[#allocation4 + $0x28] sm:$0xff] %v1046
          %1063 = vst [vmem:[#allocation4 + $0x30] sm:$0xff] %v1047
          %1064 = vst [vmem:[#allocation4 + $0x38] sm:$0xff] %v1048
          %1065 = vst [vmem:[#allocation4 + $0x40] sm:$0xff] %v1049
          %1066 = vst [vmem:[#allocation4 + $0x48] sm:$0xff] %v1050
          %1067 = vst [vmem:[#allocation4 + $0x50] sm:$0xff] %v1051
          %1068 = vst [vmem:[#allocation4 + $0x58] sm:$0xff] %v1052
          %1069 = vst [vmem:[#allocation4 + $0x60] sm:$0xff] %v1053
          %1070 = vst [vmem:[#allocation4 + $0x68] sm:$0xff] %v1054
          %1071 = vst [vmem:[#allocation4 + $0x70] sm:$0xff] %v1055
          %1072 = vst [vmem:[#allocation4 + $0x78] sm:$0xff] %v1056
        $region68: #{tpu_custom_call.1} parent=51 // pred_fallthru
          _
        %s1073 = smul.u32 %s31, 128
        %s1074 = sshra.s32 %s1073, 4
        %s1075 = sand.u32 %s1073, 15
        %s1076 = smul.addr %s1074, 8
        %s1077 = scalar_lea.vmem [#allocation2], %s1076
        %v1078 = vld [vmem:[%s1077] sm:$0xff]
        %v1079 = vld [vmem:[%s1077 + $0x8] sm:$0xff]
        %v1080 = vld [vmem:[%s1077 + $0x10] sm:$0xff]
        %v1081 = vld [vmem:[%s1077 + $0x18] sm:$0xff]
        %v1082 = vld [vmem:[%s1077 + $0x20] sm:$0xff]
        %v1083 = vld [vmem:[%s1077 + $0x28] sm:$0xff]
        %v1084 = vld [vmem:[%s1077 + $0x30] sm:$0xff]
        %v1085 = vld [vmem:[%s1077 + $0x38] sm:$0xff]
        %v1086 = vld [vmem:[%s1] sm:$0xf]
        %v1087 = vld [vmem:[%s1 + $0x4] sm:$0xf]
        %v1088 = vld [vmem:[%s1 + $0x8] sm:$0xf]
        %v1089 = vld [vmem:[%s1 + $0xc] sm:$0xf]
        %v1090 = vld [vmem:[%s1 + $0x10] sm:$0xf]
        %v1091 = vld [vmem:[%s1 + $0x14] sm:$0xf]
        %v1092 = vld [vmem:[%s1 + $0x18] sm:$0xf]
        %v1093 = vld [vmem:[%s1 + $0x1c] sm:$0xf]
        %v1094 = vld [vmem:[%s1 + $0x20] sm:$0xf]
        %v1095 = vld [vmem:[%s1 + $0x24] sm:$0xf]
        %v1096 = vld [vmem:[%s1 + $0x28] sm:$0xf]
        %v1097 = vld [vmem:[%s1 + $0x2c] sm:$0xf]
        %v1098 = vld [vmem:[%s1 + $0x30] sm:$0xf]
        %v1099 = vld [vmem:[%s1 + $0x34] sm:$0xf]
        %v1100 = vld [vmem:[%s1 + $0x38] sm:$0xf]
        %v1101 = vld [vmem:[%s1 + $0x3c] sm:$0xf]
        %v1118 = vunpack.c.l.b16 %v1086
        %v1119 = vunpack.c.l.b16 %v1087
        %v1120 = vunpack.c.l.b16 %v1088
        %v1121 = vunpack.c.l.b16 %v1089
        %v1122 = vunpack.c.l.b16 %v1090
        %v1123 = vunpack.c.l.b16 %v1091
        %v1124 = vunpack.c.l.b16 %v1092
        %v1125 = vunpack.c.l.b16 %v1093
        %v1126 = vunpack.c.l.b16 %v1094
        %v1127 = vunpack.c.l.b16 %v1095
        %v1128 = vunpack.c.l.b16 %v1096
        %v1129 = vunpack.c.l.b16 %v1097
        %v1130 = vunpack.c.l.b16 %v1098
        %v1131 = vunpack.c.l.b16 %v1099
        %v1132 = vunpack.c.l.b16 %v1100
        %v1133 = vunpack.c.l.b16 %v1101
        %v1134 = vpack.c.b16 %v1119, %v1118
        %v1135 = vpack.c.b16 %v1121, %v1120
        %v1136 = vpack.c.b16 %v1123, %v1122
        %v1137 = vpack.c.b16 %v1125, %v1124
        %v1138 = vpack.c.b16 %v1127, %v1126
        %v1139 = vpack.c.b16 %v1129, %v1128
        %v1140 = vpack.c.b16 %v1131, %v1130
        %v1141 = vpack.c.b16 %v1133, %v1132
        %1150 = vmatprep.subr.bf16.mxu0 0
        %1151 = vmatpush1.bf16.xpose.msra.mxu0 %v1134
        %1152 = vmatprep.subr.bf16.mxu0 0
        %1153 = vmatpush1.bf16.xpose.msra.mxu0 %v1135
        %1154 = vmatprep.subr.bf16.mxu0 0
        %1155 = vmatpush1.bf16.xpose.msra.mxu0 %v1136
        %1156 = vmatprep.subr.bf16.mxu0 0
        %1157 = vmatpush1.bf16.xpose.msra.mxu0 %v1137
        %1158 = vmatprep.subr.bf16.mxu0 0
        %1159 = vmatpush1.bf16.xpose.msra.mxu0 %v1138
        %1160 = vmatprep.subr.bf16.mxu0 0
        %1161 = vmatpush1.bf16.xpose.msra.mxu0 %v1139
        %1162 = vmatprep.subr.bf16.mxu0 0
        %1163 = vmatpush1.bf16.xpose.msra.mxu0 %v1140
        %1164 = vmatprep.subr.bf16.mxu0 0
        %1165 = vmatpush1.bf16.xpose.msra.mxu0 %v1141
        %1166 = vmatprep.subr.bf16.mxu0 0
        %1167 = vmatpush1.bf16.xpose.msra.mxu0 0
        %1168 = vmatprep.subr.bf16.mxu0 0
        %1169 = vmatpush1.bf16.xpose.msra.mxu0 0
        %1170 = vmatprep.subr.bf16.mxu0 0
        %1171 = vmatpush1.bf16.xpose.msra.mxu0 0
        %1172 = vmatprep.subr.bf16.mxu0 0
        %1173 = vmatpush1.bf16.xpose.msra.mxu0 0
        %1174 = vmatprep.subr.bf16.mxu0 0
        %1175 = vmatpush1.bf16.xpose.msra.mxu0 0
        %1176 = vmatprep.subr.bf16.mxu0 0
        %1177 = vmatpush1.bf16.xpose.msra.mxu0 0
        %1178 = vmatprep.subr.bf16.mxu0 0
        %1179 = vmatpush1.bf16.xpose.msra.mxu0 0
        %1180 = vmatprep.subr.bf16.mxu0 0
        %1181 = vmatpush1.bf16.xpose.msra.mxu0 0
        %1182 = vmatprep.mubr.bf16.mxu0 0
        %1183 = vmatmul.mubr.bf16.gmra.mrb[0].mxu0 %v1078
        %v1184 = vpop.f32.mrb[0].mxu0
        %v1185 = vadd.f32 0.0, %v1184
        %v1186 = vpop.f32.mrb[0].mxu0
        %v1187 = vpop.f32.mrb[0].mxu0
        %v1188 = vadd.f32 0.0, %v1187
        %v1189 = vpop.f32.mrb[0].mxu0
        %1190 = vmatprep.mubr.bf16.mxu0 0
        %1191 = vmatmul.mubr.bf16.gmra.mrb[0].mxu0 %v1079
        %v1192 = vpop.f32.mrb[0].mxu0
        %v1193 = vadd.f32 0.0, %v1192
        %v1194 = vpop.f32.mrb[0].mxu0
        %v1195 = vpop.f32.mrb[0].mxu0
        %v1196 = vadd.f32 0.0, %v1195
        %v1197 = vpop.f32.mrb[0].mxu0
        %1198 = vmatprep.mubr.bf16.mxu0 0
        %1199 = vmatmul.mubr.bf16.gmra.mrb[0].mxu0 %v1080
        %v1200 = vpop.f32.mrb[0].mxu0
        %v1201 = vadd.f32 0.0, %v1200
        %v1202 = vpop.f32.mrb[0].mxu0
        %v1203 = vpop.f32.mrb[0].mxu0
        %v1204 = vadd.f32 0.0, %v1203
        %v1205 = vpop.f32.mrb[0].mxu0
        %1206 = vmatprep.mubr.bf16.mxu0 0
        %1207 = vmatmul.mubr.bf16.gmra.mrb[0].mxu0 %v1081
        %v1208 = vpop.f32.mrb[0].mxu0
        %v1209 = vadd.f32 0.0, %v1208
        %v1210 = vpop.f32.mrb[0].mxu0
        %v1211 = vpop.f32.mrb[0].mxu0
        %v1212 = vadd.f32 0.0, %v1211
        %v1213 = vpop.f32.mrb[0].mxu0
        %1214 = vmatprep.mubr.bf16.mxu0 0
        %1215 = vmatmul.mubr.bf16.gmra.mrb[0].mxu0 %v1082
        %v1216 = vpop.f32.mrb[0].mxu0
        %v1217 = vadd.f32 0.0, %v1216
        %v1218 = vpop.f32.mrb[0].mxu0
        %v1219 = vpop.f32.mrb[0].mxu0
        %v1220 = vadd.f32 0.0, %v1219
        %v1221 = vpop.f32.mrb[0].mxu0
        %1222 = vmatprep.mubr.bf16.mxu0 0
        %1223 = vmatmul.mubr.bf16.gmra.mrb[0].mxu0 %v1083
        %v1224 = vpop.f32.mrb[0].mxu0
        %v1225 = vadd.f32 0.0, %v1224
        %v1226 = vpop.f32.mrb[0].mxu0
        %v1227 = vpop.f32.mrb[0].mxu0
        %v1228 = vadd.f32 0.0, %v1227
        %v1229 = vpop.f32.mrb[0].mxu0
        %1230 = vmatprep.mubr.bf16.mxu0 0
        %1231 = vmatmul.mubr.bf16.gmra.mrb[0].mxu0 %v1084
        %v1232 = vpop.f32.mrb[0].mxu0
        %v1233 = vadd.f32 0.0, %v1232
        %v1234 = vpop.f32.mrb[0].mxu0
        %v1235 = vpop.f32.mrb[0].mxu0
        %v1236 = vadd.f32 0.0, %v1235
        %v1237 = vpop.f32.mrb[0].mxu0
        %1238 = vmatprep.mubr.bf16.mxu0 0
        %1239 = vmatmul.mubr.bf16.gmra.mrb[0].mxu0 %v1085
        %v1240 = vpop.f32.mrb[0].mxu0
        %v1241 = vadd.f32 0.0, %v1240
        %v1242 = vpop.f32.mrb[0].mxu0
        %v1243 = vpop.f32.mrb[0].mxu0
        %v1244 = vadd.f32 0.0, %v1243
        %v1245 = vpop.f32.mrb[0].mxu0
        %1246 = vdwg.mxu0
        %v1247 = vmul.f32 %v1185, 0.17677669
        %v1248 = vmul.f32 %v1188, 0.17677669
        %v1249 = vmul.f32 %v1193, 0.17677669
        %v1250 = vmul.f32 %v1196, 0.17677669
        %v1251 = vmul.f32 %v1201, 0.17677669
        %v1252 = vmul.f32 %v1204, 0.17677669
        %v1253 = vmul.f32 %v1209, 0.17677669
        %v1254 = vmul.f32 %v1212, 0.17677669
        %v1255 = vmul.f32 %v1217, 0.17677669
        %v1256 = vmul.f32 %v1220, 0.17677669
        %v1257 = vmul.f32 %v1225, 0.17677669
        %v1258 = vmul.f32 %v1228, 0.17677669
        %v1259 = vmul.f32 %v1233, 0.17677669
        %v1260 = vmul.f32 %v1236, 0.17677669
        %v1261 = vmul.f32 %v1241, 0.17677669
        %v1262 = vmul.f32 %v1244, 0.17677669
        %v1263 = vpack.c.bf16 %v1248, %v1247
        %v1264 = vpack.c.bf16 %v1250, %v1249
        %v1265 = vpack.c.bf16 %v1252, %v1251
        %v1266 = vpack.c.bf16 %v1254, %v1253
        %v1267 = vpack.c.bf16 %v1256, %v1255
        %v1268 = vpack.c.bf16 %v1258, %v1257
        %v1269 = vpack.c.bf16 %v1260, %v1259
        %v1270 = vpack.c.bf16 %v1262, %v1261
        %v1271 = vld [vmem:[#allocation3] sm:$0xff]
        %v1272 = vld [vmem:[#allocation3 + $0x8] sm:$0xff]
        %v1273 = vld [vmem:[#allocation3 + $0x10] sm:$0xff]
        %v1274 = vld [vmem:[#allocation3 + $0x18] sm:$0xff]
        %v1275 = vld [vmem:[#allocation4] sm:$0xff]
        %v1276 = vld [vmem:[#allocation4 + $0x8] sm:$0xff]
        %v1277 = vld [vmem:[#allocation4 + $0x10] sm:$0xff]
        %v1278 = vld [vmem:[#allocation4 + $0x18] sm:$0xff]
        %vm1279 = vcmask 261120
        %v1281 = vsel %vm1279, %v1263, 0
        %v1284 = vsel %vm1279, %v1264, 0
        %v1287 = vsel %vm1279, %v1265, 0
        %v1290 = vsel %vm1279, %v1266, 0
        %v1293 = vsel %vm1279, %v1267, 0
        %v1296 = vsel %vm1279, %v1268, 0
        %v1299 = vsel %vm1279, %v1269, 0
        %v1302 = vsel %vm1279, %v1270, 0
        %1304 = vmatprep.subr.bf16.mxu0 %v1272
        %1305 = vmatpush1.bf16.msra.mxu0 %v1271
        %1306 = vmatprep.subr.bf16.mxu0 %v1274
        %1307 = vmatpush1.bf16.msra.mxu0 %v1273
        %1308 = vmatprep.subr.bf16.mxu0 0
        %1309 = vmatpush1.bf16.msra.mxu0 0
        %1310 = vmatprep.subr.bf16.mxu0 0
        %1311 = vmatpush1.bf16.msra.mxu0 0
        %1312 = vmatprep.subr.bf16.mxu0 0
        %1313 = vmatpush1.bf16.msra.mxu0 0
        %1314 = vmatprep.subr.bf16.mxu0 0
        %1315 = vmatpush1.bf16.msra.mxu0 0
        %1316 = vmatprep.subr.bf16.mxu0 0
        %1317 = vmatpush1.bf16.msra.mxu0 0
        %1318 = vmatprep.subr.bf16.mxu0 0
        %1319 = vmatpush1.bf16.msra.mxu0 0
        %1320 = vmatprep.subr.bf16.mxu0 0
        %1321 = vmatpush1.bf16.msra.mxu0 0
        %1322 = vmatprep.subr.bf16.mxu0 0
        %1323 = vmatpush1.bf16.msra.mxu0 0
        %1324 = vmatprep.subr.bf16.mxu0 0
        %1325 = vmatpush1.bf16.msra.mxu0 0
        %1326 = vmatprep.subr.bf16.mxu0 0
        %1327 = vmatpush1.bf16.msra.mxu0 0
        %1328 = vmatprep.subr.bf16.mxu0 0
        %1329 = vmatpush1.bf16.msra.mxu0 0
        %1330 = vmatprep.subr.bf16.mxu0 0
        %1331 = vmatpush1.bf16.msra.mxu0 0
        %1332 = vmatprep.subr.bf16.mxu0 0
        %1333 = vmatpush1.bf16.msra.mxu0 0
        %1334 = vmatprep.subr.bf16.mxu0 0
        %1335 = vmatpush1.bf16.msra.mxu0 0
        %1336 = vmatprep.mubr.bf16.mxu0 0
        %1337 = vmatmul.mubr.bf16.gmra.mrb[0].mxu0 %v1281
        %v1338 = vpop.f32.mrb[0].mxu0
        %v1339 = vadd.f32 0.0, %v1338
        %v1340 = vpop.f32.mrb[0].mxu0
        %v1341 = vadd.f32 0.0, %v1340
        %v1342 = vpop.f32.mrb[0].mxu0
        %v1343 = vadd.f32 0.0, %v1342
        %v1344 = vpop.f32.mrb[0].mxu0
        %v1345 = vadd.f32 0.0, %v1344
        %1346 = vmatprep.mubr.bf16.mxu0 0
        %1347 = vmatmul.mubr.bf16.gmra.mrb[0].mxu0 %v1284
        %v1348 = vpop.f32.mrb[0].mxu0
        %v1349 = vadd.f32 0.0, %v1348
        %v1350 = vpop.f32.mrb[0].mxu0
        %v1351 = vadd.f32 0.0, %v1350
        %v1352 = vpop.f32.mrb[0].mxu0
        %v1353 = vadd.f32 0.0, %v1352
        %v1354 = vpop.f32.mrb[0].mxu0
        %v1355 = vadd.f32 0.0, %v1354
        %1356 = vmatprep.mubr.bf16.mxu0 0
        %1357 = vmatmul.mubr.bf16.gmra.mrb[0].mxu0 %v1287
        %v1358 = vpop.f32.mrb[0].mxu0
        %v1359 = vadd.f32 0.0, %v1358
        %v1360 = vpop.f32.mrb[0].mxu0
        %v1361 = vadd.f32 0.0, %v1360
        %v1362 = vpop.f32.mrb[0].mxu0
        %v1363 = vadd.f32 0.0, %v1362
        %v1364 = vpop.f32.mrb[0].mxu0
        %v1365 = vadd.f32 0.0, %v1364
        %1366 = vmatprep.mubr.bf16.mxu0 0
        %1367 = vmatmul.mubr.bf16.gmra.mrb[0].mxu0 %v1290
        %v1368 = vpop.f32.mrb[0].mxu0
        %v1369 = vadd.f32 0.0, %v1368
        %v1370 = vpop.f32.mrb[0].mxu0
        %v1371 = vadd.f32 0.0, %v1370
        %v1372 = vpop.f32.mrb[0].mxu0
        %v1373 = vadd.f32 0.0, %v1372
        %v1374 = vpop.f32.mrb[0].mxu0
        %v1375 = vadd.f32 0.0, %v1374
        %1376 = vmatprep.mubr.bf16.mxu0 0
        %1377 = vmatmul.mubr.bf16.gmra.mrb[0].mxu0 %v1293
        %v1378 = vpop.f32.mrb[0].mxu0
        %v1379 = vadd.f32 0.0, %v1378
        %v1380 = vpop.f32.mrb[0].mxu0
        %v1381 = vadd.f32 0.0, %v1380
        %v1382 = vpop.f32.mrb[0].mxu0
        %v1383 = vadd.f32 0.0, %v1382
        %v1384 = vpop.f32.mrb[0].mxu0
        %v1385 = vadd.f32 0.0, %v1384
        %1386 = vmatprep.mubr.bf16.mxu0 0
        %1387 = vmatmul.mubr.bf16.gmra.mrb[0].mxu0 %v1296
        %v1388 = vpop.f32.mrb[0].mxu0
        %v1389 = vadd.f32 0.0, %v1388
        %v1390 = vpop.f32.mrb[0].mxu0
        %v1391 = vadd.f32 0.0, %v1390
        %v1392 = vpop.f32.mrb[0].mxu0
        %v1393 = vadd.f32 0.0, %v1392
        %v1394 = vpop.f32.mrb[0].mxu0
        %v1395 = vadd.f32 0.0, %v1394
        %1396 = vmatprep.mubr.bf16.mxu0 0
        %1397 = vmatmul.mubr.bf16.gmra.mrb[0].mxu0 %v1299
        %v1398 = vpop.f32.mrb[0].mxu0
        %v1399 = vadd.f32 0.0, %v1398
        %v1400 = vpop.f32.mrb[0].mxu0
        %v1401 = vadd.f32 0.0, %v1400
        %v1402 = vpop.f32.mrb[0].mxu0
        %v1403 = vadd.f32 0.0, %v1402
        %v1404 = vpop.f32.mrb[0].mxu0
        %v1405 = vadd.f32 0.0, %v1404
        %1406 = vmatprep.mubr.bf16.mxu0 0
        %1407 = vmatmul.mubr.bf16.gmra.mrb[0].mxu0 %v1302
        %v1408 = vpop.f32.mrb[0].mxu0
        %v1409 = vadd.f32 0.0, %v1408
        %v1410 = vpop.f32.mrb[0].mxu0
        %v1411 = vadd.f32 0.0, %v1410
        %v1412 = vpop.f32.mrb[0].mxu0
        %v1413 = vadd.f32 0.0, %v1412
        %v1414 = vpop.f32.mrb[0].mxu0
        %v1415 = vadd.f32 0.0, %v1414
        %1416 = vdwg.mxu0
        %v1417 = vmax.f32 %v1339, %v1341
        %1418 = vmax.xlane.f32.xlu0 %v1417
        %v1419 = vpop.xlane.xlu0 %1418
        %v1420 = vmax.f32 %v1343, %v1345
        %1421 = vmax.xlane.f32.xlu0 %v1420
        %v1422 = vpop.xlane.xlu0 %1421
        %v1423 = vmax.f32 %v1349, %v1351
        %1424 = vmax.xlane.f32.xlu0 %v1423
        %v1425 = vpop.xlane.xlu0 %1424
        %v1426 = vmax.f32 %v1353, %v1355
        %1427 = vmax.xlane.f32.xlu0 %v1426
        %v1428 = vpop.xlane.xlu0 %1427
        %v1429 = vmax.f32 %v1359, %v1361
        %1430 = vmax.xlane.f32.xlu0 %v1429
        %v1431 = vpop.xlane.xlu0 %1430
        %v1432 = vmax.f32 %v1363, %v1365
        %1433 = vmax.xlane.f32.xlu0 %v1432
        %v1434 = vpop.xlane.xlu0 %1433
        %v1435 = vmax.f32 %v1369, %v1371
        %1436 = vmax.xlane.f32.xlu0 %v1435
        %v1437 = vpop.xlane.xlu0 %1436
        %v1438 = vmax.f32 %v1373, %v1375
        %1439 = vmax.xlane.f32.xlu0 %v1438
        %v1440 = vpop.xlane.xlu0 %1439
        %v1441 = vmax.f32 %v1379, %v1381
        %1442 = vmax.xlane.f32.xlu0 %v1441
        %v1443 = vpop.xlane.xlu0 %1442
        %v1444 = vmax.f32 %v1383, %v1385
        %1445 = vmax.xlane.f32.xlu0 %v1444
        %v1446 = vpop.xlane.xlu0 %1445
        %v1447 = vmax.f32 %v1389, %v1391
        %1448 = vmax.xlane.f32.xlu0 %v1447
        %v1449 = vpop.xlane.xlu0 %1448
        %v1450 = vmax.f32 %v1393, %v1395
        %1451 = vmax.xlane.f32.xlu0 %v1450
        %v1452 = vpop.xlane.xlu0 %1451
        %v1453 = vmax.f32 %v1399, %v1401
        %1454 = vmax.xlane.f32.xlu0 %v1453
        %v1455 = vpop.xlane.xlu0 %1454
        %v1456 = vmax.f32 %v1403, %v1405
        %1457 = vmax.xlane.f32.xlu0 %v1456
        %v1458 = vpop.xlane.xlu0 %1457
        %v1459 = vmax.f32 %v1409, %v1411
        %1460 = vmax.xlane.f32.xlu0 %v1459
        %v1461 = vpop.xlane.xlu0 %1460
        %v1462 = vmax.f32 %v1413, %v1415
        %1463 = vmax.xlane.f32.xlu0 %v1462
        %v1464 = vpop.xlane.xlu0 %1463
        %v1465 = vsub.f32 %v1339, %v1419
        %v1466 = vsub.f32 %v1341, %v1419
        %v1467 = vsub.f32 %v1343, %v1422
        %v1468 = vsub.f32 %v1345, %v1422
        %v1469 = vsub.f32 %v1349, %v1425
        %v1470 = vsub.f32 %v1351, %v1425
        %v1471 = vsub.f32 %v1353, %v1428
        %v1472 = vsub.f32 %v1355, %v1428
        %v1473 = vsub.f32 %v1359, %v1431
        %v1474 = vsub.f32 %v1361, %v1431
        %v1475 = vsub.f32 %v1363, %v1434
        %v1476 = vsub.f32 %v1365, %v1434
        %v1477 = vsub.f32 %v1369, %v1437
        %v1478 = vsub.f32 %v1371, %v1437
        %v1479 = vsub.f32 %v1373, %v1440
        %v1480 = vsub.f32 %v1375, %v1440
        %v1481 = vsub.f32 %v1379, %v1443
        %v1482 = vsub.f32 %v1381, %v1443
        %v1483 = vsub.f32 %v1383, %v1446
        %v1484 = vsub.f32 %v1385, %v1446
        %v1485 = vsub.f32 %v1389, %v1449
        %v1486 = vsub.f32 %v1391, %v1449
        %v1487 = vsub.f32 %v1393, %v1452
        %v1488 = vsub.f32 %v1395, %v1452
        %v1489 = vsub.f32 %v1399, %v1455
        %v1490 = vsub.f32 %v1401, %v1455
        %v1491 = vsub.f32 %v1403, %v1458
        %v1492 = vsub.f32 %v1405, %v1458
        %v1493 = vsub.f32 %v1409, %v1461
        %v1494 = vsub.f32 %v1411, %v1461
        %v1495 = vsub.f32 %v1413, %v1464
        %v1496 = vsub.f32 %v1415, %v1464
        %v1497 = vmul.f32 %v1465, 1.442695
        %v1498 = vpow.pop %v1497
        %v1499 = vmul.f32 %v1466, 1.442695
        %v1500 = vpow.pop %v1499
        %v1501 = vmul.f32 %v1467, 1.442695
        %v1502 = vpow.pop %v1501
        %v1503 = vmul.f32 %v1468, 1.442695
        %v1504 = vpow.pop %v1503
        %v1505 = vmul.f32 %v1469, 1.442695
        %v1506 = vpow.pop %v1505
        %v1507 = vmul.f32 %v1470, 1.442695
        %v1508 = vpow.pop %v1507
        %v1509 = vmul.f32 %v1471, 1.442695
        %v1510 = vpow.pop %v1509
        %v1511 = vmul.f32 %v1472, 1.442695
        %v1512 = vpow.pop %v1511
        %v1513 = vmul.f32 %v1473, 1.442695
        %v1514 = vpow.pop %v1513
        %v1515 = vmul.f32 %v1474, 1.442695
        %v1516 = vpow.pop %v1515
        %v1517 = vmul.f32 %v1475, 1.442695
        %v1518 = vpow.pop %v1517
        %v1519 = vmul.f32 %v1476, 1.442695
        %v1520 = vpow.pop %v1519
        %v1521 = vmul.f32 %v1477, 1.442695
        %v1522 = vpow.pop %v1521
        %v1523 = vmul.f32 %v1478, 1.442695
        %v1524 = vpow.pop %v1523
        %v1525 = vmul.f32 %v1479, 1.442695
        %v1526 = vpow.pop %v1525
        %v1527 = vmul.f32 %v1480, 1.442695
        %v1528 = vpow.pop %v1527
        %v1529 = vmul.f32 %v1481, 1.442695
        %v1530 = vpow.pop %v1529
        %v1531 = vmul.f32 %v1482, 1.442695
        %v1532 = vpow.pop %v1531
        %v1533 = vmul.f32 %v1483, 1.442695
        %v1534 = vpow.pop %v1533
        %v1535 = vmul.f32 %v1484, 1.442695
        %v1536 = vpow.pop %v1535
        %v1537 = vmul.f32 %v1485, 1.442695
        %v1538 = vpow.pop %v1537
        %v1539 = vmul.f32 %v1486, 1.442695
        %v1540 = vpow.pop %v1539
        %v1541 = vmul.f32 %v1487, 1.442695
        %v1542 = vpow.pop %v1541
        %v1543 = vmul.f32 %v1488, 1.442695
        %v1544 = vpow.pop %v1543
        %v1545 = vmul.f32 %v1489, 1.442695
        %v1546 = vpow.pop %v1545
        %v1547 = vmul.f32 %v1490, 1.442695
        %v1548 = vpow.pop %v1547
        %v1549 = vmul.f32 %v1491, 1.442695
        %v1550 = vpow.pop %v1549
        %v1551 = vmul.f32 %v1492, 1.442695
        %v1552 = vpow.pop %v1551
        %v1553 = vmul.f32 %v1493, 1.442695
        %v1554 = vpow.pop %v1553
        %v1555 = vmul.f32 %v1494, 1.442695
        %v1556 = vpow.pop %v1555
        %v1557 = vmul.f32 %v1495, 1.442695
        %v1558 = vpow.pop %v1557
        %v1559 = vmul.f32 %v1496, 1.442695
        %v1560 = vpow.pop %v1559
        %v1561 = vadd.f32 %v1498, %v1500
        %1562 = vadd.xlane.f32.xlu0 %v1561
        %v1563 = vpop.xlane.xlu0 %1562
        %v1564 = vadd.f32 %v1502, %v1504
        %1565 = vadd.xlane.f32.xlu0 %v1564
        %v1566 = vpop.xlane.xlu0 %1565
        %v1567 = vadd.f32 %v1506, %v1508
        %1568 = vadd.xlane.f32.xlu0 %v1567
        %v1569 = vpop.xlane.xlu0 %1568
        %v1570 = vadd.f32 %v1510, %v1512
        %1571 = vadd.xlane.f32.xlu0 %v1570
        %v1572 = vpop.xlane.xlu0 %1571
        %v1573 = vadd.f32 %v1514, %v1516
        %1574 = vadd.xlane.f32.xlu0 %v1573
        %v1575 = vpop.xlane.xlu0 %1574
        %v1576 = vadd.f32 %v1518, %v1520
        %1577 = vadd.xlane.f32.xlu0 %v1576
        %v1578 = vpop.xlane.xlu0 %1577
        %v1579 = vadd.f32 %v1522, %v1524
        %1580 = vadd.xlane.f32.xlu0 %v1579
        %v1581 = vpop.xlane.xlu0 %1580
        %v1582 = vadd.f32 %v1526, %v1528
        %1583 = vadd.xlane.f32.xlu0 %v1582
        %v1584 = vpop.xlane.xlu0 %1583
        %v1585 = vadd.f32 %v1530, %v1532
        %1586 = vadd.xlane.f32.xlu0 %v1585
        %v1587 = vpop.xlane.xlu0 %1586
        %v1588 = vadd.f32 %v1534, %v1536
        %1589 = vadd.xlane.f32.xlu0 %v1588
        %v1590 = vpop.xlane.xlu0 %1589
        %v1591 = vadd.f32 %v1538, %v1540
        %1592 = vadd.xlane.f32.xlu0 %v1591
        %v1593 = vpop.xlane.xlu0 %1592
        %v1594 = vadd.f32 %v1542, %v1544
        %1595 = vadd.xlane.f32.xlu0 %v1594
        %v1596 = vpop.xlane.xlu0 %1595
        %v1597 = vadd.f32 %v1546, %v1548
        %1598 = vadd.xlane.f32.xlu0 %v1597
        %v1599 = vpop.xlane.xlu0 %1598
        %v1600 = vadd.f32 %v1550, %v1552
        %1601 = vadd.xlane.f32.xlu0 %v1600
        %v1602 = vpop.xlane.xlu0 %1601
        %v1603 = vadd.f32 %v1554, %v1556
        %1604 = vadd.xlane.f32.xlu0 %v1603
        %v1605 = vpop.xlane.xlu0 %1604
        %v1606 = vadd.f32 %v1558, %v1560
        %1607 = vadd.xlane.f32.xlu0 %v1606
        %v1608 = vpop.xlane.xlu0 %1607
        %v1609 = vpack.c.bf16 %v1502, %v1498
        %v1610 = vpack.c.bf16 %v1504, %v1500
        %v1611 = vpack.c.bf16 %v1510, %v1506
        %v1612 = vpack.c.bf16 %v1512, %v1508
        %v1613 = vpack.c.bf16 %v1518, %v1514
        %v1614 = vpack.c.bf16 %v1520, %v1516
        %v1615 = vpack.c.bf16 %v1526, %v1522
        %v1616 = vpack.c.bf16 %v1528, %v1524
        %v1617 = vpack.c.bf16 %v1534, %v1530
        %v1618 = vpack.c.bf16 %v1536, %v1532
        %v1619 = vpack.c.bf16 %v1542, %v1538
        %v1620 = vpack.c.bf16 %v1544, %v1540
        %v1621 = vpack.c.bf16 %v1550, %v1546
        %v1622 = vpack.c.bf16 %v1552, %v1548
        %v1623 = vpack.c.bf16 %v1558, %v1554
        %v1624 = vpack.c.bf16 %v1560, %v1556
        %1625 = vmatprep.subr.bf16.mxu0 %v1276
        %1626 = vmatpush1.bf16.xpose.msra.mxu0 %v1275
        %1627 = vmatprep.subr.bf16.mxu0 %v1278
        %1628 = vmatpush1.bf16.xpose.msra.mxu0 %v1277
        %1629 = vmatprep.subr.bf16.mxu0 0
        %1630 = vmatpush1.bf16.xpose.msra.mxu0 0
        %1631 = vmatprep.subr.bf16.mxu0 0
        %1632 = vmatpush1.bf16.xpose.msra.mxu0 0
        %1633 = vmatprep.subr.bf16.mxu0 0
        %1634 = vmatpush1.bf16.xpose.msra.mxu0 0
        %1635 = vmatprep.subr.bf16.mxu0 0
        %1636 = vmatpush1.bf16.xpose.msra.mxu0 0
        %1637 = vmatprep.subr.bf16.mxu0 0
        %1638 = vmatpush1.bf16.xpose.msra.mxu0 0
        %1639 = vmatprep.subr.bf16.mxu0 0
        %1640 = vmatpush1.bf16.xpose.msra.mxu0 0
        %1641 = vmatprep.subr.bf16.mxu0 0
        %1642 = vmatpush1.bf16.xpose.msra.mxu0 0
        %1643 = vmatprep.subr.bf16.mxu0 0
        %1644 = vmatpush1.bf16.xpose.msra.mxu0 0
        %1645 = vmatprep.subr.bf16.mxu0 0
        %1646 = vmatpush1.bf16.xpose.msra.mxu0 0
        %1647 = vmatprep.subr.bf16.mxu0 0
        %1648 = vmatpush1.bf16.xpose.msra.mxu0 0
        %1649 = vmatprep.subr.bf16.mxu0 0
        %1650 = vmatpush1.bf16.xpose.msra.mxu0 0
        %1651 = vmatprep.subr.bf16.mxu0 0
        %1652 = vmatpush1.bf16.xpose.msra.mxu0 0
        %1653 = vmatprep.subr.bf16.mxu0 0
        %1654 = vmatpush1.bf16.xpose.msra.mxu0 0
        %1655 = vmatprep.subr.bf16.mxu0 0
        %1656 = vmatpush1.bf16.xpose.msra.mxu0 0
        %1657 = vmatprep.mubr.bf16.mxu0 %v1610
        %1658 = vmatmul.mubr.bf16.gmra.mrb[0].mxu0 %v1609
        %v1659 = vpop.f32.mrb[0].mxu0
        %v1660 = vadd.f32 0.0, %v1659
        %v1661 = vpop.f32.mrb[0].mxu0
        %v1662 = vpop.f32.mrb[0].mxu0
        %v1663 = vadd.f32 0.0, %v1662
        %v1664 = vpop.f32.mrb[0].mxu0
        %1665 = vmatprep.mubr.bf16.mxu0 %v1612
        %1666 = vmatmul.mubr.bf16.gmra.mrb[0].mxu0 %v1611
        %v1667 = vpop.f32.mrb[0].mxu0
        %v1668 = vadd.f32 0.0, %v1667
        %v1669 = vpop.f32.mrb[0].mxu0
        %v1670 = vpop.f32.mrb[0].mxu0
        %v1671 = vadd.f32 0.0, %v1670
        %v1672 = vpop.f32.mrb[0].mxu0
        %1673 = vmatprep.mubr.bf16.mxu0 %v1614
        %1674 = vmatmul.mubr.bf16.gmra.mrb[0].mxu0 %v1613
        %v1675 = vpop.f32.mrb[0].mxu0
        %v1676 = vadd.f32 0.0, %v1675
        %v1677 = vpop.f32.mrb[0].mxu0
        %v1678 = vpop.f32.mrb[0].mxu0
        %v1679 = vadd.f32 0.0, %v1678
        %v1680 = vpop.f32.mrb[0].mxu0
        %1681 = vmatprep.mubr.bf16.mxu0 %v1616
        %1682 = vmatmul.mubr.bf16.gmra.mrb[0].mxu0 %v1615
        %v1683 = vpop.f32.mrb[0].mxu0
        %v1684 = vadd.f32 0.0, %v1683
        %v1685 = vpop.f32.mrb[0].mxu0
        %v1686 = vpop.f32.mrb[0].mxu0
        %v1687 = vadd.f32 0.0, %v1686
        %v1688 = vpop.f32.mrb[0].mxu0
        %1689 = vmatprep.mubr.bf16.mxu0 %v1618
        %1690 = vmatmul.mubr.bf16.gmra.mrb[0].mxu0 %v1617
        %v1691 = vpop.f32.mrb[0].mxu0
        %v1692 = vadd.f32 0.0, %v1691
        %v1693 = vpop.f32.mrb[0].mxu0
        %v1694 = vpop.f32.mrb[0].mxu0
        %v1695 = vadd.f32 0.0, %v1694
        %v1696 = vpop.f32.mrb[0].mxu0
        %1697 = vmatprep.mubr.bf16.mxu0 %v1620
        %1698 = vmatmul.mubr.bf16.gmra.mrb[0].mxu0 %v1619
        %v1699 = vpop.f32.mrb[0].mxu0
        %v1700 = vadd.f32 0.0, %v1699
        %v1701 = vpop.f32.mrb[0].mxu0
        %v1702 = vpop.f32.mrb[0].mxu0
        %v1703 = vadd.f32 0.0, %v1702
        %v1704 = vpop.f32.mrb[0].mxu0
        %1705 = vmatprep.mubr.bf16.mxu0 %v1622
        %1706 = vmatmul.mubr.bf16.gmra.mrb[0].mxu0 %v1621
        %v1707 = vpop.f32.mrb[0].mxu0
        %v1708 = vadd.f32 0.0, %v1707
        %v1709 = vpop.f32.mrb[0].mxu0
        %v1710 = vpop.f32.mrb[0].mxu0
        %v1711 = vadd.f32 0.0, %v1710
        %v1712 = vpop.f32.mrb[0].mxu0
        %1713 = vmatprep.mubr.bf16.mxu0 %v1624
        %1714 = vmatmul.mubr.bf16.gmra.mrb[0].mxu0 %v1623
        %v1715 = vpop.f32.mrb[0].mxu0
        %v1716 = vadd.f32 0.0, %v1715
        %v1717 = vpop.f32.mrb[0].mxu0
        %v1718 = vpop.f32.mrb[0].mxu0
        %v1719 = vadd.f32 0.0, %v1718
        %v1720 = vpop.f32.mrb[0].mxu0
        %1721 = vdwg.mxu0
        %v1722 = vrcp.pop %v1563
        %v1723 = vrcp.pop %v1566
        %v1724 = vrcp.pop %v1569
        %v1725 = vrcp.pop %v1572
        %v1726 = vrcp.pop %v1575
        %v1727 = vrcp.pop %v1578
        %v1728 = vrcp.pop %v1581
        %v1729 = vrcp.pop %v1584
        %v1730 = vrcp.pop %v1587
        %v1731 = vrcp.pop %v1590
        %v1732 = vrcp.pop %v1593
        %v1733 = vrcp.pop %v1596
        %v1734 = vrcp.pop %v1599
        %v1735 = vrcp.pop %v1602
        %v1736 = vrcp.pop %v1605
        %v1737 = vrcp.pop %v1608
        %v1738 = vmul.f32 %v1660, %v1722
        %v1739 = vmul.f32 %v1663, %v1723
        %v1740 = vmul.f32 %v1668, %v1724
        %v1741 = vmul.f32 %v1671, %v1725
        %v1742 = vmul.f32 %v1676, %v1726
        %v1743 = vmul.f32 %v1679, %v1727
        %v1744 = vmul.f32 %v1684, %v1728
        %v1745 = vmul.f32 %v1687, %v1729
        %v1746 = vmul.f32 %v1692, %v1730
        %v1747 = vmul.f32 %v1695, %v1731
        %v1748 = vmul.f32 %v1700, %v1732
        %v1749 = vmul.f32 %v1703, %v1733
        %v1750 = vmul.f32 %v1708, %v1734
        %v1751 = vmul.f32 %v1711, %v1735
        %v1752 = vmul.f32 %v1716, %v1736
        %v1753 = vmul.f32 %v1719, %v1737
        %v1754 = vpack.c.bf16 %v1739, %v1738
        %v1755 = vpack.c.bf16 %v1741, %v1740
        %v1756 = vpack.c.bf16 %v1743, %v1742
        %v1757 = vpack.c.bf16 %v1745, %v1744
        %v1758 = vpack.c.bf16 %v1747, %v1746
        %v1759 = vpack.c.bf16 %v1749, %v1748
        %v1760 = vpack.c.bf16 %v1751, %v1750
        %v1761 = vpack.c.bf16 %v1753, %v1752
        %1762 = vst.msk [vmem:[#allocation5] sm:$0xff] %vm1279, %v1754
        %1763 = vst.msk [vmem:[#allocation5 + $0x8] sm:$0xff] %vm1279, %v1755
        %1764 = vst.msk [vmem:[#allocation5 + $0x10] sm:$0xff] %vm1279, %v1756
        %1765 = vst.msk [vmem:[#allocation5 + $0x18] sm:$0xff] %vm1279, %v1757
        %1766 = vst.msk [vmem:[#allocation5 + $0x20] sm:$0xff] %vm1279, %v1758
        %1767 = vst.msk [vmem:[#allocation5 + $0x28] sm:$0xff] %vm1279, %v1759
        %1768 = vst.msk [vmem:[#allocation5 + $0x30] sm:$0xff] %vm1279, %v1760
        %1769 = vst.msk [vmem:[#allocation5 + $0x38] sm:$0xff] %vm1279, %v1761
        %v1770 = vld [vmem:[#allocation3 + $0x20] sm:$0xff]
        %v1771 = vld [vmem:[#allocation3 + $0x28] sm:$0xff]
        %v1772 = vld [vmem:[#allocation3 + $0x30] sm:$0xff]
        %v1773 = vld [vmem:[#allocation3 + $0x38] sm:$0xff]
        %v1774 = vld [vmem:[#allocation4 + $0x20] sm:$0xff]
        %v1775 = vld [vmem:[#allocation4 + $0x28] sm:$0xff]
        %v1776 = vld [vmem:[#allocation4 + $0x30] sm:$0xff]
        %v1777 = vld [vmem:[#allocation4 + $0x38] sm:$0xff]
        %1786 = vrot.lane.b32.xlu0 %v1263, 96
        %v1787 = vpop.permute.xlu0 %1786
        %1788 = vrot.lane.b32.xlu0 %v1264, 96
        %v1789 = vpop.permute.xlu0 %1788
        %1790 = vrot.lane.b32.xlu0 %v1265, 96
        %v1791 = vpop.permute.xlu0 %1790
        %1792 = vrot.lane.b32.xlu0 %v1266, 96
        %v1793 = vpop.permute.xlu0 %1792
        %1794 = vrot.lane.b32.xlu0 %v1267, 96
        %v1795 = vpop.permute.xlu0 %1794
        %1796 = vrot.lane.b32.xlu0 %v1268, 96
        %v1797 = vpop.permute.xlu0 %1796
        %1798 = vrot.lane.b32.xlu0 %v1269, 96
        %v1799 = vpop.permute.xlu0 %1798
        %1800 = vrot.lane.b32.xlu0 %v1270, 96
        %v1801 = vpop.permute.xlu0 %1800
        %v1803 = vsel %vm1279, %v1787, 0
        %v1806 = vsel %vm1279, %v1789, 0
        %v1809 = vsel %vm1279, %v1791, 0
        %v1812 = vsel %vm1279, %v1793, 0
        %v1815 = vsel %vm1279, %v1795, 0
        %v1818 = vsel %vm1279, %v1797, 0
        %v1821 = vsel %vm1279, %v1799, 0
        %v1824 = vsel %vm1279, %v1801, 0
        %1826 = vmatprep.subr.bf16.mxu0 %v1771
        %1827 = vmatpush1.bf16.msra.mxu0 %v1770
        %1828 = vmatprep.subr.bf16.mxu0 %v1773
        %1829 = vmatpush1.bf16.msra.mxu0 %v1772
        %1830 = vmatprep.subr.bf16.mxu0 0
        %1831 = vmatpush1.bf16.msra.mxu0 0
        %1832 = vmatprep.subr.bf16.mxu0 0
        %1833 = vmatpush1.bf16.msra.mxu0 0
        %1834 = vmatprep.subr.bf16.mxu0 0
        %1835 = vmatpush1.bf16.msra.mxu0 0
        %1836 = vmatprep.subr.bf16.mxu0 0
        %1837 = vmatpush1.bf16.msra.mxu0 0
        %1838 = vmatprep.subr.bf16.mxu0 0
        %1839 = vmatpush1.bf16.msra.mxu0 0
        %1840 = vmatprep.subr.bf16.mxu0 0
        %1841 = vmatpush1.bf16.msra.mxu0 0
        %1842 = vmatprep.subr.bf16.mxu0 0
        %1843 = vmatpush1.bf16.msra.mxu0 0
        %1844 = vmatprep.subr.bf16.mxu0 0
        %1845 = vmatpush1.bf16.msra.mxu0 0
        %1846 = vmatprep.subr.bf16.mxu0 0
        %1847 = vmatpush1.bf16.msra.mxu0 0
        %1848 = vmatprep.subr.bf16.mxu0 0
        %1849 = vmatpush1.bf16.msra.mxu0 0
        %1850 = vmatprep.subr.bf16.mxu0 0
        %1851 = vmatpush1.bf16.msra.mxu0 0
        %1852 = vmatprep.subr.bf16.mxu0 0
        %1853 = vmatpush1.bf16.msra.mxu0 0
        %1854 = vmatprep.subr.bf16.mxu0 0
        %1855 = vmatpush1.bf16.msra.mxu0 0
        %1856 = vmatprep.subr.bf16.mxu0 0
        %1857 = vmatpush1.bf16.msra.mxu0 0
        %1858 = vmatprep.mubr.bf16.mxu0 0
        %1859 = vmatmul.mubr.bf16.gmra.mrb[0].mxu0 %v1803
        %v1860 = vpop.f32.mrb[0].mxu0
        %v1861 = vadd.f32 0.0, %v1860
        %v1862 = vpop.f32.mrb[0].mxu0
        %v1863 = vadd.f32 0.0, %v1862
        %v1864 = vpop.f32.mrb[0].mxu0
        %v1865 = vadd.f32 0.0, %v1864
        %v1866 = vpop.f32.mrb[0].mxu0
        %v1867 = vadd.f32 0.0, %v1866
        %1868 = vmatprep.mubr.bf16.mxu0 0
        %1869 = vmatmul.mubr.bf16.gmra.mrb[0].mxu0 %v1806
        %v1870 = vpop.f32.mrb[0].mxu0
        %v1871 = vadd.f32 0.0, %v1870
        %v1872 = vpop.f32.mrb[0].mxu0
        %v1873 = vadd.f32 0.0, %v1872
        %v1874 = vpop.f32.mrb[0].mxu0
        %v1875 = vadd.f32 0.0, %v1874
        %v1876 = vpop.f32.mrb[0].mxu0
        %v1877 = vadd.f32 0.0, %v1876
        %1878 = vmatprep.mubr.bf16.mxu0 0
        %1879 = vmatmul.mubr.bf16.gmra.mrb[0].mxu0 %v1809
        %v1880 = vpop.f32.mrb[0].mxu0
        %v1881 = vadd.f32 0.0, %v1880
        %v1882 = vpop.f32.mrb[0].mxu0
        %v1883 = vadd.f32 0.0, %v1882
        %v1884 = vpop.f32.mrb[0].mxu0
        %v1885 = vadd.f32 0.0, %v1884
        %v1886 = vpop.f32.mrb[0].mxu0
        %v1887 = vadd.f32 0.0, %v1886
        %1888 = vmatprep.mubr.bf16.mxu0 0
        %1889 = vmatmul.mubr.bf16.gmra.mrb[0].mxu0 %v1812
        %v1890 = vpop.f32.mrb[0].mxu0
        %v1891 = vadd.f32 0.0, %v1890
        %v1892 = vpop.f32.mrb[0].mxu0
        %v1893 = vadd.f32 0.0, %v1892
        %v1894 = vpop.f32.mrb[0].mxu0
        %v1895 = vadd.f32 0.0, %v1894
        %v1896 = vpop.f32.mrb[0].mxu0
        %v1897 = vadd.f32 0.0, %v1896
        %1898 = vmatprep.mubr.bf16.mxu0 0
        %1899 = vmatmul.mubr.bf16.gmra.mrb[0].mxu0 %v1815
        %v1900 = vpop.f32.mrb[0].mxu0
        %v1901 = vadd.f32 0.0, %v1900
        %v1902 = vpop.f32.mrb[0].mxu0
        %v1903 = vadd.f32 0.0, %v1902
        %v1904 = vpop.f32.mrb[0].mxu0
        %v1905 = vadd.f32 0.0, %v1904
        %v1906 = vpop.f32.mrb[0].mxu0
        %v1907 = vadd.f32 0.0, %v1906
        %1908 = vmatprep.mubr.bf16.mxu0 0
        %1909 = vmatmul.mubr.bf16.gmra.mrb[0].mxu0 %v1818
        %v1910 = vpop.f32.mrb[0].mxu0
        %v1911 = vadd.f32 0.0, %v1910
        %v1912 = vpop.f32.mrb[0].mxu0
        %v1913 = vadd.f32 0.0, %v1912
        %v1914 = vpop.f32.mrb[0].mxu0
        %v1915 = vadd.f32 0.0, %v1914
        %v1916 = vpop.f32.mrb[0].mxu0
        %v1917 = vadd.f32 0.0, %v1916
        %1918 = vmatprep.mubr.bf16.mxu0 0
        %1919 = vmatmul.mubr.bf16.gmra.mrb[0].mxu0 %v1821
        %v1920 = vpop.f32.mrb[0].mxu0
        %v1921 = vadd.f32 0.0, %v1920
        %v1922 = vpop.f32.mrb[0].mxu0
        %v1923 = vadd.f32 0.0, %v1922
        %v1924 = vpop.f32.mrb[0].mxu0
        %v1925 = vadd.f32 0.0, %v1924
        %v1926 = vpop.f32.mrb[0].mxu0
        %v1927 = vadd.f32 0.0, %v1926
        %1928 = vmatprep.mubr.bf16.mxu0 0
        %1929 = vmatmul.mubr.bf16.gmra.mrb[0].mxu0 %v1824
        %v1930 = vpop.f32.mrb[0].mxu0
        %v1931 = vadd.f32 0.0, %v1930
        %v1932 = vpop.f32.mrb[0].mxu0
        %v1933 = vadd.f32 0.0, %v1932
        %v1934 = vpop.f32.mrb[0].mxu0
        %v1935 = vadd.f32 0.0, %v1934
        %v1936 = vpop.f32.mrb[0].mxu0
        %v1937 = vadd.f32 0.0, %v1936
        %1938 = vdwg.mxu0
        %v1939 = vmax.f32 %v1861, %v1863
        %1940 = vmax.xlane.f32.xlu0 %v1939
        %v1941 = vpop.xlane.xlu0 %1940
        %v1942 = vmax.f32 %v1865, %v1867
        %1943 = vmax.xlane.f32.xlu0 %v1942
        %v1944 = vpop.xlane.xlu0 %1943
        %v1945 = vmax.f32 %v1871, %v1873
        %1946 = vmax.xlane.f32.xlu0 %v1945
        %v1947 = vpop.xlane.xlu0 %1946
        %v1948 = vmax.f32 %v1875, %v1877
        %1949 = vmax.xlane.f32.xlu0 %v1948
        %v1950 = vpop.xlane.xlu0 %1949
        %v1951 = vmax.f32 %v1881, %v1883
        %1952 = vmax.xlane.f32.xlu0 %v1951
        %v1953 = vpop.xlane.xlu0 %1952
        %v1954 = vmax.f32 %v1885, %v1887
        %1955 = vmax.xlane.f32.xlu0 %v1954
        %v1956 = vpop.xlane.xlu0 %1955
        %v1957 = vmax.f32 %v1891, %v1893
        %1958 = vmax.xlane.f32.xlu0 %v1957
        %v1959 = vpop.xlane.xlu0 %1958
        %v1960 = vmax.f32 %v1895, %v1897
        %1961 = vmax.xlane.f32.xlu0 %v1960
        %v1962 = vpop.xlane.xlu0 %1961
        %v1963 = vmax.f32 %v1901, %v1903
        %1964 = vmax.xlane.f32.xlu0 %v1963
        %v1965 = vpop.xlane.xlu0 %1964
        %v1966 = vmax.f32 %v1905, %v1907
        %1967 = vmax.xlane.f32.xlu0 %v1966
        %v1968 = vpop.xlane.xlu0 %1967
        %v1969 = vmax.f32 %v1911, %v1913
        %1970 = vmax.xlane.f32.xlu0 %v1969
        %v1971 = vpop.xlane.xlu0 %1970
        %v1972 = vmax.f32 %v1915, %v1917
        %1973 = vmax.xlane.f32.xlu0 %v1972
        %v1974 = vpop.xlane.xlu0 %1973
        %v1975 = vmax.f32 %v1921, %v1923
        %1976 = vmax.xlane.f32.xlu0 %v1975
        %v1977 = vpop.xlane.xlu0 %1976
        %v1978 = vmax.f32 %v1925, %v1927
        %1979 = vmax.xlane.f32.xlu0 %v1978
        %v1980 = vpop.xlane.xlu0 %1979
        %v1981 = vmax.f32 %v1931, %v1933
        %1982 = vmax.xlane.f32.xlu0 %v1981
        %v1983 = vpop.xlane.xlu0 %1982
        %v1984 = vmax.f32 %v1935, %v1937
        %1985 = vmax.xlane.f32.xlu0 %v1984
        %v1986 = vpop.xlane.xlu0 %1985
        %v1987 = vsub.f32 %v1861, %v1941
        %v1988 = vsub.f32 %v1863, %v1941
        %v1989 = vsub.f32 %v1865, %v1944
        %v1990 = vsub.f32 %v1867, %v1944
        %v1991 = vsub.f32 %v1871, %v1947
        %v1992 = vsub.f32 %v1873, %v1947
        %v1993 = vsub.f32 %v1875, %v1950
        %v1994 = vsub.f32 %v1877, %v1950
        %v1995 = vsub.f32 %v1881, %v1953
        %v1996 = vsub.f32 %v1883, %v1953
        %v1997 = vsub.f32 %v1885, %v1956
        %v1998 = vsub.f32 %v1887, %v1956
        %v1999 = vsub.f32 %v1891, %v1959
        %v2000 = vsub.f32 %v1893, %v1959
        %v2001 = vsub.f32 %v1895, %v1962
        %v2002 = vsub.f32 %v1897, %v1962
        %v2003 = vsub.f32 %v1901, %v1965
        %v2004 = vsub.f32 %v1903, %v1965
        %v2005 = vsub.f32 %v1905, %v1968
        %v2006 = vsub.f32 %v1907, %v1968
        %v2007 = vsub.f32 %v1911, %v1971
        %v2008 = vsub.f32 %v1913, %v1971
        %v2009 = vsub.f32 %v1915, %v1974
        %v2010 = vsub.f32 %v1917, %v1974
        %v2011 = vsub.f32 %v1921, %v1977
        %v2012 = vsub.f32 %v1923, %v1977
        %v2013 = vsub.f32 %v1925, %v1980
        %v2014 = vsub.f32 %v1927, %v1980
        %v2015 = vsub.f32 %v1931, %v1983
        %v2016 = vsub.f32 %v1933, %v1983
        %v2017 = vsub.f32 %v1935, %v1986
        %v2018 = vsub.f32 %v1937, %v1986
        %v2019 = vmul.f32 %v1987, 1.442695
        %v2020 = vpow.pop %v2019
        %v2021 = vmul.f32 %v1988, 1.442695
        %v2022 = vpow.pop %v2021
        %v2023 = vmul.f32 %v1989, 1.442695
        %v2024 = vpow.pop %v2023
        %v2025 = vmul.f32 %v1990, 1.442695
        %v2026 = vpow.pop %v2025
        %v2027 = vmul.f32 %v1991, 1.442695
        %v2028 = vpow.pop %v2027
        %v2029 = vmul.f32 %v1992, 1.442695
        %v2030 = vpow.pop %v2029
        %v2031 = vmul.f32 %v1993, 1.442695
        %v2032 = vpow.pop %v2031
        %v2033 = vmul.f32 %v1994, 1.442695
        %v2034 = vpow.pop %v2033
        %v2035 = vmul.f32 %v1995, 1.442695
        %v2036 = vpow.pop %v2035
        %v2037 = vmul.f32 %v1996, 1.442695
        %v2038 = vpow.pop %v2037
        %v2039 = vmul.f32 %v1997, 1.442695
        %v2040 = vpow.pop %v2039
        %v2041 = vmul.f32 %v1998, 1.442695
        %v2042 = vpow.pop %v2041
        %v2043 = vmul.f32 %v1999, 1.442695
        %v2044 = vpow.pop %v2043
        %v2045 = vmul.f32 %v2000, 1.442695
        %v2046 = vpow.pop %v2045
        %v2047 = vmul.f32 %v2001, 1.442695
        %v2048 = vpow.pop %v2047
        %v2049 = vmul.f32 %v2002, 1.442695
        %v2050 = vpow.pop %v2049
        %v2051 = vmul.f32 %v2003, 1.442695
        %v2052 = vpow.pop %v2051
        %v2053 = vmul.f32 %v2004, 1.442695
        %v2054 = vpow.pop %v2053
        %v2055 = vmul.f32 %v2005, 1.442695
        %v2056 = vpow.pop %v2055
        %v2057 = vmul.f32 %v2006, 1.442695
        %v2058 = vpow.pop %v2057
        %v2059 = vmul.f32 %v2007, 1.442695
        %v2060 = vpow.pop %v2059
        %v2061 = vmul.f32 %v2008, 1.442695
        %v2062 = vpow.pop %v2061
        %v2063 = vmul.f32 %v2009, 1.442695
        %v2064 = vpow.pop %v2063
        %v2065 = vmul.f32 %v2010, 1.442695
        %v2066 = vpow.pop %v2065
        %v2067 = vmul.f32 %v2011, 1.442695
        %v2068 = vpow.pop %v2067
        %v2069 = vmul.f32 %v2012, 1.442695
        %v2070 = vpow.pop %v2069
        %v2071 = vmul.f32 %v2013, 1.442695
        %v2072 = vpow.pop %v2071
        %v2073 = vmul.f32 %v2014, 1.442695
        %v2074 = vpow.pop %v2073
        %v2075 = vmul.f32 %v2015, 1.442695
        %v2076 = vpow.pop %v2075
        %v2077 = vmul.f32 %v2016, 1.442695
        %v2078 = vpow.pop %v2077
        %v2079 = vmul.f32 %v2017, 1.442695
        %v2080 = vpow.pop %v2079
        %v2081 = vmul.f32 %v2018, 1.442695
        %v2082 = vpow.pop %v2081
        %v2083 = vadd.f32 %v2020, %v2022
        %2084 = vadd.xlane.f32.xlu0 %v2083
        %v2085 = vpop.xlane.xlu0 %2084
        %v2086 = vadd.f32 %v2024, %v2026
        %2087 = vadd.xlane.f32.xlu0 %v2086
        %v2088 = vpop.xlane.xlu0 %2087
        %v2089 = vadd.f32 %v2028, %v2030
        %2090 = vadd.xlane.f32.xlu0 %v2089
        %v2091 = vpop.xlane.xlu0 %2090
        %v2092 = vadd.f32 %v2032, %v2034
        %2093 = vadd.xlane.f32.xlu0 %v2092
        %v2094 = vpop.xlane.xlu0 %2093
        %v2095 = vadd.f32 %v2036, %v2038
        %2096 = vadd.xlane.f32.xlu0 %v2095
        %v2097 = vpop.xlane.xlu0 %2096
        %v2098 = vadd.f32 %v2040, %v2042
        %2099 = vadd.xlane.f32.xlu0 %v2098
        %v2100 = vpop.xlane.xlu0 %2099
        %v2101 = vadd.f32 %v2044, %v2046
        %2102 = vadd.xlane.f32.xlu0 %v2101
        %v2103 = vpop.xlane.xlu0 %2102
        %v2104 = vadd.f32 %v2048, %v2050
        %2105 = vadd.xlane.f32.xlu0 %v2104
        %v2106 = vpop.xlane.xlu0 %2105
        %v2107 = vadd.f32 %v2052, %v2054
        %2108 = vadd.xlane.f32.xlu0 %v2107
        %v2109 = vpop.xlane.xlu0 %2108
        %v2110 = vadd.f32 %v2056, %v2058
        %2111 = vadd.xlane.f32.xlu0 %v2110
        %v2112 = vpop.xlane.xlu0 %2111
        %v2113 = vadd.f32 %v2060, %v2062
        %2114 = vadd.xlane.f32.xlu0 %v2113
        %v2115 = vpop.xlane.xlu0 %2114
        %v2116 = vadd.f32 %v2064, %v2066
        %2117 = vadd.xlane.f32.xlu0 %v2116
        %v2118 = vpop.xlane.xlu0 %2117
        %v2119 = vadd.f32 %v2068, %v2070
        %2120 = vadd.xlane.f32.xlu0 %v2119
        %v2121 = vpop.xlane.xlu0 %2120
        %v2122 = vadd.f32 %v2072, %v2074
        %2123 = vadd.xlane.f32.xlu0 %v2122
        %v2124 = vpop.xlane.xlu0 %2123
        %v2125 = vadd.f32 %v2076, %v2078
        %2126 = vadd.xlane.f32.xlu0 %v2125
        %v2127 = vpop.xlane.xlu0 %2126
        %v2128 = vadd.f32 %v2080, %v2082
        %2129 = vadd.xlane.f32.xlu0 %v2128
        %v2130 = vpop.xlane.xlu0 %2129
        %v2131 = vpack.c.bf16 %v2024, %v2020
        %v2132 = vpack.c.bf16 %v2026, %v2022
        %v2133 = vpack.c.bf16 %v2032, %v2028
        %v2134 = vpack.c.bf16 %v2034, %v2030
        %v2135 = vpack.c.bf16 %v2040, %v2036
        %v2136 = vpack.c.bf16 %v2042, %v2038
        %v2137 = vpack.c.bf16 %v2048, %v2044
        %v2138 = vpack.c.bf16 %v2050, %v2046
        %v2139 = vpack.c.bf16 %v2056, %v2052
        %v2140 = vpack.c.bf16 %v2058, %v2054
        %v2141 = vpack.c.bf16 %v2064, %v2060
        %v2142 = vpack.c.bf16 %v2066, %v2062
        %v2143 = vpack.c.bf16 %v2072, %v2068
        %v2144 = vpack.c.bf16 %v2074, %v2070
        %v2145 = vpack.c.bf16 %v2080, %v2076
        %v2146 = vpack.c.bf16 %v2082, %v2078
        %2147 = vmatprep.subr.bf16.mxu0 %v1775
        %2148 = vmatpush1.bf16.xpose.msra.mxu0 %v1774
        %2149 = vmatprep.subr.bf16.mxu0 %v1777
        %2150 = vmatpush1.bf16.xpose.msra.mxu0 %v1776
        %2151 = vmatprep.subr.bf16.mxu0 0
        %2152 = vmatpush1.bf16.xpose.msra.mxu0 0
        %2153 = vmatprep.subr.bf16.mxu0 0
        %2154 = vmatpush1.bf16.xpose.msra.mxu0 0
        %2155 = vmatprep.subr.bf16.mxu0 0
        %2156 = vmatpush1.bf16.xpose.msra.mxu0 0
        %2157 = vmatprep.subr.bf16.mxu0 0
        %2158 = vmatpush1.bf16.xpose.msra.mxu0 0
        %2159 = vmatprep.subr.bf16.mxu0 0
        %2160 = vmatpush1.bf16.xpose.msra.mxu0 0
        %2161 = vmatprep.subr.bf16.mxu0 0
        %2162 = vmatpush1.bf16.xpose.msra.mxu0 0
        %2163 = vmatprep.subr.bf16.mxu0 0
        %2164 = vmatpush1.bf16.xpose.msra.mxu0 0
        %2165 = vmatprep.subr.bf16.mxu0 0
        %2166 = vmatpush1.bf16.xpose.msra.mxu0 0
        %2167 = vmatprep.subr.bf16.mxu0 0
        %2168 = vmatpush1.bf16.xpose.msra.mxu0 0
        %2169 = vmatprep.subr.bf16.mxu0 0
        %2170 = vmatpush1.bf16.xpose.msra.mxu0 0
        %2171 = vmatprep.subr.bf16.mxu0 0
        %2172 = vmatpush1.bf16.xpose.msra.mxu0 0
        %2173 = vmatprep.subr.bf16.mxu0 0
        %2174 = vmatpush1.bf16.xpose.msra.mxu0 0
        %2175 = vmatprep.subr.bf16.mxu0 0
        %2176 = vmatpush1.bf16.xpose.msra.mxu0 0
        %2177 = vmatprep.subr.bf16.mxu0 0
        %2178 = vmatpush1.bf16.xpose.msra.mxu0 0
        %2179 = vmatprep.mubr.bf16.mxu0 %v2132
        %2180 = vmatmul.mubr.bf16.gmra.mrb[0].mxu0 %v2131
        %v2181 = vpop.f32.mrb[0].mxu0
        %v2182 = vadd.f32 0.0, %v2181
        %v2183 = vpop.f32.mrb[0].mxu0
        %v2184 = vpop.f32.mrb[0].mxu0
        %v2185 = vadd.f32 0.0, %v2184
        %v2186 = vpop.f32.mrb[0].mxu0
        %2187 = vmatprep.mubr.bf16.mxu0 %v2134
        %2188 = vmatmul.mubr.bf16.gmra.mrb[0].mxu0 %v2133
        %v2189 = vpop.f32.mrb[0].mxu0
        %v2190 = vadd.f32 0.0, %v2189
        %v2191 = vpop.f32.mrb[0].mxu0
        %v2192 = vpop.f32.mrb[0].mxu0
        %v2193 = vadd.f32 0.0, %v2192
        %v2194 = vpop.f32.mrb[0].mxu0
        %2195 = vmatprep.mubr.bf16.mxu0 %v2136
        %2196 = vmatmul.mubr.bf16.gmra.mrb[0].mxu0 %v2135
        %v2197 = vpop.f32.mrb[0].mxu0
        %v2198 = vadd.f32 0.0, %v2197
        %v2199 = vpop.f32.mrb[0].mxu0
        %v2200 = vpop.f32.mrb[0].mxu0
        %v2201 = vadd.f32 0.0, %v2200
        %v2202 = vpop.f32.mrb[0].mxu0
        %2203 = vmatprep.mubr.bf16.mxu0 %v2138
        %2204 = vmatmul.mubr.bf16.gmra.mrb[0].mxu0 %v2137
        %v2205 = vpop.f32.mrb[0].mxu0
        %v2206 = vadd.f32 0.0, %v2205
        %v2207 = vpop.f32.mrb[0].mxu0
        %v2208 = vpop.f32.mrb[0].mxu0
        %v2209 = vadd.f32 0.0, %v2208
        %v2210 = vpop.f32.mrb[0].mxu0
        %2211 = vmatprep.mubr.bf16.mxu0 %v2140
        %2212 = vmatmul.mubr.bf16.gmra.mrb[0].mxu0 %v2139
        %v2213 = vpop.f32.mrb[0].mxu0
        %v2214 = vadd.f32 0.0, %v2213
        %v2215 = vpop.f32.mrb[0].mxu0
        %v2216 = vpop.f32.mrb[0].mxu0
        %v2217 = vadd.f32 0.0, %v2216
        %v2218 = vpop.f32.mrb[0].mxu0
        %2219 = vmatprep.mubr.bf16.mxu0 %v2142
        %2220 = vmatmul.mubr.bf16.gmra.mrb[0].mxu0 %v2141
        %v2221 = vpop.f32.mrb[0].mxu0
        %v2222 = vadd.f32 0.0, %v2221
        %v2223 = vpop.f32.mrb[0].mxu0
        %v2224 = vpop.f32.mrb[0].mxu0
        %v2225 = vadd.f32 0.0, %v2224
        %v2226 = vpop.f32.mrb[0].mxu0
        %2227 = vmatprep.mubr.bf16.mxu0 %v2144
        %2228 = vmatmul.mubr.bf16.gmra.mrb[0].mxu0 %v2143
        %v2229 = vpop.f32.mrb[0].mxu0
        %v2230 = vadd.f32 0.0, %v2229
        %v2231 = vpop.f32.mrb[0].mxu0
        %v2232 = vpop.f32.mrb[0].mxu0
        %v2233 = vadd.f32 0.0, %v2232
        %v2234 = vpop.f32.mrb[0].mxu0
        %2235 = vmatprep.mubr.bf16.mxu0 %v2146
        %2236 = vmatmul.mubr.bf16.gmra.mrb[0].mxu0 %v2145
        %v2237 = vpop.f32.mrb[0].mxu0
        %v2238 = vadd.f32 0.0, %v2237
        %v2239 = vpop.f32.mrb[0].mxu0
        %v2240 = vpop.f32.mrb[0].mxu0
        %v2241 = vadd.f32 0.0, %v2240
        %v2242 = vpop.f32.mrb[0].mxu0
        %2243 = vdwg.mxu0
        %v2244 = vrcp.pop %v2085
        %v2245 = vrcp.pop %v2088
        %v2246 = vrcp.pop %v2091
        %v2247 = vrcp.pop %v2094
        %v2248 = vrcp.pop %v2097
        %v2249 = vrcp.pop %v2100
        %v2250 = vrcp.pop %v2103
        %v2251 = vrcp.pop %v2106
        %v2252 = vrcp.pop %v2109
        %v2253 = vrcp.pop %v2112
        %v2254 = vrcp.pop %v2115
        %v2255 = vrcp.pop %v2118
        %v2256 = vrcp.pop %v2121
        %v2257 = vrcp.pop %v2124
        %v2258 = vrcp.pop %v2127
        %v2259 = vrcp.pop %v2130
        %v2260 = vmul.f32 %v2182, %v2244
        %v2261 = vmul.f32 %v2185, %v2245
        %v2262 = vmul.f32 %v2190, %v2246
        %v2263 = vmul.f32 %v2193, %v2247
        %v2264 = vmul.f32 %v2198, %v2248
        %v2265 = vmul.f32 %v2201, %v2249
        %v2266 = vmul.f32 %v2206, %v2250
        %v2267 = vmul.f32 %v2209, %v2251
        %v2268 = vmul.f32 %v2214, %v2252
        %v2269 = vmul.f32 %v2217, %v2253
        %v2270 = vmul.f32 %v2222, %v2254
        %v2271 = vmul.f32 %v2225, %v2255
        %v2272 = vmul.f32 %v2230, %v2256
        %v2273 = vmul.f32 %v2233, %v2257
        %v2274 = vmul.f32 %v2238, %v2258
        %v2275 = vmul.f32 %v2241, %v2259
        %v2276 = vpack.c.bf16 %v2261, %v2260
        %v2277 = vpack.c.bf16 %v2263, %v2262
        %v2278 = vpack.c.bf16 %v2265, %v2264
        %v2279 = vpack.c.bf16 %v2267, %v2266
        %v2280 = vpack.c.bf16 %v2269, %v2268
        %v2281 = vpack.c.bf16 %v2271, %v2270
        %v2282 = vpack.c.bf16 %v2273, %v2272
        %v2283 = vpack.c.bf16 %v2275, %v2274
        %2292 = vrot.lane.b32.xlu0 %v2276, 32
        %v2293 = vpop.permute.xlu0 %2292
        %2294 = vrot.lane.b32.xlu0 %v2277, 32
        %v2295 = vpop.permute.xlu0 %2294
        %2296 = vrot.lane.b32.xlu0 %v2278, 32
        %v2297 = vpop.permute.xlu0 %2296
        %2298 = vrot.lane.b32.xlu0 %v2279, 32
        %v2299 = vpop.permute.xlu0 %2298
        %2300 = vrot.lane.b32.xlu0 %v2280, 32
        %v2301 = vpop.permute.xlu0 %2300
        %2302 = vrot.lane.b32.xlu0 %v2281, 32
        %v2303 = vpop.permute.xlu0 %2302
        %2304 = vrot.lane.b32.xlu0 %v2282, 32
        %v2305 = vpop.permute.xlu0 %2304
        %2306 = vrot.lane.b32.xlu0 %v2283, 32
        %v2307 = vpop.permute.xlu0 %2306
        %vm2316 = vcmask 523520
        %2317 = vst.msk [vmem:[#allocation5] sm:$0xff] %vm2316, %v2293
        %2318 = vst.msk [vmem:[#allocation5 + $0x8] sm:$0xff] %vm2316, %v2295
        %2319 = vst.msk [vmem:[#allocation5 + $0x10] sm:$0xff] %vm2316, %v2297
        %2320 = vst.msk [vmem:[#allocation5 + $0x18] sm:$0xff] %vm2316, %v2299
        %2321 = vst.msk [vmem:[#allocation5 + $0x20] sm:$0xff] %vm2316, %v2301
        %2322 = vst.msk [vmem:[#allocation5 + $0x28] sm:$0xff] %vm2316, %v2303
        %2323 = vst.msk [vmem:[#allocation5 + $0x30] sm:$0xff] %vm2316, %v2305
        %2324 = vst.msk [vmem:[#allocation5 + $0x38] sm:$0xff] %vm2316, %v2307
        %v2325 = vld [vmem:[#allocation3 + $0x40] sm:$0xff]
        %v2326 = vld [vmem:[#allocation3 + $0x48] sm:$0xff]
        %v2327 = vld [vmem:[#allocation3 + $0x50] sm:$0xff]
        %v2328 = vld [vmem:[#allocation3 + $0x58] sm:$0xff]
        %v2329 = vld [vmem:[#allocation4 + $0x40] sm:$0xff]
        %v2330 = vld [vmem:[#allocation4 + $0x48] sm:$0xff]
        %v2331 = vld [vmem:[#allocation4 + $0x50] sm:$0xff]
        %v2332 = vld [vmem:[#allocation4 + $0x58] sm:$0xff]
        %2333 = vrot.lane.b32.xlu0 %v1263, 64
        %v2334 = vpop.permute.xlu0 %2333
        %2335 = vrot.lane.b32.xlu0 %v1264, 64
        %v2336 = vpop.permute.xlu0 %2335
        %2337 = vrot.lane.b32.xlu0 %v1265, 64
        %v2338 = vpop.permute.xlu0 %2337
        %2339 = vrot.lane.b32.xlu0 %v1266, 64
        %v2340 = vpop.permute.xlu0 %2339
        %2341 = vrot.lane.b32.xlu0 %v1267, 64
        %v2342 = vpop.permute.xlu0 %2341
        %2343 = vrot.lane.b32.xlu0 %v1268, 64
        %v2344 = vpop.permute.xlu0 %2343
        %2345 = vrot.lane.b32.xlu0 %v1269, 64
        %v2346 = vpop.permute.xlu0 %2345
        %2347 = vrot.lane.b32.xlu0 %v1270, 64
        %v2348 = vpop.permute.xlu0 %2347
        %v2350 = vsel %vm1279, %v2334, 0
        %v2353 = vsel %vm1279, %v2336, 0
        %v2356 = vsel %vm1279, %v2338, 0
        %v2359 = vsel %vm1279, %v2340, 0
        %v2362 = vsel %vm1279, %v2342, 0
        %v2365 = vsel %vm1279, %v2344, 0
        %v2368 = vsel %vm1279, %v2346, 0
        %v2371 = vsel %vm1279, %v2348, 0
        %2373 = vmatprep.subr.bf16.mxu0 %v2326
        %2374 = vmatpush1.bf16.msra.mxu0 %v2325
        %2375 = vmatprep.subr.bf16.mxu0 %v2328
        %2376 = vmatpush1.bf16.msra.mxu0 %v2327
        %2377 = vmatprep.subr.bf16.mxu0 0
        %2378 = vmatpush1.bf16.msra.mxu0 0
        %2379 = vmatprep.subr.bf16.mxu0 0
        %2380 = vmatpush1.bf16.msra.mxu0 0
        %2381 = vmatprep.subr.bf16.mxu0 0
        %2382 = vmatpush1.bf16.msra.mxu0 0
        %2383 = vmatprep.subr.bf16.mxu0 0
        %2384 = vmatpush1.bf16.msra.mxu0 0
        %2385 = vmatprep.subr.bf16.mxu0 0
        %2386 = vmatpush1.bf16.msra.mxu0 0
        %2387 = vmatprep.subr.bf16.mxu0 0
        %2388 = vmatpush1.bf16.msra.mxu0 0
        %2389 = vmatprep.subr.bf16.mxu0 0
        %2390 = vmatpush1.bf16.msra.mxu0 0
        %2391 = vmatprep.subr.bf16.mxu0 0
        %2392 = vmatpush1.bf16.msra.mxu0 0
        %2393 = vmatprep.subr.bf16.mxu0 0
        %2394 = vmatpush1.bf16.msra.mxu0 0
        %2395 = vmatprep.subr.bf16.mxu0 0
        %2396 = vmatpush1.bf16.msra.mxu0 0
        %2397 = vmatprep.subr.bf16.mxu0 0
        %2398 = vmatpush1.bf16.msra.mxu0 0
        %2399 = vmatprep.subr.bf16.mxu0 0
        %2400 = vmatpush1.bf16.msra.mxu0 0
        %2401 = vmatprep.subr.bf16.mxu0 0
        %2402 = vmatpush1.bf16.msra.mxu0 0
        %2403 = vmatprep.subr.bf16.mxu0 0
        %2404 = vmatpush1.bf16.msra.mxu0 0
        %2405 = vmatprep.mubr.bf16.mxu0 0
        %2406 = vmatmul.mubr.bf16.gmra.mrb[0].mxu0 %v2350
        %v2407 = vpop.f32.mrb[0].mxu0
        %v2408 = vadd.f32 0.0, %v2407
        %v2409 = vpop.f32.mrb[0].mxu0
        %v2410 = vadd.f32 0.0, %v2409
        %v2411 = vpop.f32.mrb[0].mxu0
        %v2412 = vadd.f32 0.0, %v2411
        %v2413 = vpop.f32.mrb[0].mxu0
        %v2414 = vadd.f32 0.0, %v2413
        %2415 = vmatprep.mubr.bf16.mxu0 0
        %2416 = vmatmul.mubr.bf16.gmra.mrb[0].mxu0 %v2353
        %v2417 = vpop.f32.mrb[0].mxu0
        %v2418 = vadd.f32 0.0, %v2417
        %v2419 = vpop.f32.mrb[0].mxu0
        %v2420 = vadd.f32 0.0, %v2419
        %v2421 = vpop.f32.mrb[0].mxu0
        %v2422 = vadd.f32 0.0, %v2421
        %v2423 = vpop.f32.mrb[0].mxu0
        %v2424 = vadd.f32 0.0, %v2423
        %2425 = vmatprep.mubr.bf16.mxu0 0
        %2426 = vmatmul.mubr.bf16.gmra.mrb[0].mxu0 %v2356
        %v2427 = vpop.f32.mrb[0].mxu0
        %v2428 = vadd.f32 0.0, %v2427
        %v2429 = vpop.f32.mrb[0].mxu0
        %v2430 = vadd.f32 0.0, %v2429
        %v2431 = vpop.f32.mrb[0].mxu0
        %v2432 = vadd.f32 0.0, %v2431
        %v2433 = vpop.f32.mrb[0].mxu0
        %v2434 = vadd.f32 0.0, %v2433
        %2435 = vmatprep.mubr.bf16.mxu0 0
        %2436 = vmatmul.mubr.bf16.gmra.mrb[0].mxu0 %v2359
        %v2437 = vpop.f32.mrb[0].mxu0
        %v2438 = vadd.f32 0.0, %v2437
        %v2439 = vpop.f32.mrb[0].mxu0
        %v2440 = vadd.f32 0.0, %v2439
        %v2441 = vpop.f32.mrb[0].mxu0
        %v2442 = vadd.f32 0.0, %v2441
        %v2443 = vpop.f32.mrb[0].mxu0
        %v2444 = vadd.f32 0.0, %v2443
        %2445 = vmatprep.mubr.bf16.mxu0 0
        %2446 = vmatmul.mubr.bf16.gmra.mrb[0].mxu0 %v2362
        %v2447 = vpop.f32.mrb[0].mxu0
        %v2448 = vadd.f32 0.0, %v2447
        %v2449 = vpop.f32.mrb[0].mxu0
        %v2450 = vadd.f32 0.0, %v2449
        %v2451 = vpop.f32.mrb[0].mxu0
        %v2452 = vadd.f32 0.0, %v2451
        %v2453 = vpop.f32.mrb[0].mxu0
        %v2454 = vadd.f32 0.0, %v2453
        %2455 = vmatprep.mubr.bf16.mxu0 0
        %2456 = vmatmul.mubr.bf16.gmra.mrb[0].mxu0 %v2365
        %v2457 = vpop.f32.mrb[0].mxu0
        %v2458 = vadd.f32 0.0, %v2457
        %v2459 = vpop.f32.mrb[0].mxu0
        %v2460 = vadd.f32 0.0, %v2459
        %v2461 = vpop.f32.mrb[0].mxu0
        %v2462 = vadd.f32 0.0, %v2461
        %v2463 = vpop.f32.mrb[0].mxu0
        %v2464 = vadd.f32 0.0, %v2463
        %2465 = vmatprep.mubr.bf16.mxu0 0
        %2466 = vmatmul.mubr.bf16.gmra.mrb[0].mxu0 %v2368
        %v2467 = vpop.f32.mrb[0].mxu0
        %v2468 = vadd.f32 0.0, %v2467
        %v2469 = vpop.f32.mrb[0].mxu0
        %v2470 = vadd.f32 0.0, %v2469
        %v2471 = vpop.f32.mrb[0].mxu0
        %v2472 = vadd.f32 0.0, %v2471
        %v2473 = vpop.f32.mrb[0].mxu0
        %v2474 = vadd.f32 0.0, %v2473
        %2475 = vmatprep.mubr.bf16.mxu0 0
        %2476 = vmatmul.mubr.bf16.gmra.mrb[0].mxu0 %v2371
        %v2477 = vpop.f32.mrb[0].mxu0
        %v2478 = vadd.f32 0.0, %v2477
        %v2479 = vpop.f32.mrb[0].mxu0
        %v2480 = vadd.f32 0.0, %v2479
        %v2481 = vpop.f32.mrb[0].mxu0
        %v2482 = vadd.f32 0.0, %v2481
        %v2483 = vpop.f32.mrb[0].mxu0
        %v2484 = vadd.f32 0.0, %v2483
        %2485 = vdwg.mxu0
        %v2486 = vmax.f32 %v2408, %v2410
        %2487 = vmax.xlane.f32.xlu0 %v2486
        %v2488 = vpop.xlane.xlu0 %2487
        %v2489 = vmax.f32 %v2412, %v2414
        %2490 = vmax.xlane.f32.xlu0 %v2489
        %v2491 = vpop.xlane.xlu0 %2490
        %v2492 = vmax.f32 %v2418, %v2420
        %2493 = vmax.xlane.f32.xlu0 %v2492
        %v2494 = vpop.xlane.xlu0 %2493
        %v2495 = vmax.f32 %v2422, %v2424
        %2496 = vmax.xlane.f32.xlu0 %v2495
        %v2497 = vpop.xlane.xlu0 %2496
        %v2498 = vmax.f32 %v2428, %v2430
        %2499 = vmax.xlane.f32.xlu0 %v2498
        %v2500 = vpop.xlane.xlu0 %2499
        %v2501 = vmax.f32 %v2432, %v2434
        %2502 = vmax.xlane.f32.xlu0 %v2501
        %v2503 = vpop.xlane.xlu0 %2502
        %v2504 = vmax.f32 %v2438, %v2440
        %2505 = vmax.xlane.f32.xlu0 %v2504
        %v2506 = vpop.xlane.xlu0 %2505
        %v2507 = vmax.f32 %v2442, %v2444
        %2508 = vmax.xlane.f32.xlu0 %v2507
        %v2509 = vpop.xlane.xlu0 %2508
        %v2510 = vmax.f32 %v2448, %v2450
        %2511 = vmax.xlane.f32.xlu0 %v2510
        %v2512 = vpop.xlane.xlu0 %2511
        %v2513 = vmax.f32 %v2452, %v2454
        %2514 = vmax.xlane.f32.xlu0 %v2513
        %v2515 = vpop.xlane.xlu0 %2514
        %v2516 = vmax.f32 %v2458, %v2460
        %2517 = vmax.xlane.f32.xlu0 %v2516
        %v2518 = vpop.xlane.xlu0 %2517
        %v2519 = vmax.f32 %v2462, %v2464
        %2520 = vmax.xlane.f32.xlu0 %v2519
        %v2521 = vpop.xlane.xlu0 %2520
        %v2522 = vmax.f32 %v2468, %v2470
        %2523 = vmax.xlane.f32.xlu0 %v2522
        %v2524 = vpop.xlane.xlu0 %2523
        %v2525 = vmax.f32 %v2472, %v2474
        %2526 = vmax.xlane.f32.xlu0 %v2525
        %v2527 = vpop.xlane.xlu0 %2526
        %v2528 = vmax.f32 %v2478, %v2480
        %2529 = vmax.xlane.f32.xlu0 %v2528
        %v2530 = vpop.xlane.xlu0 %2529
        %v2531 = vmax.f32 %v2482, %v2484
        %2532 = vmax.xlane.f32.xlu0 %v2531
        %v2533 = vpop.xlane.xlu0 %2532
        %v2534 = vsub.f32 %v2408, %v2488
        %v2535 = vsub.f32 %v2410, %v2488
        %v2536 = vsub.f32 %v2412, %v2491
        %v2537 = vsub.f32 %v2414, %v2491
        %v2538 = vsub.f32 %v2418, %v2494
        %v2539 = vsub.f32 %v2420, %v2494
        %v2540 = vsub.f32 %v2422, %v2497
        %v2541 = vsub.f32 %v2424, %v2497
        %v2542 = vsub.f32 %v2428, %v2500
        %v2543 = vsub.f32 %v2430, %v2500
        %v2544 = vsub.f32 %v2432, %v2503
        %v2545 = vsub.f32 %v2434, %v2503
        %v2546 = vsub.f32 %v2438, %v2506
        %v2547 = vsub.f32 %v2440, %v2506
        %v2548 = vsub.f32 %v2442, %v2509
        %v2549 = vsub.f32 %v2444, %v2509
        %v2550 = vsub.f32 %v2448, %v2512
        %v2551 = vsub.f32 %v2450, %v2512
        %v2552 = vsub.f32 %v2452, %v2515
        %v2553 = vsub.f32 %v2454, %v2515
        %v2554 = vsub.f32 %v2458, %v2518
        %v2555 = vsub.f32 %v2460, %v2518
        %v2556 = vsub.f32 %v2462, %v2521
        %v2557 = vsub.f32 %v2464, %v2521
        %v2558 = vsub.f32 %v2468, %v2524
        %v2559 = vsub.f32 %v2470, %v2524
        %v2560 = vsub.f32 %v2472, %v2527
        %v2561 = vsub.f32 %v2474, %v2527
        %v2562 = vsub.f32 %v2478, %v2530
        %v2563 = vsub.f32 %v2480, %v2530
        %v2564 = vsub.f32 %v2482, %v2533
        %v2565 = vsub.f32 %v2484, %v2533
        %v2566 = vmul.f32 %v2534, 1.442695
        %v2567 = vpow.pop %v2566
        %v2568 = vmul.f32 %v2535, 1.442695
        %v2569 = vpow.pop %v2568
        %v2570 = vmul.f32 %v2536, 1.442695
        %v2571 = vpow.pop %v2570
        %v2572 = vmul.f32 %v2537, 1.442695
        %v2573 = vpow.pop %v2572
        %v2574 = vmul.f32 %v2538, 1.442695
        %v2575 = vpow.pop %v2574
        %v2576 = vmul.f32 %v2539, 1.442695
        %v2577 = vpow.pop %v2576
        %v2578 = vmul.f32 %v2540, 1.442695
        %v2579 = vpow.pop %v2578
        %v2580 = vmul.f32 %v2541, 1.442695
        %v2581 = vpow.pop %v2580
        %v2582 = vmul.f32 %v2542, 1.442695
        %v2583 = vpow.pop %v2582
        %v2584 = vmul.f32 %v2543, 1.442695
        %v2585 = vpow.pop %v2584
        %v2586 = vmul.f32 %v2544, 1.442695
        %v2587 = vpow.pop %v2586
        %v2588 = vmul.f32 %v2545, 1.442695
        %v2589 = vpow.pop %v2588
        %v2590 = vmul.f32 %v2546, 1.442695
        %v2591 = vpow.pop %v2590
        %v2592 = vmul.f32 %v2547, 1.442695
        %v2593 = vpow.pop %v2592
        %v2594 = vmul.f32 %v2548, 1.442695
        %v2595 = vpow.pop %v2594
        %v2596 = vmul.f32 %v2549, 1.442695
        %v2597 = vpow.pop %v2596
        %v2598 = vmul.f32 %v2550, 1.442695
        %v2599 = vpow.pop %v2598
        %v2600 = vmul.f32 %v2551, 1.442695
        %v2601 = vpow.pop %v2600
        %v2602 = vmul.f32 %v2552, 1.442695
        %v2603 = vpow.pop %v2602
        %v2604 = vmul.f32 %v2553, 1.442695
        %v2605 = vpow.pop %v2604
        %v2606 = vmul.f32 %v2554, 1.442695
        %v2607 = vpow.pop %v2606
        %v2608 = vmul.f32 %v2555, 1.442695
        %v2609 = vpow.pop %v2608
        %v2610 = vmul.f32 %v2556, 1.442695
        %v2611 = vpow.pop %v2610
        %v2612 = vmul.f32 %v2557, 1.442695
        %v2613 = vpow.pop %v2612
        %v2614 = vmul.f32 %v2558, 1.442695
        %v2615 = vpow.pop %v2614
        %v2616 = vmul.f32 %v2559, 1.442695
        %v2617 = vpow.pop %v2616
        %v2618 = vmul.f32 %v2560, 1.442695
        %v2619 = vpow.pop %v2618
        %v2620 = vmul.f32 %v2561, 1.442695
        %v2621 = vpow.pop %v2620
        %v2622 = vmul.f32 %v2562, 1.442695
        %v2623 = vpow.pop %v2622
        %v2624 = vmul.f32 %v2563, 1.442695
        %v2625 = vpow.pop %v2624
        %v2626 = vmul.f32 %v2564, 1.442695
        %v2627 = vpow.pop %v2626
        %v2628 = vmul.f32 %v2565, 1.442695
        %v2629 = vpow.pop %v2628
        %v2630 = vadd.f32 %v2567, %v2569
        %2631 = vadd.xlane.f32.xlu0 %v2630
        %v2632 = vpop.xlane.xlu0 %2631
        %v2633 = vadd.f32 %v2571, %v2573
        %2634 = vadd.xlane.f32.xlu0 %v2633
        %v2635 = vpop.xlane.xlu0 %2634
        %v2636 = vadd.f32 %v2575, %v2577
        %2637 = vadd.xlane.f32.xlu0 %v2636
        %v2638 = vpop.xlane.xlu0 %2637
        %v2639 = vadd.f32 %v2579, %v2581
        %2640 = vadd.xlane.f32.xlu0 %v2639
        %v2641 = vpop.xlane.xlu0 %2640
        %v2642 = vadd.f32 %v2583, %v2585
        %2643 = vadd.xlane.f32.xlu0 %v2642
        %v2644 = vpop.xlane.xlu0 %2643
        %v2645 = vadd.f32 %v2587, %v2589
        %2646 = vadd.xlane.f32.xlu0 %v2645
        %v2647 = vpop.xlane.xlu0 %2646
        %v2648 = vadd.f32 %v2591, %v2593
        %2649 = vadd.xlane.f32.xlu0 %v2648
        %v2650 = vpop.xlane.xlu0 %2649
        %v2651 = vadd.f32 %v2595, %v2597
        %2652 = vadd.xlane.f32.xlu0 %v2651
        %v2653 = vpop.xlane.xlu0 %2652
        %v2654 = vadd.f32 %v2599, %v2601
        %2655 = vadd.xlane.f32.xlu0 %v2654
        %v2656 = vpop.xlane.xlu0 %2655
        %v2657 = vadd.f32 %v2603, %v2605
        %2658 = vadd.xlane.f32.xlu0 %v2657
        %v2659 = vpop.xlane.xlu0 %2658
        %v2660 = vadd.f32 %v2607, %v2609
        %2661 = vadd.xlane.f32.xlu0 %v2660
        %v2662 = vpop.xlane.xlu0 %2661
        %v2663 = vadd.f32 %v2611, %v2613
        %2664 = vadd.xlane.f32.xlu0 %v2663
        %v2665 = vpop.xlane.xlu0 %2664
        %v2666 = vadd.f32 %v2615, %v2617
        %2667 = vadd.xlane.f32.xlu0 %v2666
        %v2668 = vpop.xlane.xlu0 %2667
        %v2669 = vadd.f32 %v2619, %v2621
        %2670 = vadd.xlane.f32.xlu0 %v2669
        %v2671 = vpop.xlane.xlu0 %2670
        %v2672 = vadd.f32 %v2623, %v2625
        %2673 = vadd.xlane.f32.xlu0 %v2672
        %v2674 = vpop.xlane.xlu0 %2673
        %v2675 = vadd.f32 %v2627, %v2629
        %2676 = vadd.xlane.f32.xlu0 %v2675
        %v2677 = vpop.xlane.xlu0 %2676
        %v2678 = vpack.c.bf16 %v2571, %v2567
        %v2679 = vpack.c.bf16 %v2573, %v2569
        %v2680 = vpack.c.bf16 %v2579, %v2575
        %v2681 = vpack.c.bf16 %v2581, %v2577
        %v2682 = vpack.c.bf16 %v2587, %v2583
        %v2683 = vpack.c.bf16 %v2589, %v2585
        %v2684 = vpack.c.bf16 %v2595, %v2591
        %v2685 = vpack.c.bf16 %v2597, %v2593
        %v2686 = vpack.c.bf16 %v2603, %v2599
        %v2687 = vpack.c.bf16 %v2605, %v2601
        %v2688 = vpack.c.bf16 %v2611, %v2607
        %v2689 = vpack.c.bf16 %v2613, %v2609
        %v2690 = vpack.c.bf16 %v2619, %v2615
        %v2691 = vpack.c.bf16 %v2621, %v2617
        %v2692 = vpack.c.bf16 %v2627, %v2623
        %v2693 = vpack.c.bf16 %v2629, %v2625
        %2694 = vmatprep.subr.bf16.mxu0 %v2330
        %2695 = vmatpush1.bf16.xpose.msra.mxu0 %v2329
        %2696 = vmatprep.subr.bf16.mxu0 %v2332
        %2697 = vmatpush1.bf16.xpose.msra.mxu0 %v2331
        %2698 = vmatprep.subr.bf16.mxu0 0
        %2699 = vmatpush1.bf16.xpose.msra.mxu0 0
        %2700 = vmatprep.subr.bf16.mxu0 0
        %2701 = vmatpush1.bf16.xpose.msra.mxu0 0
        %2702 = vmatprep.subr.bf16.mxu0 0
        %2703 = vmatpush1.bf16.xpose.msra.mxu0 0
        %2704 = vmatprep.subr.bf16.mxu0 0
        %2705 = vmatpush1.bf16.xpose.msra.mxu0 0
        %2706 = vmatprep.subr.bf16.mxu0 0
        %2707 = vmatpush1.bf16.xpose.msra.mxu0 0
        %2708 = vmatprep.subr.bf16.mxu0 0
        %2709 = vmatpush1.bf16.xpose.msra.mxu0 0
        %2710 = vmatprep.subr.bf16.mxu0 0
        %2711 = vmatpush1.bf16.xpose.msra.mxu0 0
        %2712 = vmatprep.subr.bf16.mxu0 0
        %2713 = vmatpush1.bf16.xpose.msra.mxu0 0
        %2714 = vmatprep.subr.bf16.mxu0 0
        %2715 = vmatpush1.bf16.xpose.msra.mxu0 0
        %2716 = vmatprep.subr.bf16.mxu0 0
        %2717 = vmatpush1.bf16.xpose.msra.mxu0 0
        %2718 = vmatprep.subr.bf16.mxu0 0
        %2719 = vmatpush1.bf16.xpose.msra.mxu0 0
        %2720 = vmatprep.subr.bf16.mxu0 0
        %2721 = vmatpush1.bf16.xpose.msra.mxu0 0
        %2722 = vmatprep.subr.bf16.mxu0 0
        %2723 = vmatpush1.bf16.xpose.msra.mxu0 0
        %2724 = vmatprep.subr.bf16.mxu0 0
        %2725 = vmatpush1.bf16.xpose.msra.mxu0 0
        %2726 = vmatprep.mubr.bf16.mxu0 %v2679
        %2727 = vmatmul.mubr.bf16.gmra.mrb[0].mxu0 %v2678
        %v2728 = vpop.f32.mrb[0].mxu0
        %v2729 = vadd.f32 0.0, %v2728
        %v2730 = vpop.f32.mrb[0].mxu0
        %v2731 = vpop.f32.mrb[0].mxu0
        %v2732 = vadd.f32 0.0, %v2731
        %v2733 = vpop.f32.mrb[0].mxu0
        %2734 = vmatprep.mubr.bf16.mxu0 %v2681
        %2735 = vmatmul.mubr.bf16.gmra.mrb[0].mxu0 %v2680
        %v2736 = vpop.f32.mrb[0].mxu0
        %v2737 = vadd.f32 0.0, %v2736
        %v2738 = vpop.f32.mrb[0].mxu0
        %v2739 = vpop.f32.mrb[0].mxu0
        %v2740 = vadd.f32 0.0, %v2739
        %v2741 = vpop.f32.mrb[0].mxu0
        %2742 = vmatprep.mubr.bf16.mxu0 %v2683
        %2743 = vmatmul.mubr.bf16.gmra.mrb[0].mxu0 %v2682
        %v2744 = vpop.f32.mrb[0].mxu0
        %v2745 = vadd.f32 0.0, %v2744
        %v2746 = vpop.f32.mrb[0].mxu0
        %v2747 = vpop.f32.mrb[0].mxu0
        %v2748 = vadd.f32 0.0, %v2747
        %v2749 = vpop.f32.mrb[0].mxu0
        %2750 = vmatprep.mubr.bf16.mxu0 %v2685
        %2751 = vmatmul.mubr.bf16.gmra.mrb[0].mxu0 %v2684
        %v2752 = vpop.f32.mrb[0].mxu0
        %v2753 = vadd.f32 0.0, %v2752
        %v2754 = vpop.f32.mrb[0].mxu0
        %v2755 = vpop.f32.mrb[0].mxu0
        %v2756 = vadd.f32 0.0, %v2755
        %v2757 = vpop.f32.mrb[0].mxu0
        %2758 = vmatprep.mubr.bf16.mxu0 %v2687
        %2759 = vmatmul.mubr.bf16.gmra.mrb[0].mxu0 %v2686
        %v2760 = vpop.f32.mrb[0].mxu0
        %v2761 = vadd.f32 0.0, %v2760
        %v2762 = vpop.f32.mrb[0].mxu0
        %v2763 = vpop.f32.mrb[0].mxu0
        %v2764 = vadd.f32 0.0, %v2763
        %v2765 = vpop.f32.mrb[0].mxu0
        %2766 = vmatprep.mubr.bf16.mxu0 %v2689
        %2767 = vmatmul.mubr.bf16.gmra.mrb[0].mxu0 %v2688
        %v2768 = vpop.f32.mrb[0].mxu0
        %v2769 = vadd.f32 0.0, %v2768
        %v2770 = vpop.f32.mrb[0].mxu0
        %v2771 = vpop.f32.mrb[0].mxu0
        %v2772 = vadd.f32 0.0, %v2771
        %v2773 = vpop.f32.mrb[0].mxu0
        %2774 = vmatprep.mubr.bf16.mxu0 %v2691
        %2775 = vmatmul.mubr.bf16.gmra.mrb[0].mxu0 %v2690
        %v2776 = vpop.f32.mrb[0].mxu0
        %v2777 = vadd.f32 0.0, %v2776
        %v2778 = vpop.f32.mrb[0].mxu0
        %v2779 = vpop.f32.mrb[0].mxu0
        %v2780 = vadd.f32 0.0, %v2779
        %v2781 = vpop.f32.mrb[0].mxu0
        %2782 = vmatprep.mubr.bf16.mxu0 %v2693
        %2783 = vmatmul.mubr.bf16.gmra.mrb[0].mxu0 %v2692
        %v2784 = vpop.f32.mrb[0].mxu0
        %v2785 = vadd.f32 0.0, %v2784
        %v2786 = vpop.f32.mrb[0].mxu0
        %v2787 = vpop.f32.mrb[0].mxu0
        %v2788 = vadd.f32 0.0, %v2787
        %v2789 = vpop.f32.mrb[0].mxu0
        %2790 = vdwg.mxu0
        %v2791 = vrcp.pop %v2632
        %v2792 = vrcp.pop %v2635
        %v2793 = vrcp.pop %v2638
        %v2794 = vrcp.pop %v2641
        %v2795 = vrcp.pop %v2644
        %v2796 = vrcp.pop %v2647
        %v2797 = vrcp.pop %v2650
        %v2798 = vrcp.pop %v2653
        %v2799 = vrcp.pop %v2656
        %v2800 = vrcp.pop %v2659
        %v2801 = vrcp.pop %v2662
        %v2802 = vrcp.pop %v2665
        %v2803 = vrcp.pop %v2668
        %v2804 = vrcp.pop %v2671
        %v2805 = vrcp.pop %v2674
        %v2806 = vrcp.pop %v2677
        %v2807 = vmul.f32 %v2729, %v2791
        %v2808 = vmul.f32 %v2732, %v2792
        %v2809 = vmul.f32 %v2737, %v2793
        %v2810 = vmul.f32 %v2740, %v2794
        %v2811 = vmul.f32 %v2745, %v2795
        %v2812 = vmul.f32 %v2748, %v2796
        %v2813 = vmul.f32 %v2753, %v2797
        %v2814 = vmul.f32 %v2756, %v2798
        %v2815 = vmul.f32 %v2761, %v2799
        %v2816 = vmul.f32 %v2764, %v2800
        %v2817 = vmul.f32 %v2769, %v2801
        %v2818 = vmul.f32 %v2772, %v2802
        %v2819 = vmul.f32 %v2777, %v2803
        %v2820 = vmul.f32 %v2780, %v2804
        %v2821 = vmul.f32 %v2785, %v2805
        %v2822 = vmul.f32 %v2788, %v2806
        %v2823 = vpack.c.bf16 %v2808, %v2807
        %v2824 = vpack.c.bf16 %v2810, %v2809
        %v2825 = vpack.c.bf16 %v2812, %v2811
        %v2826 = vpack.c.bf16 %v2814, %v2813
        %v2827 = vpack.c.bf16 %v2816, %v2815
        %v2828 = vpack.c.bf16 %v2818, %v2817
        %v2829 = vpack.c.bf16 %v2820, %v2819
        %v2830 = vpack.c.bf16 %v2822, %v2821
        %2839 = vrot.lane.b32.xlu0 %v2823, 64
        %v2840 = vpop.permute.xlu0 %2839
        %2841 = vrot.lane.b32.xlu0 %v2824, 64
        %v2842 = vpop.permute.xlu0 %2841
        %2843 = vrot.lane.b32.xlu0 %v2825, 64
        %v2844 = vpop.permute.xlu0 %2843
        %2845 = vrot.lane.b32.xlu0 %v2826, 64
        %v2846 = vpop.permute.xlu0 %2845
        %2847 = vrot.lane.b32.xlu0 %v2827, 64
        %v2848 = vpop.permute.xlu0 %2847
        %2849 = vrot.lane.b32.xlu0 %v2828, 64
        %v2850 = vpop.permute.xlu0 %2849
        %2851 = vrot.lane.b32.xlu0 %v2829, 64
        %v2852 = vpop.permute.xlu0 %2851
        %2853 = vrot.lane.b32.xlu0 %v2830, 64
        %v2854 = vpop.permute.xlu0 %2853
        %vm2863 = vcmask 785920
        %2864 = vst.msk [vmem:[#allocation5] sm:$0xff] %vm2863, %v2840
        %2865 = vst.msk [vmem:[#allocation5 + $0x8] sm:$0xff] %vm2863, %v2842
        %2866 = vst.msk [vmem:[#allocation5 + $0x10] sm:$0xff] %vm2863, %v2844
        %2867 = vst.msk [vmem:[#allocation5 + $0x18] sm:$0xff] %vm2863, %v2846
        %2868 = vst.msk [vmem:[#allocation5 + $0x20] sm:$0xff] %vm2863, %v2848
        %2869 = vst.msk [vmem:[#allocation5 + $0x28] sm:$0xff] %vm2863, %v2850
        %2870 = vst.msk [vmem:[#allocation5 + $0x30] sm:$0xff] %vm2863, %v2852
        %2871 = vst.msk [vmem:[#allocation5 + $0x38] sm:$0xff] %vm2863, %v2854
        %v2872 = vld [vmem:[#allocation3 + $0x60] sm:$0xff]
        %v2873 = vld [vmem:[#allocation3 + $0x68] sm:$0xff]
        %v2874 = vld [vmem:[#allocation3 + $0x70] sm:$0xff]
        %v2875 = vld [vmem:[#allocation3 + $0x78] sm:$0xff]
        %v2876 = vld [vmem:[#allocation4 + $0x60] sm:$0xff]
        %v2877 = vld [vmem:[#allocation4 + $0x68] sm:$0xff]
        %v2878 = vld [vmem:[#allocation4 + $0x70] sm:$0xff]
        %v2879 = vld [vmem:[#allocation4 + $0x78] sm:$0xff]
        %2880 = vrot.lane.b32.xlu0 %v1263, 32
        %v2881 = vpop.permute.xlu0 %2880
        %2882 = vrot.lane.b32.xlu0 %v1264, 32
        %v2883 = vpop.permute.xlu0 %2882
        %2884 = vrot.lane.b32.xlu0 %v1265, 32
        %v2885 = vpop.permute.xlu0 %2884
        %2886 = vrot.lane.b32.xlu0 %v1266, 32
        %v2887 = vpop.permute.xlu0 %2886
        %2888 = vrot.lane.b32.xlu0 %v1267, 32
        %v2889 = vpop.permute.xlu0 %2888
        %2890 = vrot.lane.b32.xlu0 %v1268, 32
        %v2891 = vpop.permute.xlu0 %2890
        %2892 = vrot.lane.b32.xlu0 %v1269, 32
        %v2893 = vpop.permute.xlu0 %2892
        %2894 = vrot.lane.b32.xlu0 %v1270, 32
        %v2895 = vpop.permute.xlu0 %2894
        %v2897 = vsel %vm1279, %v2881, 0
        %v2900 = vsel %vm1279, %v2883, 0
        %v2903 = vsel %vm1279, %v2885, 0
        %v2906 = vsel %vm1279, %v2887, 0
        %v2909 = vsel %vm1279, %v2889, 0
        %v2912 = vsel %vm1279, %v2891, 0
        %v2915 = vsel %vm1279, %v2893, 0
        %v2918 = vsel %vm1279, %v2895, 0
        %2920 = vmatprep.subr.bf16.mxu0 %v2873
        %2921 = vmatpush1.bf16.msra.mxu0 %v2872
        %2922 = vmatprep.subr.bf16.mxu0 %v2875
        %2923 = vmatpush1.bf16.msra.mxu0 %v2874
        %2924 = vmatprep.subr.bf16.mxu0 0
        %2925 = vmatpush1.bf16.msra.mxu0 0
        %2926 = vmatprep.subr.bf16.mxu0 0
        %2927 = vmatpush1.bf16.msra.mxu0 0
        %2928 = vmatprep.subr.bf16.mxu0 0
        %2929 = vmatpush1.bf16.msra.mxu0 0
        %2930 = vmatprep.subr.bf16.mxu0 0
        %2931 = vmatpush1.bf16.msra.mxu0 0
        %2932 = vmatprep.subr.bf16.mxu0 0
        %2933 = vmatpush1.bf16.msra.mxu0 0
        %2934 = vmatprep.subr.bf16.mxu0 0
        %2935 = vmatpush1.bf16.msra.mxu0 0
        %2936 = vmatprep.subr.bf16.mxu0 0
        %2937 = vmatpush1.bf16.msra.mxu0 0
        %2938 = vmatprep.subr.bf16.mxu0 0
        %2939 = vmatpush1.bf16.msra.mxu0 0
        %2940 = vmatprep.subr.bf16.mxu0 0
        %2941 = vmatpush1.bf16.msra.mxu0 0
        %2942 = vmatprep.subr.bf16.mxu0 0
        %2943 = vmatpush1.bf16.msra.mxu0 0
        %2944 = vmatprep.subr.bf16.mxu0 0
        %2945 = vmatpush1.bf16.msra.mxu0 0
        %2946 = vmatprep.subr.bf16.mxu0 0
        %2947 = vmatpush1.bf16.msra.mxu0 0
        %2948 = vmatprep.subr.bf16.mxu0 0
        %2949 = vmatpush1.bf16.msra.mxu0 0
        %2950 = vmatprep.subr.bf16.mxu0 0
        %2951 = vmatpush1.bf16.msra.mxu0 0
        %2952 = vmatprep.mubr.bf16.mxu0 0
        %2953 = vmatmul.mubr.bf16.gmra.mrb[0].mxu0 %v2897
        %v2954 = vpop.f32.mrb[0].mxu0
        %v2955 = vadd.f32 0.0, %v2954
        %v2956 = vpop.f32.mrb[0].mxu0
        %v2957 = vadd.f32 0.0, %v2956
        %v2958 = vpop.f32.mrb[0].mxu0
        %v2959 = vadd.f32 0.0, %v2958
        %v2960 = vpop.f32.mrb[0].mxu0
        %v2961 = vadd.f32 0.0, %v2960
        %2962 = vmatprep.mubr.bf16.mxu0 0
        %2963 = vmatmul.mubr.bf16.gmra.mrb[0].mxu0 %v2900
        %v2964 = vpop.f32.mrb[0].mxu0
        %v2965 = vadd.f32 0.0, %v2964
        %v2966 = vpop.f32.mrb[0].mxu0
        %v2967 = vadd.f32 0.0, %v2966
        %v2968 = vpop.f32.mrb[0].mxu0
        %v2969 = vadd.f32 0.0, %v2968
        %v2970 = vpop.f32.mrb[0].mxu0
        %v2971 = vadd.f32 0.0, %v2970
        %2972 = vmatprep.mubr.bf16.mxu0 0
        %2973 = vmatmul.mubr.bf16.gmra.mrb[0].mxu0 %v2903
        %v2974 = vpop.f32.mrb[0].mxu0
        %v2975 = vadd.f32 0.0, %v2974
        %v2976 = vpop.f32.mrb[0].mxu0
        %v2977 = vadd.f32 0.0, %v2976
        %v2978 = vpop.f32.mrb[0].mxu0
        %v2979 = vadd.f32 0.0, %v2978
        %v2980 = vpop.f32.mrb[0].mxu0
        %v2981 = vadd.f32 0.0, %v2980
        %2982 = vmatprep.mubr.bf16.mxu0 0
        %2983 = vmatmul.mubr.bf16.gmra.mrb[0].mxu0 %v2906
        %v2984 = vpop.f32.mrb[0].mxu0
        %v2985 = vadd.f32 0.0, %v2984
        %v2986 = vpop.f32.mrb[0].mxu0
        %v2987 = vadd.f32 0.0, %v2986
        %v2988 = vpop.f32.mrb[0].mxu0
        %v2989 = vadd.f32 0.0, %v2988
        %v2990 = vpop.f32.mrb[0].mxu0
        %v2991 = vadd.f32 0.0, %v2990
        %2992 = vmatprep.mubr.bf16.mxu0 0
        %2993 = vmatmul.mubr.bf16.gmra.mrb[0].mxu0 %v2909
        %v2994 = vpop.f32.mrb[0].mxu0
        %v2995 = vadd.f32 0.0, %v2994
        %v2996 = vpop.f32.mrb[0].mxu0
        %v2997 = vadd.f32 0.0, %v2996
        %v2998 = vpop.f32.mrb[0].mxu0
        %v2999 = vadd.f32 0.0, %v2998
        %v3000 = vpop.f32.mrb[0].mxu0
        %v3001 = vadd.f32 0.0, %v3000
        %3002 = vmatprep.mubr.bf16.mxu0 0
        %3003 = vmatmul.mubr.bf16.gmra.mrb[0].mxu0 %v2912
        %v3004 = vpop.f32.mrb[0].mxu0
        %v3005 = vadd.f32 0.0, %v3004
        %v3006 = vpop.f32.mrb[0].mxu0
        %v3007 = vadd.f32 0.0, %v3006
        %v3008 = vpop.f32.mrb[0].mxu0
        %v3009 = vadd.f32 0.0, %v3008
        %v3010 = vpop.f32.mrb[0].mxu0
        %v3011 = vadd.f32 0.0, %v3010
        %3012 = vmatprep.mubr.bf16.mxu0 0
        %3013 = vmatmul.mubr.bf16.gmra.mrb[0].mxu0 %v2915
        %v3014 = vpop.f32.mrb[0].mxu0
        %v3015 = vadd.f32 0.0, %v3014
        %v3016 = vpop.f32.mrb[0].mxu0
        %v3017 = vadd.f32 0.0, %v3016
        %v3018 = vpop.f32.mrb[0].mxu0
        %v3019 = vadd.f32 0.0, %v3018
        %v3020 = vpop.f32.mrb[0].mxu0
        %v3021 = vadd.f32 0.0, %v3020
        %3022 = vmatprep.mubr.bf16.mxu0 0
        %3023 = vmatmul.mubr.bf16.gmra.mrb[0].mxu0 %v2918
        %v3024 = vpop.f32.mrb[0].mxu0
        %v3025 = vadd.f32 0.0, %v3024
        %v3026 = vpop.f32.mrb[0].mxu0
        %v3027 = vadd.f32 0.0, %v3026
        %v3028 = vpop.f32.mrb[0].mxu0
        %v3029 = vadd.f32 0.0, %v3028
        %v3030 = vpop.f32.mrb[0].mxu0
        %v3031 = vadd.f32 0.0, %v3030
        %3032 = vdwg.mxu0
        %v3033 = vmax.f32 %v2955, %v2957
        %3034 = vmax.xlane.f32.xlu0 %v3033
        %v3035 = vpop.xlane.xlu0 %3034
        %v3036 = vmax.f32 %v2959, %v2961
        %3037 = vmax.xlane.f32.xlu0 %v3036
        %v3038 = vpop.xlane.xlu0 %3037
        %v3039 = vmax.f32 %v2965, %v2967
        %3040 = vmax.xlane.f32.xlu0 %v3039
        %v3041 = vpop.xlane.xlu0 %3040
        %v3042 = vmax.f32 %v2969, %v2971
        %3043 = vmax.xlane.f32.xlu0 %v3042
        %v3044 = vpop.xlane.xlu0 %3043
        %v3045 = vmax.f32 %v2975, %v2977
        %3046 = vmax.xlane.f32.xlu0 %v3045
        %v3047 = vpop.xlane.xlu0 %3046
        %v3048 = vmax.f32 %v2979, %v2981
        %3049 = vmax.xlane.f32.xlu0 %v3048
        %v3050 = vpop.xlane.xlu0 %3049
        %v3051 = vmax.f32 %v2985, %v2987
        %3052 = vmax.xlane.f32.xlu0 %v3051
        %v3053 = vpop.xlane.xlu0 %3052
        %v3054 = vmax.f32 %v2989, %v2991
        %3055 = vmax.xlane.f32.xlu0 %v3054
        %v3056 = vpop.xlane.xlu0 %3055
        %v3057 = vmax.f32 %v2995, %v2997
        %3058 = vmax.xlane.f32.xlu0 %v3057
        %v3059 = vpop.xlane.xlu0 %3058
        %v3060 = vmax.f32 %v2999, %v3001
        %3061 = vmax.xlane.f32.xlu0 %v3060
        %v3062 = vpop.xlane.xlu0 %3061
        %v3063 = vmax.f32 %v3005, %v3007
        %3064 = vmax.xlane.f32.xlu0 %v3063
        %v3065 = vpop.xlane.xlu0 %3064
        %v3066 = vmax.f32 %v3009, %v3011
        %3067 = vmax.xlane.f32.xlu0 %v3066
        %v3068 = vpop.xlane.xlu0 %3067
        %v3069 = vmax.f32 %v3015, %v3017
        %3070 = vmax.xlane.f32.xlu0 %v3069
        %v3071 = vpop.xlane.xlu0 %3070
        %v3072 = vmax.f32 %v3019, %v3021
        %3073 = vmax.xlane.f32.xlu0 %v3072
        %v3074 = vpop.xlane.xlu0 %3073
        %v3075 = vmax.f32 %v3025, %v3027
        %3076 = vmax.xlane.f32.xlu0 %v3075
        %v3077 = vpop.xlane.xlu0 %3076
        %v3078 = vmax.f32 %v3029, %v3031
        %3079 = vmax.xlane.f32.xlu0 %v3078
        %v3080 = vpop.xlane.xlu0 %3079
        %v3081 = vsub.f32 %v2955, %v3035
        %v3082 = vsub.f32 %v2957, %v3035
        %v3083 = vsub.f32 %v2959, %v3038
        %v3084 = vsub.f32 %v2961, %v3038
        %v3085 = vsub.f32 %v2965, %v3041
        %v3086 = vsub.f32 %v2967, %v3041
        %v3087 = vsub.f32 %v2969, %v3044
        %v3088 = vsub.f32 %v2971, %v3044
        %v3089 = vsub.f32 %v2975, %v3047
        %v3090 = vsub.f32 %v2977, %v3047
        %v3091 = vsub.f32 %v2979, %v3050
        %v3092 = vsub.f32 %v2981, %v3050
        %v3093 = vsub.f32 %v2985, %v3053
        %v3094 = vsub.f32 %v2987, %v3053
        %v3095 = vsub.f32 %v2989, %v3056
        %v3096 = vsub.f32 %v2991, %v3056
        %v3097 = vsub.f32 %v2995, %v3059
        %v3098 = vsub.f32 %v2997, %v3059
        %v3099 = vsub.f32 %v2999, %v3062
        %v3100 = vsub.f32 %v3001, %v3062
        %v3101 = vsub.f32 %v3005, %v3065
        %v3102 = vsub.f32 %v3007, %v3065
        %v3103 = vsub.f32 %v3009, %v3068
        %v3104 = vsub.f32 %v3011, %v3068
        %v3105 = vsub.f32 %v3015, %v3071
        %v3106 = vsub.f32 %v3017, %v3071
        %v3107 = vsub.f32 %v3019, %v3074
        %v3108 = vsub.f32 %v3021, %v3074
        %v3109 = vsub.f32 %v3025, %v3077
        %v3110 = vsub.f32 %v3027, %v3077
        %v3111 = vsub.f32 %v3029, %v3080
        %v3112 = vsub.f32 %v3031, %v3080
        %v3113 = vmul.f32 %v3081, 1.442695
        %v3114 = vpow.pop %v3113
        %v3115 = vmul.f32 %v3082, 1.442695
        %v3116 = vpow.pop %v3115
        %v3117 = vmul.f32 %v3083, 1.442695
        %v3118 = vpow.pop %v3117
        %v3119 = vmul.f32 %v3084, 1.442695
        %v3120 = vpow.pop %v3119
        %v3121 = vmul.f32 %v3085, 1.442695
        %v3122 = vpow.pop %v3121
        %v3123 = vmul.f32 %v3086, 1.442695
        %v3124 = vpow.pop %v3123
        %v3125 = vmul.f32 %v3087, 1.442695
        %v3126 = vpow.pop %v3125
        %v3127 = vmul.f32 %v3088, 1.442695
        %v3128 = vpow.pop %v3127
        %v3129 = vmul.f32 %v3089, 1.442695
        %v3130 = vpow.pop %v3129
        %v3131 = vmul.f32 %v3090, 1.442695
        %v3132 = vpow.pop %v3131
        %v3133 = vmul.f32 %v3091, 1.442695
        %v3134 = vpow.pop %v3133
        %v3135 = vmul.f32 %v3092, 1.442695
        %v3136 = vpow.pop %v3135
        %v3137 = vmul.f32 %v3093, 1.442695
        %v3138 = vpow.pop %v3137
        %v3139 = vmul.f32 %v3094, 1.442695
        %v3140 = vpow.pop %v3139
        %v3141 = vmul.f32 %v3095, 1.442695
        %v3142 = vpow.pop %v3141
        %v3143 = vmul.f32 %v3096, 1.442695
        %v3144 = vpow.pop %v3143
        %v3145 = vmul.f32 %v3097, 1.442695
        %v3146 = vpow.pop %v3145
        %v3147 = vmul.f32 %v3098, 1.442695
        %v3148 = vpow.pop %v3147
        %v3149 = vmul.f32 %v3099, 1.442695
        %v3150 = vpow.pop %v3149
        %v3151 = vmul.f32 %v3100, 1.442695
        %v3152 = vpow.pop %v3151
        %v3153 = vmul.f32 %v3101, 1.442695
        %v3154 = vpow.pop %v3153
        %v3155 = vmul.f32 %v3102, 1.442695
        %v3156 = vpow.pop %v3155
        %v3157 = vmul.f32 %v3103, 1.442695
        %v3158 = vpow.pop %v3157
        %v3159 = vmul.f32 %v3104, 1.442695
        %v3160 = vpow.pop %v3159
        %v3161 = vmul.f32 %v3105, 1.442695
        %v3162 = vpow.pop %v3161
        %v3163 = vmul.f32 %v3106, 1.442695
        %v3164 = vpow.pop %v3163
        %v3165 = vmul.f32 %v3107, 1.442695
        %v3166 = vpow.pop %v3165
        %v3167 = vmul.f32 %v3108, 1.442695
        %v3168 = vpow.pop %v3167
        %v3169 = vmul.f32 %v3109, 1.442695
        %v3170 = vpow.pop %v3169
        %v3171 = vmul.f32 %v3110, 1.442695
        %v3172 = vpow.pop %v3171
        %v3173 = vmul.f32 %v3111, 1.442695
        %v3174 = vpow.pop %v3173
        %v3175 = vmul.f32 %v3112, 1.442695
        %v3176 = vpow.pop %v3175
        %v3177 = vadd.f32 %v3114, %v3116
        %3178 = vadd.xlane.f32.xlu0 %v3177
        %v3179 = vpop.xlane.xlu0 %3178
        %v3180 = vadd.f32 %v3118, %v3120
        %3181 = vadd.xlane.f32.xlu0 %v3180
        %v3182 = vpop.xlane.xlu0 %3181
        %v3183 = vadd.f32 %v3122, %v3124
        %3184 = vadd.xlane.f32.xlu0 %v3183
        %v3185 = vpop.xlane.xlu0 %3184
        %v3186 = vadd.f32 %v3126, %v3128
        %3187 = vadd.xlane.f32.xlu0 %v3186
        %v3188 = vpop.xlane.xlu0 %3187
        %v3189 = vadd.f32 %v3130, %v3132
        %3190 = vadd.xlane.f32.xlu0 %v3189
        %v3191 = vpop.xlane.xlu0 %3190
        %v3192 = vadd.f32 %v3134, %v3136
        %3193 = vadd.xlane.f32.xlu0 %v3192
        %v3194 = vpop.xlane.xlu0 %3193
        %v3195 = vadd.f32 %v3138, %v3140
        %3196 = vadd.xlane.f32.xlu0 %v3195
        %v3197 = vpop.xlane.xlu0 %3196
        %v3198 = vadd.f32 %v3142, %v3144
        %3199 = vadd.xlane.f32.xlu0 %v3198
        %v3200 = vpop.xlane.xlu0 %3199
        %v3201 = vadd.f32 %v3146, %v3148
        %3202 = vadd.xlane.f32.xlu0 %v3201
        %v3203 = vpop.xlane.xlu0 %3202
        %v3204 = vadd.f32 %v3150, %v3152
        %3205 = vadd.xlane.f32.xlu0 %v3204
        %v3206 = vpop.xlane.xlu0 %3205
        %v3207 = vadd.f32 %v3154, %v3156
        %3208 = vadd.xlane.f32.xlu0 %v3207
        %v3209 = vpop.xlane.xlu0 %3208
        %v3210 = vadd.f32 %v3158, %v3160
        %3211 = vadd.xlane.f32.xlu0 %v3210
        %v3212 = vpop.xlane.xlu0 %3211
        %v3213 = vadd.f32 %v3162, %v3164
        %3214 = vadd.xlane.f32.xlu0 %v3213
        %v3215 = vpop.xlane.xlu0 %3214
        %v3216 = vadd.f32 %v3166, %v3168
        %3217 = vadd.xlane.f32.xlu0 %v3216
        %v3218 = vpop.xlane.xlu0 %3217
        %v3219 = vadd.f32 %v3170, %v3172
        %3220 = vadd.xlane.f32.xlu0 %v3219
        %v3221 = vpop.xlane.xlu0 %3220
        %v3222 = vadd.f32 %v3174, %v3176
        %3223 = vadd.xlane.f32.xlu0 %v3222
        %v3224 = vpop.xlane.xlu0 %3223
        %v3225 = vpack.c.bf16 %v3118, %v3114
        %v3226 = vpack.c.bf16 %v3120, %v3116
        %v3227 = vpack.c.bf16 %v3126, %v3122
        %v3228 = vpack.c.bf16 %v3128, %v3124
        %v3229 = vpack.c.bf16 %v3134, %v3130
        %v3230 = vpack.c.bf16 %v3136, %v3132
        %v3231 = vpack.c.bf16 %v3142, %v3138
        %v3232 = vpack.c.bf16 %v3144, %v3140
        %v3233 = vpack.c.bf16 %v3150, %v3146
        %v3234 = vpack.c.bf16 %v3152, %v3148
        %v3235 = vpack.c.bf16 %v3158, %v3154
        %v3236 = vpack.c.bf16 %v3160, %v3156
        %v3237 = vpack.c.bf16 %v3166, %v3162
        %v3238 = vpack.c.bf16 %v3168, %v3164
        %v3239 = vpack.c.bf16 %v3174, %v3170
        %v3240 = vpack.c.bf16 %v3176, %v3172
        %3241 = vmatprep.subr.bf16.mxu0 %v2877
        %3242 = vmatpush1.bf16.xpose.msra.mxu0 %v2876
        %3243 = vmatprep.subr.bf16.mxu0 %v2879
        %3244 = vmatpush1.bf16.xpose.msra.mxu0 %v2878
        %3245 = vmatprep.subr.bf16.mxu0 0
        %3246 = vmatpush1.bf16.xpose.msra.mxu0 0
        %3247 = vmatprep.subr.bf16.mxu0 0
        %3248 = vmatpush1.bf16.xpose.msra.mxu0 0
        %3249 = vmatprep.subr.bf16.mxu0 0
        %3250 = vmatpush1.bf16.xpose.msra.mxu0 0
        %3251 = vmatprep.subr.bf16.mxu0 0
        %3252 = vmatpush1.bf16.xpose.msra.mxu0 0
        %3253 = vmatprep.subr.bf16.mxu0 0
        %3254 = vmatpush1.bf16.xpose.msra.mxu0 0
        %3255 = vmatprep.subr.bf16.mxu0 0
        %3256 = vmatpush1.bf16.xpose.msra.mxu0 0
        %3257 = vmatprep.subr.bf16.mxu0 0
        %3258 = vmatpush1.bf16.xpose.msra.mxu0 0
        %3259 = vmatprep.subr.bf16.mxu0 0
        %3260 = vmatpush1.bf16.xpose.msra.mxu0 0
        %3261 = vmatprep.subr.bf16.mxu0 0
        %3262 = vmatpush1.bf16.xpose.msra.mxu0 0
        %3263 = vmatprep.subr.bf16.mxu0 0
        %3264 = vmatpush1.bf16.xpose.msra.mxu0 0
        %3265 = vmatprep.subr.bf16.mxu0 0
        %3266 = vmatpush1.bf16.xpose.msra.mxu0 0
        %3267 = vmatprep.subr.bf16.mxu0 0
        %3268 = vmatpush1.bf16.xpose.msra.mxu0 0
        %3269 = vmatprep.subr.bf16.mxu0 0
        %3270 = vmatpush1.bf16.xpose.msra.mxu0 0
        %3271 = vmatprep.subr.bf16.mxu0 0
        %3272 = vmatpush1.bf16.xpose.msra.mxu0 0
        %3273 = vmatprep.mubr.bf16.mxu0 %v3226
        %3274 = vmatmul.mubr.bf16.gmra.mrb[0].mxu0 %v3225
        %v3275 = vpop.f32.mrb[0].mxu0
        %v3276 = vadd.f32 0.0, %v3275
        %v3277 = vpop.f32.mrb[0].mxu0
        %v3278 = vpop.f32.mrb[0].mxu0
        %v3279 = vadd.f32 0.0, %v3278
        %v3280 = vpop.f32.mrb[0].mxu0
        %3281 = vmatprep.mubr.bf16.mxu0 %v3228
        %3282 = vmatmul.mubr.bf16.gmra.mrb[0].mxu0 %v3227
        %v3283 = vpop.f32.mrb[0].mxu0
        %v3284 = vadd.f32 0.0, %v3283
        %v3285 = vpop.f32.mrb[0].mxu0
        %v3286 = vpop.f32.mrb[0].mxu0
        %v3287 = vadd.f32 0.0, %v3286
        %v3288 = vpop.f32.mrb[0].mxu0
        %3289 = vmatprep.mubr.bf16.mxu0 %v3230
        %3290 = vmatmul.mubr.bf16.gmra.mrb[0].mxu0 %v3229
        %v3291 = vpop.f32.mrb[0].mxu0
        %v3292 = vadd.f32 0.0, %v3291
        %v3293 = vpop.f32.mrb[0].mxu0
        %v3294 = vpop.f32.mrb[0].mxu0
        %v3295 = vadd.f32 0.0, %v3294
        %v3296 = vpop.f32.mrb[0].mxu0
        %3297 = vmatprep.mubr.bf16.mxu0 %v3232
        %3298 = vmatmul.mubr.bf16.gmra.mrb[0].mxu0 %v3231
        %v3299 = vpop.f32.mrb[0].mxu0
        %v3300 = vadd.f32 0.0, %v3299
        %v3301 = vpop.f32.mrb[0].mxu0
        %v3302 = vpop.f32.mrb[0].mxu0
        %v3303 = vadd.f32 0.0, %v3302
        %v3304 = vpop.f32.mrb[0].mxu0
        %3305 = vmatprep.mubr.bf16.mxu0 %v3234
        %3306 = vmatmul.mubr.bf16.gmra.mrb[0].mxu0 %v3233
        %v3307 = vpop.f32.mrb[0].mxu0
        %v3308 = vadd.f32 0.0, %v3307
        %v3309 = vpop.f32.mrb[0].mxu0
        %v3310 = vpop.f32.mrb[0].mxu0
        %v3311 = vadd.f32 0.0, %v3310
        %v3312 = vpop.f32.mrb[0].mxu0
        %3313 = vmatprep.mubr.bf16.mxu0 %v3236
        %3314 = vmatmul.mubr.bf16.gmra.mrb[0].mxu0 %v3235
        %v3315 = vpop.f32.mrb[0].mxu0
        %v3316 = vadd.f32 0.0, %v3315
        %v3317 = vpop.f32.mrb[0].mxu0
        %v3318 = vpop.f32.mrb[0].mxu0
        %v3319 = vadd.f32 0.0, %v3318
        %v3320 = vpop.f32.mrb[0].mxu0
        %3321 = vmatprep.mubr.bf16.mxu0 %v3238
        %3322 = vmatmul.mubr.bf16.gmra.mrb[0].mxu0 %v3237
        %v3323 = vpop.f32.mrb[0].mxu0
        %v3324 = vadd.f32 0.0, %v3323
        %v3325 = vpop.f32.mrb[0].mxu0
        %v3326 = vpop.f32.mrb[0].mxu0
        %v3327 = vadd.f32 0.0, %v3326
        %v3328 = vpop.f32.mrb[0].mxu0
        %3329 = vmatprep.mubr.bf16.mxu0 %v3240
        %3330 = vmatmul.mubr.bf16.gmra.mrb[0].mxu0 %v3239
        %v3331 = vpop.f32.mrb[0].mxu0
        %v3332 = vadd.f32 0.0, %v3331
        %v3333 = vpop.f32.mrb[0].mxu0
        %v3334 = vpop.f32.mrb[0].mxu0
        %v3335 = vadd.f32 0.0, %v3334
        %v3336 = vpop.f32.mrb[0].mxu0
        %3337 = vdwg.mxu0
        %v3338 = vrcp.pop %v3179
        %v3339 = vrcp.pop %v3182
        %v3340 = vrcp.pop %v3185
        %v3341 = vrcp.pop %v3188
        %v3342 = vrcp.pop %v3191
        %v3343 = vrcp.pop %v3194
        %v3344 = vrcp.pop %v3197
        %v3345 = vrcp.pop %v3200
        %v3346 = vrcp.pop %v3203
        %v3347 = vrcp.pop %v3206
        %v3348 = vrcp.pop %v3209
        %v3349 = vrcp.pop %v3212
        %v3350 = vrcp.pop %v3215
        %v3351 = vrcp.pop %v3218
        %v3352 = vrcp.pop %v3221
        %v3353 = vrcp.pop %v3224
        %v3354 = vmul.f32 %v3276, %v3338
        %v3355 = vmul.f32 %v3279, %v3339
        %v3356 = vmul.f32 %v3284, %v3340
        %v3357 = vmul.f32 %v3287, %v3341
        %v3358 = vmul.f32 %v3292, %v3342
        %v3359 = vmul.f32 %v3295, %v3343
        %v3360 = vmul.f32 %v3300, %v3344
        %v3361 = vmul.f32 %v3303, %v3345
        %v3362 = vmul.f32 %v3308, %v3346
        %v3363 = vmul.f32 %v3311, %v3347
        %v3364 = vmul.f32 %v3316, %v3348
        %v3365 = vmul.f32 %v3319, %v3349
        %v3366 = vmul.f32 %v3324, %v3350
        %v3367 = vmul.f32 %v3327, %v3351
        %v3368 = vmul.f32 %v3332, %v3352
        %v3369 = vmul.f32 %v3335, %v3353
        %v3370 = vpack.c.bf16 %v3355, %v3354
        %v3371 = vpack.c.bf16 %v3357, %v3356
        %v3372 = vpack.c.bf16 %v3359, %v3358
        %v3373 = vpack.c.bf16 %v3361, %v3360
        %v3374 = vpack.c.bf16 %v3363, %v3362
        %v3375 = vpack.c.bf16 %v3365, %v3364
        %v3376 = vpack.c.bf16 %v3367, %v3366
        %v3377 = vpack.c.bf16 %v3369, %v3368
        %3386 = vrot.lane.b32.xlu0 %v3370, 96
        %v3387 = vpop.permute.xlu0 %3386
        %3388 = vrot.lane.b32.xlu0 %v3371, 96
        %v3389 = vpop.permute.xlu0 %3388
        %3390 = vrot.lane.b32.xlu0 %v3372, 96
        %v3391 = vpop.permute.xlu0 %3390
        %3392 = vrot.lane.b32.xlu0 %v3373, 96
        %v3393 = vpop.permute.xlu0 %3392
        %3394 = vrot.lane.b32.xlu0 %v3374, 96
        %v3395 = vpop.permute.xlu0 %3394
        %3396 = vrot.lane.b32.xlu0 %v3375, 96
        %v3397 = vpop.permute.xlu0 %3396
        %3398 = vrot.lane.b32.xlu0 %v3376, 96
        %v3399 = vpop.permute.xlu0 %3398
        %3400 = vrot.lane.b32.xlu0 %v3377, 96
        %v3401 = vpop.permute.xlu0 %3400
        %vm3410 = vcmask 1048320
        %3411 = vst.msk [vmem:[#allocation5] sm:$0xff] %vm3410, %v3387
        %3412 = vst.msk [vmem:[#allocation5 + $0x8] sm:$0xff] %vm3410, %v3389
        %3413 = vst.msk [vmem:[#allocation5 + $0x10] sm:$0xff] %vm3410, %v3391
        %3414 = vst.msk [vmem:[#allocation5 + $0x18] sm:$0xff] %vm3410, %v3393
        %3415 = vst.msk [vmem:[#allocation5 + $0x20] sm:$0xff] %vm3410, %v3395
        %3416 = vst.msk [vmem:[#allocation5 + $0x28] sm:$0xff] %vm3410, %v3397
        %3417 = vst.msk [vmem:[#allocation5 + $0x30] sm:$0xff] %vm3410, %v3399
        %3418 = vst.msk [vmem:[#allocation5 + $0x38] sm:$0xff] %vm3410, %v3401
        %v3419 = vld [vmem:[#allocation11] sm:$0xf]
        %v3420 = vld [vmem:[#allocation11 + $0x4] sm:$0xf]
        %v3421 = vld [vmem:[#allocation11 + $0x8] sm:$0xf]
        %v3422 = vld [vmem:[#allocation11 + $0xc] sm:$0xf]
        %v3423 = vld [vmem:[#allocation11 + $0x10] sm:$0xf]
        %v3424 = vld [vmem:[#allocation11 + $0x14] sm:$0xf]
        %v3425 = vld [vmem:[#allocation11 + $0x18] sm:$0xf]
        %v3426 = vld [vmem:[#allocation11 + $0x1c] sm:$0xf]
        %v3427 = vld [vmem:[#allocation11 + $0x20] sm:$0xf]
        %v3428 = vld [vmem:[#allocation11 + $0x24] sm:$0xf]
        %v3429 = vld [vmem:[#allocation11 + $0x28] sm:$0xf]
        %v3430 = vld [vmem:[#allocation11 + $0x2c] sm:$0xf]
        %v3431 = vld [vmem:[#allocation11 + $0x30] sm:$0xf]
        %v3432 = vld [vmem:[#allocation11 + $0x34] sm:$0xf]
        %v3433 = vld [vmem:[#allocation11 + $0x38] sm:$0xf]
        %v3434 = vld [vmem:[#allocation11 + $0x3c] sm:$0xf]
        %v3435 = vld [vmem:[#allocation5] sm:$0xff]
        %v3436 = vld [vmem:[#allocation5 + $0x8] sm:$0xff]
        %v3437 = vld [vmem:[#allocation5 + $0x10] sm:$0xff]
        %v3438 = vld [vmem:[#allocation5 + $0x18] sm:$0xff]
        %v3439 = vld [vmem:[#allocation5 + $0x20] sm:$0xff]
        %v3440 = vld [vmem:[#allocation5 + $0x28] sm:$0xff]
        %v3441 = vld [vmem:[#allocation5 + $0x30] sm:$0xff]
        %v3442 = vld [vmem:[#allocation5 + $0x38] sm:$0xff]
        %v3443 = vld [vmem:[%s7] sm:$0xff]
        %v3444 = vld [vmem:[%s7 + $0x8] sm:$0xff]
        %v3445 = vld [vmem:[%s7 + $0x10] sm:$0xff]
        %v3446 = vld [vmem:[%s7 + $0x18] sm:$0xff]
        %v3447 = vld [vmem:[%s7 + $0x20] sm:$0xff]
        %v3448 = vld [vmem:[%s7 + $0x28] sm:$0xff]
        %v3449 = vld [vmem:[%s7 + $0x30] sm:$0xff]
        %v3450 = vld [vmem:[%s7 + $0x38] sm:$0xff]
        %v3451 = vld [vmem:[%s7 + $0x40] sm:$0xff]
        %v3452 = vld [vmem:[%s7 + $0x48] sm:$0xff]
        %v3453 = vld [vmem:[%s7 + $0x50] sm:$0xff]
        %v3454 = vld [vmem:[%s7 + $0x58] sm:$0xff]
        %v3455 = vld [vmem:[%s7 + $0x60] sm:$0xff]
        %v3456 = vld [vmem:[%s7 + $0x68] sm:$0xff]
        %v3457 = vld [vmem:[%s7 + $0x70] sm:$0xff]
        %v3458 = vld [vmem:[%s7 + $0x78] sm:$0xff]
        %3460 = vset.pattern.permute.xlu0 0
        %3461 = vperm.xlu0 %3460, %v3443
        %v3462 = vpop.permute.xlu0 %3461
        %3465 = vset.pattern.permute.xlu0 0
        %3466 = vperm.xlu0 %3465, %v3444
        %v3467 = vpop.permute.xlu0 %3466
        %3470 = vset.pattern.permute.xlu0 0
        %3471 = vperm.xlu0 %3470, %v3445
        %v3472 = vpop.permute.xlu0 %3471
        %3475 = vset.pattern.permute.xlu0 0
        %3476 = vperm.xlu0 %3475, %v3446
        %v3477 = vpop.permute.xlu0 %3476
        %3480 = vset.pattern.permute.xlu0 0
        %3481 = vperm.xlu0 %3480, %v3447
        %v3482 = vpop.permute.xlu0 %3481
        %3485 = vset.pattern.permute.xlu0 0
        %3486 = vperm.xlu0 %3485, %v3448
        %v3487 = vpop.permute.xlu0 %3486
        %3490 = vset.pattern.permute.xlu0 0
        %3491 = vperm.xlu0 %3490, %v3449
        %v3492 = vpop.permute.xlu0 %3491
        %3495 = vset.pattern.permute.xlu0 0
        %3496 = vperm.xlu0 %3495, %v3450
        %v3497 = vpop.permute.xlu0 %3496
        %3500 = vset.pattern.permute.xlu0 0
        %3501 = vperm.xlu0 %3500, %v3451
        %v3502 = vpop.permute.xlu0 %3501
        %3505 = vset.pattern.permute.xlu0 0
        %3506 = vperm.xlu0 %3505, %v3452
        %v3507 = vpop.permute.xlu0 %3506
        %3510 = vset.pattern.permute.xlu0 0
        %3511 = vperm.xlu0 %3510, %v3453
        %v3512 = vpop.permute.xlu0 %3511
        %3515 = vset.pattern.permute.xlu0 0
        %3516 = vperm.xlu0 %3515, %v3454
        %v3517 = vpop.permute.xlu0 %3516
        %3520 = vset.pattern.permute.xlu0 0
        %3521 = vperm.xlu0 %3520, %v3455
        %v3522 = vpop.permute.xlu0 %3521
        %3525 = vset.pattern.permute.xlu0 0
        %3526 = vperm.xlu0 %3525, %v3456
        %v3527 = vpop.permute.xlu0 %3526
        %3530 = vset.pattern.permute.xlu0 0
        %3531 = vperm.xlu0 %3530, %v3457
        %v3532 = vpop.permute.xlu0 %3531
        %3535 = vset.pattern.permute.xlu0 0
        %3536 = vperm.xlu0 %3535, %v3458
        %v3537 = vpop.permute.xlu0 %3536
        %v3555 = vunpack.c.l.b16 %v3419
        %v3556 = vunpack.c.l.b16 %v3420
        %v3557 = vunpack.c.l.b16 %v3421
        %v3558 = vunpack.c.l.b16 %v3422
        %v3559 = vunpack.c.l.b16 %v3423
        %v3560 = vunpack.c.l.b16 %v3424
        %v3561 = vunpack.c.l.b16 %v3425
        %v3562 = vunpack.c.l.b16 %v3426
        %v3563 = vunpack.c.l.b16 %v3427
        %v3564 = vunpack.c.l.b16 %v3428
        %v3565 = vunpack.c.l.b16 %v3429
        %v3566 = vunpack.c.l.b16 %v3430
        %v3567 = vunpack.c.l.b16 %v3431
        %v3568 = vunpack.c.l.b16 %v3432
        %v3569 = vunpack.c.l.b16 %v3433
        %v3570 = vunpack.c.l.b16 %v3434
        %v3571 = vpack.c.b16 %v3556, %v3555
        %v3572 = vpack.c.b16 %v3558, %v3557
        %v3573 = vpack.c.b16 %v3560, %v3559
        %v3574 = vpack.c.b16 %v3562, %v3561
        %v3575 = vpack.c.b16 %v3564, %v3563
        %v3576 = vpack.c.b16 %v3566, %v3565
        %v3577 = vpack.c.b16 %v3568, %v3567
        %v3578 = vpack.c.b16 %v3570, %v3569
        %3587 = vmatprep.subr.bf16.mxu0 0
        %3588 = vmatpush1.bf16.xpose.msra.mxu0 %v3435
        %3589 = vmatprep.subr.bf16.mxu0 0
        %3590 = vmatpush1.bf16.xpose.msra.mxu0 %v3436
        %3591 = vmatprep.subr.bf16.mxu0 0
        %3592 = vmatpush1.bf16.xpose.msra.mxu0 %v3437
        %3593 = vmatprep.subr.bf16.mxu0 0
        %3594 = vmatpush1.bf16.xpose.msra.mxu0 %v3438
        %3595 = vmatprep.subr.bf16.mxu0 0
        %3596 = vmatpush1.bf16.xpose.msra.mxu0 %v3439
        %3597 = vmatprep.subr.bf16.mxu0 0
        %3598 = vmatpush1.bf16.xpose.msra.mxu0 %v3440
        %3599 = vmatprep.subr.bf16.mxu0 0
        %3600 = vmatpush1.bf16.xpose.msra.mxu0 %v3441
        %3601 = vmatprep.subr.bf16.mxu0 0
        %3602 = vmatpush1.bf16.xpose.msra.mxu0 %v3442
        %3603 = vmatprep.subr.bf16.mxu0 0
        %3604 = vmatpush1.bf16.xpose.msra.mxu0 0
        %3605 = vmatprep.subr.bf16.mxu0 0
        %3606 = vmatpush1.bf16.xpose.msra.mxu0 0
        %3607 = vmatprep.subr.bf16.mxu0 0
        %3608 = vmatpush1.bf16.xpose.msra.mxu0 0
        %3609 = vmatprep.subr.bf16.mxu0 0
        %3610 = vmatpush1.bf16.xpose.msra.mxu0 0
        %3611 = vmatprep.subr.bf16.mxu0 0
        %3612 = vmatpush1.bf16.xpose.msra.mxu0 0
        %3613 = vmatprep.subr.bf16.mxu0 0
        %3614 = vmatpush1.bf16.xpose.msra.mxu0 0
        %3615 = vmatprep.subr.bf16.mxu0 0
        %3616 = vmatpush1.bf16.xpose.msra.mxu0 0
        %3617 = vmatprep.subr.bf16.mxu0 0
        %3618 = vmatpush1.bf16.xpose.msra.mxu0 0
        %3619 = vmatprep.mubr.bf16.mxu0 0
        %3620 = vmatmul.mubr.bf16.gmra.mrb[0].mxu0 %v3571
        %v3621 = vpop.f32.mrb[0].mxu0
        %v3622 = vadd.f32 %v3462, %v3621
        %v3623 = vpop.f32.mrb[0].mxu0
        %v3624 = vpop.f32.mrb[0].mxu0
        %v3625 = vadd.f32 %v3467, %v3624
        %v3626 = vpop.f32.mrb[0].mxu0
        %3627 = vmatprep.mubr.bf16.mxu0 0
        %3628 = vmatmul.mubr.bf16.gmra.mrb[0].mxu0 %v3572
        %v3629 = vpop.f32.mrb[0].mxu0
        %v3630 = vadd.f32 %v3472, %v3629
        %v3631 = vpop.f32.mrb[0].mxu0
        %v3632 = vpop.f32.mrb[0].mxu0
        %v3633 = vadd.f32 %v3477, %v3632
        %v3634 = vpop.f32.mrb[0].mxu0
        %3635 = vmatprep.mubr.bf16.mxu0 0
        %3636 = vmatmul.mubr.bf16.gmra.mrb[0].mxu0 %v3573
        %v3637 = vpop.f32.mrb[0].mxu0
        %v3638 = vadd.f32 %v3482, %v3637
        %v3639 = vpop.f32.mrb[0].mxu0
        %v3640 = vpop.f32.mrb[0].mxu0
        %v3641 = vadd.f32 %v3487, %v3640
        %v3642 = vpop.f32.mrb[0].mxu0
        %3643 = vmatprep.mubr.bf16.mxu0 0
        %3644 = vmatmul.mubr.bf16.gmra.mrb[0].mxu0 %v3574
        %v3645 = vpop.f32.mrb[0].mxu0
        %v3646 = vadd.f32 %v3492, %v3645
        %v3647 = vpop.f32.mrb[0].mxu0
        %v3648 = vpop.f32.mrb[0].mxu0
        %v3649 = vadd.f32 %v3497, %v3648
        %v3650 = vpop.f32.mrb[0].mxu0
        %3651 = vmatprep.mubr.bf16.mxu0 0
        %3652 = vmatmul.mubr.bf16.gmra.mrb[0].mxu0 %v3575
        %v3653 = vpop.f32.mrb[0].mxu0
        %v3654 = vadd.f32 %v3502, %v3653
        %v3655 = vpop.f32.mrb[0].mxu0
        %v3656 = vpop.f32.mrb[0].mxu0
        %v3657 = vadd.f32 %v3507, %v3656
        %v3658 = vpop.f32.mrb[0].mxu0
        %3659 = vmatprep.mubr.bf16.mxu0 0
        %3660 = vmatmul.mubr.bf16.gmra.mrb[0].mxu0 %v3576
        %v3661 = vpop.f32.mrb[0].mxu0
        %v3662 = vadd.f32 %v3512, %v3661
        %v3663 = vpop.f32.mrb[0].mxu0
        %v3664 = vpop.f32.mrb[0].mxu0
        %v3665 = vadd.f32 %v3517, %v3664
        %v3666 = vpop.f32.mrb[0].mxu0
        %3667 = vmatprep.mubr.bf16.mxu0 0
        %3668 = vmatmul.mubr.bf16.gmra.mrb[0].mxu0 %v3577
        %v3669 = vpop.f32.mrb[0].mxu0
        %v3670 = vadd.f32 %v3522, %v3669
        %v3671 = vpop.f32.mrb[0].mxu0
        %v3672 = vpop.f32.mrb[0].mxu0
        %v3673 = vadd.f32 %v3527, %v3672
        %v3674 = vpop.f32.mrb[0].mxu0
        %3675 = vmatprep.mubr.bf16.mxu0 0
        %3676 = vmatmul.mubr.bf16.gmra.mrb[0].mxu0 %v3578
        %v3677 = vpop.f32.mrb[0].mxu0
        %v3678 = vadd.f32 %v3532, %v3677
        %v3679 = vpop.f32.mrb[0].mxu0
        %v3680 = vpop.f32.mrb[0].mxu0
        %v3681 = vadd.f32 %v3537, %v3680
        %v3682 = vpop.f32.mrb[0].mxu0
        %3683 = vdwg.mxu0
        %3684 = vst [vmem:[%s366] sm:$0xff] %v3622
        %3685 = vst [vmem:[%s366 + $0x8] sm:$0xff] %v3625
        %3686 = vst [vmem:[%s366 + $0x10] sm:$0xff] %v3630
        %3687 = vst [vmem:[%s366 + $0x18] sm:$0xff] %v3633
        %3688 = vst [vmem:[%s366 + $0x20] sm:$0xff] %v3638
        %3689 = vst [vmem:[%s366 + $0x28] sm:$0xff] %v3641
        %3690 = vst [vmem:[%s366 + $0x30] sm:$0xff] %v3646
        %3691 = vst [vmem:[%s366 + $0x38] sm:$0xff] %v3649
        %3692 = vst [vmem:[%s366 + $0x40] sm:$0xff] %v3654
        %3693 = vst [vmem:[%s366 + $0x48] sm:$0xff] %v3657
        %3694 = vst [vmem:[%s366 + $0x50] sm:$0xff] %v3662
        %3695 = vst [vmem:[%s366 + $0x58] sm:$0xff] %v3665
        %3696 = vst [vmem:[%s366 + $0x60] sm:$0xff] %v3670
        %3697 = vst [vmem:[%s366 + $0x68] sm:$0xff] %v3673
        %3698 = vst [vmem:[%s366 + $0x70] sm:$0xff] %v3678
        %3699 = vst [vmem:[%s366 + $0x78] sm:$0xff] %v3681
        %s3700 = sand.u32 %s221, 1
        %s3701 = scalar_lea.sflag [#allocation8], %s3700
        %s3702 = sand.u32 %s221, 1
        %s3703 = smul.addr %s3702, 128
        %s3704 = scalar_lea.vmem [#allocation12], %s3703
        // Predicated region
        $region76: #{tpu_custom_call.1} parent=51 // pred_check
          %p3705 = pneg %p231
        $region77: #{tpu_custom_call.1} parent=51 // pred_check_branch
          %3707 = sbr.rel (%p3705) target = $region79
        $region78: #{tpu_custom_call.1} parent=51 // pred_region
          %s3709 = ssub.s32 2048, 2048
          %3710 = vsyncadd %s3701, %s3709
          %s3711 = smul.addr %s30, 32
          %s3712 = sadd.s32 %s31, %s3711
          %s3713 = smul.addr %s3712, 128
          %s3714 = scalar_lea.hbm %s8, %s3713
          %s3715 = sshll.u32 %s3704, 4
          %s3716 = int_to_ptr.vmem [resolvable:$true] %s3715
          %3721 = dma.vmem_to_hbm [thread:$0]  %s3716, 2048, %s3714, %s3701, 128, 256, 8
        $region79: #{tpu_custom_call.1} parent=51 // pred_fallthru
          _
      $region52: #{tpu_custom_call.1} parent=5 // pred_fallthru
        _
      %p3722 = scmp.le.s32.totalorder 2, %s21
      // Predicated region
      $region80: #{tpu_custom_call.1} parent=5 // pred_check
        %p3723 = pneg %p3722
      $region81: #{tpu_custom_call.1} parent=5 // pred_check_branch
        %3725 = sbr.rel (%p3723) target = $region83
      $region82: #{tpu_custom_call.1} parent=5 // pred_region
        %s3726 = ssub.s32 %s21, 2
        // Predicated region
        $region84: #{tpu_custom_call.1} parent=82 // pred_check
          %p3727 = pneg %p237
        $region85: #{tpu_custom_call.1} parent=82 // pred_check_branch
          %3729 = sbr.rel (%p3727) target = $region87
        $region86: #{tpu_custom_call.1} parent=82 // pred_region
          %s3730 = sand.u32 %s222, 1
          %s3731 = scalar_lea.sflag [#allocation8], %s3730
          %s3732 = sand.u32 %s222, 1
          %s3733 = smul.addr %s3732, 128
          %s3734 = scalar_lea.vmem [#allocation12], %s3733
          %3735 = dma.done %s3731, 2048
        $region87: #{tpu_custom_call.1} parent=82 // pred_fallthru
          _
      $region83: #{tpu_custom_call.1} parent=5 // pred_fallthru
        _
    $region6: #{tpu_custom_call.1} parent=1 // loop_footer
      %s25 = sadd.s32 1, %s21
    $region7: #{tpu_custom_call.1} parent=1 // loop_footer_branch
      %20 = sbr.rel target = $region3
    $region8: #{tpu_custom_call.1} parent=1 // loop_exit
      _
    %3736 = vsyncpa [#allocation7], 1
    %s3737 = scalar_lea.sflag [#allocation7], 1
    %3738 = vsyncpa %s3737, 1
    %3739 = vsyncpa [#allocation10], 1
    %3740 = vsyncpa [#allocation8], 1
    %s3741 = scalar_lea.sflag [#allocation8], 1
    %3742 = vsyncpa %s3741, 1

</llo_original>
